<compile_context>
chip_gen: v7x
topology: tpu7x:2x2x1
jax: 0.10.0
libtpu: 0.0.40
codegen_flags: <defaults>
</compile_context>

<pallas_src>
import functools
import math

import numpy as np
import jax
import jax.numpy as jnp
from jax.experimental import pallas as pl
from jax.experimental.pallas import tpu as pltpu


# --------------------------------- Pallas kernel ---------------------------------

def _encoder_kernel(*refs, specs, batch, seq_pad):
    """Fused  pad-id embedding gather -> [relu -> stride-2 conv] * num_layer.

    refs layout:
      refs[0]                 : ids   (B, L0)            int32  (SMEM)
      refs[1]                 : embed (V, E)             f32    (VMEM)
      refs[2+3l .. 4+3l]      : S_l (K_l, B*l_out, B*l_in) bf16 ; Wr_l (K_l*Cin, Cout) bf16 ;
                                b_l (1, Cout) f32
      refs[2+3*nl]            : out  (B*NF, latent)      f32
      refs[3+3*nl]            : x0 staging scratch (B*L0, E) f32 (VMEM)
    """
    nl = len(specs)
    ids_ref, emb_ref = refs[0], refs[1]
    s_refs = [refs[2 + 3 * l] for l in range(nl)]
    w_refs = [refs[3 + 3 * l] for l in range(nl)]
    b_refs = [refs[4 + 3 * l] for l in range(nl)]
    o_ref = refs[2 + 3 * nl]
    x0_ref = refs[3 + 3 * nl]

    # ---- fused padding+embedding gather: token id -> one (1, E) row copy each ----
    for b in range(batch):
        for t in range(seq_pad):
            tok = ids_ref[b, t]                                    # scalar read (SMEM)
            x0_ref[pl.ds(b * seq_pad + t, 1), :] = emb_ref[pl.ds(tok, 1), :]

    # ---- conv stack; relu + bf16 cast exactly once per layer, activations in registers ----
    x = jnp.maximum(x0_ref[...], 0.0).astype(jnp.bfloat16)         # (B*L0, E)
    for l, (ksz, c_in, c_out, l_in, l_out) in enumerate(specs):
        # im2col without strided loads: tap k rows (2o+k) are gathered by a constant 0/1
        # block-diagonal selection matmul, then all taps are lane-concatenated so the
        # conv itself is ONE wide (B*l_out, K*Cin) @ (K*Cin, Cout) MXU contraction.
        taps = [
            jnp.dot(s_refs[l][k], x, preferred_element_type=jnp.float32).astype(jnp.bfloat16)
            for k in range(ksz)
        ]
        g = jnp.concatenate(taps, axis=-1)                          # (B*l_out, K*Cin) bf16
        acc = jnp.dot(g, w_refs[l][...],
                      preferred_element_type=jnp.float32) + b_refs[l][...]
        if l == nl - 1:
            o_ref[...] = acc                                        # (B*NF, latent) f32, lane-dense
        else:
            x = jnp.maximum(acc, 0.0).astype(jnp.bfloat16)          # next layer input


# --------------------------------- model config ---------------------------------

def build_conv_specs(cfg):
    """Replicates ConvolutionEncoder's conv_shapes + compute_last_filter_shape.

    Returns a list of (ksize, c_in, c_out, seq_in, seq_out) per conv layer.
    """
    E, fs, K = cfg["embed_dim"], cfg["filter_size"], cfg["filter_shape"]
    nl, sl, nf = cfg["num_layer"], cfg["sentence_len"], cfg["num_feature"]
    latent = cfg["latent_size"]

    t = sl + 2 * (K - 1)                       # compute_last_filter_shape
    for _ in range(nl - 1):
        t = (t - K) // 2 + 1
    lfs = t - nf * 2 + 2

    shapes = [(E, fs, K)]
    shapes += [(fs * 2 ** l, fs * 2 ** (l + 1), K) for l in range(nl - 2)]
    shapes += [(fs * 2 ** (nl - 2), latent, lfs)]

    specs, L = [], sl + 2 * (K - 1)
    for (cin, cout, ks) in shapes:
        O = (L - ks) // 2 + 1                  # Conv2d((ks,1), stride=2) output length
        specs.append((ks, cin, cout, L, O))
        L = O
    assert specs[-1][4] == nf, (specs, nf)
    return specs


def build_selection_mats(specs, batch):
    """Constant 0/1 block-diagonal matrices S[k, b*l_out+o, b*l_in+2o+k] = 1 (bf16)."""
    mats = []
    for (ksz, c_in, c_out, l_in, l_out) in specs:
        assert 2 * (l_out - 1) + (ksz - 1) <= l_in - 1, (ksz, l_in, l_out)
        s = np.zeros((ksz, batch * l_out, batch * l_in), np.float32)
        for k in range(ksz):
            for b in range(batch):
                for o in range(l_out):
                    s[k, b * l_out + o, b * l_in + 2 * o + k] = 1.0
        mats.append(jnp.asarray(s, dtype=jnp.bfloat16))
    return mats


def init_params(key, cfg, specs):
    V, E = cfg["vocab_size"], cfg["embed_dim"]
    keys = jax.random.split(key, 1 + 2 * len(specs))
    params = {"embed": jax.random.normal(keys[0], (V, E), jnp.float32)}  # nn.Embedding: N(0,1)
    ws, bs = [], []
    for i, (ks, cin, cout, _, _) in enumerate(specs):
        # _InitWeight(nn.Conv2d): normal(0, sqrt(2 / (kH*kW*in_channels)))
        std = math.sqrt(2.0 / (ks * 1 * cin))
        w_torch = jax.random.normal(keys[1 + 2 * i], (cout, cin, ks), jnp.float32) * std
        ws.append(jnp.transpose(w_torch, (2, 1, 0)))               # (kH, Cin, Cout) f32 master
        bound = 1.0 / math.sqrt(ks * cin)                          # default Conv2d bias init
        bs.append(jax.random.uniform(keys[2 + 2 * i], (1, cout), jnp.float32, -bound, bound))
    params["conv_ws"], params["conv_bs"] = ws, bs
    return params


# --------------------------------- forward pass ---------------------------------

def _pad_ids(token_ids, cfg):
    """ConstantPad1d((K-1, sentence_len - seq + K-1), pad_token_id) on the int ids (cheap)."""
    sl, K, pad_id = cfg["sentence_len"], cfg["filter_shape"], cfg["pad_token_id"]
    x = token_ids[:, :sl]
    left = K - 1
    right = sl - x.shape[1] + K - 1
    return jnp.pad(x, ((0, 0), (left, right)), constant_values=pad_id)


def convolution_encoder_forward(params, token_ids, cfg, specs):
    batch = token_ids.shape[0]
    ids = _pad_ids(token_ids, cfg)                                  # (B, L0) int32
    L0 = int(ids.shape[1])
    nl = len(specs)
    latent, nf = specs[-1][2], specs[-1][4]
    E = params["embed"].shape[1]
    assert L0 == specs[0][3], (L0, specs[0][3])

    sel = build_selection_mats(specs, batch)
    w_flat = [w.reshape(-1, w.shape[-1]).astype(jnp.bfloat16) for w in params["conv_ws"]]

    args = [ids, params["embed"]]
    for l in range(nl):
        args += [sel[l], w_flat[l], params["conv_bs"][l]]

    smem = pl.BlockSpec(memory_space=pltpu.MemorySpace.SMEM)
    vmem = pl.BlockSpec(memory_space=pltpu.MemorySpace.VMEM)

    flops = 0
    for (ksz, c_in, c_out, l_in, l_out) in specs:
        flops += 2 * ksz * (batch * l_out) * (batch * l_in) * c_in  # selection matmuls
        flops += 2 * (batch * l_out) * (ksz * c_in) * c_out         # im2col matmul
    bytes_accessed = sum(int(np.prod(a.shape)) * a.dtype.itemsize for a in args)
    bytes_accessed += batch * nf * latent * 4

    out = pl.pallas_call(
        functools.partial(_encoder_kernel, specs=tuple(specs), batch=batch, seq_pad=L0),
        out_shape=jax.ShapeDtypeStruct((batch * nf, latent), jnp.float32),
        in_specs=[smem, vmem] + [vmem] * (3 * nl),
        out_specs=vmem,
        scratch_shapes=[pltpu.VMEM((batch * L0, E), jnp.float32)],   # embedding staging buffer
        cost_estimate=pl.CostEstimate(flops=flops, transcendentals=0,
                                      bytes_accessed=bytes_accessed),
    )(*args)
    # Tiny (B,NF,latent)->(B,latent,NF) reorder to PyTorch's output layout.
    return jnp.transpose(out.reshape(batch, nf, latent), (0, 2, 1))


def reference_forward(params, token_ids, cfg, specs):
    """Pure-XLA reference with the same bf16 matmul-input quantization as the kernel."""
    ids = _pad_ids(token_ids, cfg)
    h = jnp.take(params["embed"], ids, axis=0)                      # (B, L0, E) f32
    for (ksz, c_in, c_out, l_in, l_out), w, bias in zip(specs, params["conv_ws"],
                                                        params["conv_bs"]):
        hb = jnp.maximum(h, 0.0).astype(jnp.bfloat16).astype(jnp.float32)
        wf = w.astype(jnp.bfloat16).astype(jnp.float32)             # (K, Cin, Cout)
        acc = jnp.zeros((h.shape[0], l_out, c_out), jnp.float32) + bias[None]
        for k in range(ksz):
            acc = acc + jnp.einsum("boc,cd->bod", hb[:, k:k + 2 * l_out:2, :], wf[k])
        h = acc
    return jnp.transpose(h, (0, 2, 1))                              # (B, latent, NF)


# ------------------------------------- main -------------------------------------

if __name__ == "__main__":
    cfg = dict(
        vocab_size=512,        # synthetic vocab (real module uses BertTokenizer's 30522)
        embed_dim=64,
        filter_size=64,
        filter_shape=5,
        num_layer=3,
        sentence_len=32,
        num_feature=3,
        latent_size=128,       # latent on the 128-lane axis -> unmasked output stores
        pad_token_id=0,
        dropout=0.0,           # identity at inference
        reg_layer="none",      # nn.Identity branch of the module
    )
    specs = build_conv_specs(cfg)   # [(5,64,64,40,18), (5,64,128,18,7), (3,128,128,7,3)]

    key = jax.random.PRNGKey(0)
    pkey, dkey = jax.random.split(key)
    params = init_params(pkey, cfg, specs)

    B, seq = 2, 20                  # seq < sentence_len -> exercises the right-padding path
    token_ids = jax.random.randint(dkey, (B, seq), 1, cfg["vocab_size"], dtype=jnp.int32)

    out = jax.block_until_ready(convolution_encoder_forward(params, token_ids, cfg, specs))
    assert out.shape == (B, cfg["latent_size"], cfg["num_feature"]), out.shape
    assert bool(jnp.all(jnp.isfinite(out)))

    ref = jax.block_until_ready(reference_forward(params, token_ids, cfg, specs))
    assert bool(jnp.allclose(out, ref, rtol=2e-2, atol=2e-2)), float(jnp.max(jnp.abs(out - ref)))

    print("KERNEL_OK")
</pallas_src>

<mosaic_0001>
module attributes {stable_mosaic.version = 11 : i64} {
  func.func @_encoder_kernel(%arg0: memref<2x40xi32, #tpu.memory_space<smem>>, %arg1: memref<512x64xf32, #tpu.memory_space<vmem>>, %arg2: memref<5x36x80xbf16, #tpu.memory_space<vmem>>, %arg3: memref<320x64xbf16, #tpu.memory_space<vmem>>, %arg4: memref<1x64xf32, #tpu.memory_space<vmem>>, %arg5: memref<5x14x36xbf16, #tpu.memory_space<vmem>>, %arg6: memref<320x128xbf16, #tpu.memory_space<vmem>>, %arg7: memref<1x128xf32, #tpu.memory_space<vmem>>, %arg8: memref<3x6x14xbf16, #tpu.memory_space<vmem>>, %arg9: memref<384x128xbf16, #tpu.memory_space<vmem>>, %arg10: memref<1x128xf32, #tpu.memory_space<vmem>>, %arg11: memref<6x128xf32, #tpu.memory_space<vmem>>, %arg12: memref<80x64xf32, #tpu.memory_space<vmem>>) attributes {dimension_semantics = [], scalar_prefetch = 0 : i64, scratch_operands = 1 : i64, tpu.core_type = #tpu.core_type<tc>} {
    %c0 = arith.constant 0 : index
    %c0_0 = arith.constant 0 : index
    %0 = memref.load %arg0[%c0, %c0_0] : memref<2x40xi32, #tpu.memory_space<smem>>
    %1 = arith.index_cast %0 : i32 to index
    %c0_1 = arith.constant 0 : index
    %2 = vector.load %arg1[%1, %c0_1] : memref<512x64xf32, #tpu.memory_space<vmem>>, vector<1x64xf32>
    %c0_2 = arith.constant 0 : index
    %c0_3 = arith.constant 0 : index
    %3 = vector.load %arg12[%c0_2, %c0_3] : memref<80x64xf32, #tpu.memory_space<vmem>>, vector<1x64xf32>
    tpu.vector_store %arg12[%c0_2, %c0_3], %2 {strides = array<i32>} : memref<80x64xf32, #tpu.memory_space<vmem>>, vector<1x64xf32>,
    %c0_4 = arith.constant 0 : index
    %c1 = arith.constant 1 : index
    %4 = memref.load %arg0[%c0_4, %c1] : memref<2x40xi32, #tpu.memory_space<smem>>
    %5 = arith.index_cast %4 : i32 to index
    %c0_5 = arith.constant 0 : index
    %6 = vector.load %arg1[%5, %c0_5] : memref<512x64xf32, #tpu.memory_space<vmem>>, vector<1x64xf32>
    %c1_6 = arith.constant 1 : index
    %c0_7 = arith.constant 0 : index
    %7 = vector.load %arg12[%c1_6, %c0_7] : memref<80x64xf32, #tpu.memory_space<vmem>>, vector<1x64xf32>
    tpu.vector_store %arg12[%c1_6, %c0_7], %6 {strides = array<i32>} : memref<80x64xf32, #tpu.memory_space<vmem>>, vector<1x64xf32>,
    %c0_8 = arith.constant 0 : index
    %c2 = arith.constant 2 : index
    %8 = memref.load %arg0[%c0_8, %c2] : memref<2x40xi32, #tpu.memory_space<smem>>
    %9 = arith.index_cast %8 : i32 to index
    %c0_9 = arith.constant 0 : index
    %10 = vector.load %arg1[%9, %c0_9] : memref<512x64xf32, #tpu.memory_space<vmem>>, vector<1x64xf32>
    %c2_10 = arith.constant 2 : index
    %c0_11 = arith.constant 0 : index
    %11 = vector.load %arg12[%c2_10, %c0_11] : memref<80x64xf32, #tpu.memory_space<vmem>>, vector<1x64xf32>
    tpu.vector_store %arg12[%c2_10, %c0_11], %10 {strides = array<i32>} : memref<80x64xf32, #tpu.memory_space<vmem>>, vector<1x64xf32>,
    %c0_12 = arith.constant 0 : index
    %c3 = arith.constant 3 : index
    %12 = memref.load %arg0[%c0_12, %c3] : memref<2x40xi32, #tpu.memory_space<smem>>
    %13 = arith.index_cast %12 : i32 to index
    %c0_13 = arith.constant 0 : index
    %14 = vector.load %arg1[%13, %c0_13] : memref<512x64xf32, #tpu.memory_space<vmem>>, vector<1x64xf32>
    %c3_14 = arith.constant 3 : index
    %c0_15 = arith.constant 0 : index
    %15 = vector.load %arg12[%c3_14, %c0_15] : memref<80x64xf32, #tpu.memory_space<vmem>>, vector<1x64xf32>
    tpu.vector_store %arg12[%c3_14, %c0_15], %14 {strides = array<i32>} : memref<80x64xf32, #tpu.memory_space<vmem>>, vector<1x64xf32>,
    %c0_16 = arith.constant 0 : index
    %c4 = arith.constant 4 : index
    %16 = memref.load %arg0[%c0_16, %c4] : memref<2x40xi32, #tpu.memory_space<smem>>
    %17 = arith.index_cast %16 : i32 to index
    %c0_17 = arith.constant 0 : index
    %18 = vector.load %arg1[%17, %c0_17] : memref<512x64xf32, #tpu.memory_space<vmem>>, vector<1x64xf32>
    %c4_18 = arith.constant 4 : index
    %c0_19 = arith.constant 0 : index
    %19 = vector.load %arg12[%c4_18, %c0_19] : memref<80x64xf32, #tpu.memory_space<vmem>>, vector<1x64xf32>
    tpu.vector_store %arg12[%c4_18, %c0_19], %18 {strides = array<i32>} : memref<80x64xf32, #tpu.memory_space<vmem>>, vector<1x64xf32>,
    %c0_20 = arith.constant 0 : index
    %c5 = arith.constant 5 : index
    %20 = memref.load %arg0[%c0_20, %c5] : memref<2x40xi32, #tpu.memory_space<smem>>
    %21 = arith.index_cast %20 : i32 to index
    %c0_21 = arith.constant 0 : index
    %22 = vector.load %arg1[%21, %c0_21] : memref<512x64xf32, #tpu.memory_space<vmem>>, vector<1x64xf32>
    %c5_22 = arith.constant 5 : index
    %c0_23 = arith.constant 0 : index
    %23 = vector.load %arg12[%c5_22, %c0_23] : memref<80x64xf32, #tpu.memory_space<vmem>>, vector<1x64xf32>
    tpu.vector_store %arg12[%c5_22, %c0_23], %22 {strides = array<i32>} : memref<80x64xf32, #tpu.memory_space<vmem>>, vector<1x64xf32>,
    %c0_24 = arith.constant 0 : index
    %c6 = arith.constant 6 : index
    %24 = memref.load %arg0[%c0_24, %c6] : memref<2x40xi32, #tpu.memory_space<smem>>
    %25 = arith.index_cast %24 : i32 to index
    %c0_25 = arith.constant 0 : index
    %26 = vector.load %arg1[%25, %c0_25] : memref<512x64xf32, #tpu.memory_space<vmem>>, vector<1x64xf32>
    %c6_26 = arith.constant 6 : index
    %c0_27 = arith.constant 0 : index
    %27 = vector.load %arg12[%c6_26, %c0_27] : memref<80x64xf32, #tpu.memory_space<vmem>>, vector<1x64xf32>
    tpu.vector_store %arg12[%c6_26, %c0_27], %26 {strides = array<i32>} : memref<80x64xf32, #tpu.memory_space<vmem>>, vector<1x64xf32>,
    %c0_28 = arith.constant 0 : index
    %c7 = arith.constant 7 : index
    %28 = memref.load %arg0[%c0_28, %c7] : memref<2x40xi32, #tpu.memory_space<smem>>
    %29 = arith.index_cast %28 : i32 to index
    %c0_29 = arith.constant 0 : index
    %30 = vector.load %arg1[%29, %c0_29] : memref<512x64xf32, #tpu.memory_space<vmem>>, vector<1x64xf32>
    %c7_30 = arith.constant 7 : index
    %c0_31 = arith.constant 0 : index
    %31 = vector.load %arg12[%c7_30, %c0_31] : memref<80x64xf32, #tpu.memory_space<vmem>>, vector<1x64xf32>
    tpu.vector_store %arg12[%c7_30, %c0_31], %30 {strides = array<i32>} : memref<80x64xf32, #tpu.memory_space<vmem>>, vector<1x64xf32>,
    %c0_32 = arith.constant 0 : index
    %c8 = arith.constant 8 : index
    %32 = memref.load %arg0[%c0_32, %c8] : memref<2x40xi32, #tpu.memory_space<smem>>
    %33 = arith.index_cast %32 : i32 to index
    %c0_33 = arith.constant 0 : index
    %34 = vector.load %arg1[%33, %c0_33] : memref<512x64xf32, #tpu.memory_space<vmem>>, vector<1x64xf32>
    %c8_34 = arith.constant 8 : index
    %c0_35 = arith.constant 0 : index
    %35 = vector.load %arg12[%c8_34, %c0_35] : memref<80x64xf32, #tpu.memory_space<vmem>>, vector<1x64xf32>
    tpu.vector_store %arg12[%c8_34, %c0_35], %34 {strides = array<i32>} : memref<80x64xf32, #tpu.memory_space<vmem>>, vector<1x64xf32>,
    %c0_36 = arith.constant 0 : index
    %c9 = arith.constant 9 : index
    %36 = memref.load %arg0[%c0_36, %c9] : memref<2x40xi32, #tpu.memory_space<smem>>
    %37 = arith.index_cast %36 : i32 to index
    %c0_37 = arith.constant 0 : index
    %38 = vector.load %arg1[%37, %c0_37] : memref<512x64xf32, #tpu.memory_space<vmem>>, vector<1x64xf32>
    %c9_38 = arith.constant 9 : index
    %c0_39 = arith.constant 0 : index
    %39 = vector.load %arg12[%c9_38, %c0_39] : memref<80x64xf32, #tpu.memory_space<vmem>>, vector<1x64xf32>
    tpu.vector_store %arg12[%c9_38, %c0_39], %38 {strides = array<i32>} : memref<80x64xf32, #tpu.memory_space<vmem>>, vector<1x64xf32>,
    %c0_40 = arith.constant 0 : index
    %c10 = arith.constant 10 : index
    %40 = memref.load %arg0[%c0_40, %c10] : memref<2x40xi32, #tpu.memory_space<smem>>
    %41 = arith.index_cast %40 : i32 to index
    %c0_41 = arith.constant 0 : index
    %42 = vector.load %arg1[%41, %c0_41] : memref<512x64xf32, #tpu.memory_space<vmem>>, vector<1x64xf32>
    %c10_42 = arith.constant 10 : index
    %c0_43 = arith.constant 0 : index
    %43 = vector.load %arg12[%c10_42, %c0_43] : memref<80x64xf32, #tpu.memory_space<vmem>>, vector<1x64xf32>
    tpu.vector_store %arg12[%c10_42, %c0_43], %42 {strides = array<i32>} : memref<80x64xf32, #tpu.memory_space<vmem>>, vector<1x64xf32>,
    %c0_44 = arith.constant 0 : index
    %c11 = arith.constant 11 : index
    %44 = memref.load %arg0[%c0_44, %c11] : memref<2x40xi32, #tpu.memory_space<smem>>
    %45 = arith.index_cast %44 : i32 to index
    %c0_45 = arith.constant 0 : index
    %46 = vector.load %arg1[%45, %c0_45] : memref<512x64xf32, #tpu.memory_space<vmem>>, vector<1x64xf32>
    %c11_46 = arith.constant 11 : index
    %c0_47 = arith.constant 0 : index
    %47 = vector.load %arg12[%c11_46, %c0_47] : memref<80x64xf32, #tpu.memory_space<vmem>>, vector<1x64xf32>
    tpu.vector_store %arg12[%c11_46, %c0_47], %46 {strides = array<i32>} : memref<80x64xf32, #tpu.memory_space<vmem>>, vector<1x64xf32>,
    %c0_48 = arith.constant 0 : index
    %c12 = arith.constant 12 : index
    %48 = memref.load %arg0[%c0_48, %c12] : memref<2x40xi32, #tpu.memory_space<smem>>
    %49 = arith.index_cast %48 : i32 to index
    %c0_49 = arith.constant 0 : index
    %50 = vector.load %arg1[%49, %c0_49] : memref<512x64xf32, #tpu.memory_space<vmem>>, vector<1x64xf32>
    %c12_50 = arith.constant 12 : index
    %c0_51 = arith.constant 0 : index
    %51 = vector.load %arg12[%c12_50, %c0_51] : memref<80x64xf32, #tpu.memory_space<vmem>>, vector<1x64xf32>
    tpu.vector_store %arg12[%c12_50, %c0_51], %50 {strides = array<i32>} : memref<80x64xf32, #tpu.memory_space<vmem>>, vector<1x64xf32>,
    %c0_52 = arith.constant 0 : index
    %c13 = arith.constant 13 : index
    %52 = memref.load %arg0[%c0_52, %c13] : memref<2x40xi32, #tpu.memory_space<smem>>
    %53 = arith.index_cast %52 : i32 to index
    %c0_53 = arith.constant 0 : index
    %54 = vector.load %arg1[%53, %c0_53] : memref<512x64xf32, #tpu.memory_space<vmem>>, vector<1x64xf32>
    %c13_54 = arith.constant 13 : index
    %c0_55 = arith.constant 0 : index
    %55 = vector.load %arg12[%c13_54, %c0_55] : memref<80x64xf32, #tpu.memory_space<vmem>>, vector<1x64xf32>
    tpu.vector_store %arg12[%c13_54, %c0_55], %54 {strides = array<i32>} : memref<80x64xf32, #tpu.memory_space<vmem>>, vector<1x64xf32>,
    %c0_56 = arith.constant 0 : index
    %c14 = arith.constant 14 : index
    %56 = memref.load %arg0[%c0_56, %c14] : memref<2x40xi32, #tpu.memory_space<smem>>
    %57 = arith.index_cast %56 : i32 to index
    %c0_57 = arith.constant 0 : index
    %58 = vector.load %arg1[%57, %c0_57] : memref<512x64xf32, #tpu.memory_space<vmem>>, vector<1x64xf32>
    %c14_58 = arith.constant 14 : index
    %c0_59 = arith.constant 0 : index
    %59 = vector.load %arg12[%c14_58, %c0_59] : memref<80x64xf32, #tpu.memory_space<vmem>>, vector<1x64xf32>
    tpu.vector_store %arg12[%c14_58, %c0_59], %58 {strides = array<i32>} : memref<80x64xf32, #tpu.memory_space<vmem>>, vector<1x64xf32>,
    %c0_60 = arith.constant 0 : index
    %c15 = arith.constant 15 : index
    %60 = memref.load %arg0[%c0_60, %c15] : memref<2x40xi32, #tpu.memory_space<smem>>
    %61 = arith.index_cast %60 : i32 to index
    %c0_61 = arith.constant 0 : index
    %62 = vector.load %arg1[%61, %c0_61] : memref<512x64xf32, #tpu.memory_space<vmem>>, vector<1x64xf32>
    %c15_62 = arith.constant 15 : index
    %c0_63 = arith.constant 0 : index
    %63 = vector.load %arg12[%c15_62, %c0_63] : memref<80x64xf32, #tpu.memory_space<vmem>>, vector<1x64xf32>
    tpu.vector_store %arg12[%c15_62, %c0_63], %62 {strides = array<i32>} : memref<80x64xf32, #tpu.memory_space<vmem>>, vector<1x64xf32>,
    %c0_64 = arith.constant 0 : index
    %c16 = arith.constant 16 : index
    %64 = memref.load %arg0[%c0_64, %c16] : memref<2x40xi32, #tpu.memory_space<smem>>
    %65 = arith.index_cast %64 : i32 to index
    %c0_65 = arith.constant 0 : index
    %66 = vector.load %arg1[%65, %c0_65] : memref<512x64xf32, #tpu.memory_space<vmem>>, vector<1x64xf32>
    %c16_66 = arith.constant 16 : index
    %c0_67 = arith.constant 0 : index
    %67 = vector.load %arg12[%c16_66, %c0_67] : memref<80x64xf32, #tpu.memory_space<vmem>>, vector<1x64xf32>
    tpu.vector_store %arg12[%c16_66, %c0_67], %66 {strides = array<i32>} : memref<80x64xf32, #tpu.memory_space<vmem>>, vector<1x64xf32>,
    %c0_68 = arith.constant 0 : index
    %c17 = arith.constant 17 : index
    %68 = memref.load %arg0[%c0_68, %c17] : memref<2x40xi32, #tpu.memory_space<smem>>
    %69 = arith.index_cast %68 : i32 to index
    %c0_69 = arith.constant 0 : index
    %70 = vector.load %arg1[%69, %c0_69] : memref<512x64xf32, #tpu.memory_space<vmem>>, vector<1x64xf32>
    %c17_70 = arith.constant 17 : index
    %c0_71 = arith.constant 0 : index
    %71 = vector.load %arg12[%c17_70, %c0_71] : memref<80x64xf32, #tpu.memory_space<vmem>>, vector<1x64xf32>
    tpu.vector_store %arg12[%c17_70, %c0_71], %70 {strides = array<i32>} : memref<80x64xf32, #tpu.memory_space<vmem>>, vector<1x64xf32>,
    %c0_72 = arith.constant 0 : index
    %c18 = arith.constant 18 : index
    %72 = memref.load %arg0[%c0_72, %c18] : memref<2x40xi32, #tpu.memory_space<smem>>
    %73 = arith.index_cast %72 : i32 to index
    %c0_73 = arith.constant 0 : index
    %74 = vector.load %arg1[%73, %c0_73] : memref<512x64xf32, #tpu.memory_space<vmem>>, vector<1x64xf32>
    %c18_74 = arith.constant 18 : index
    %c0_75 = arith.constant 0 : index
    %75 = vector.load %arg12[%c18_74, %c0_75] : memref<80x64xf32, #tpu.memory_space<vmem>>, vector<1x64xf32>
    tpu.vector_store %arg12[%c18_74, %c0_75], %74 {strides = array<i32>} : memref<80x64xf32, #tpu.memory_space<vmem>>, vector<1x64xf32>,
    %c0_76 = arith.constant 0 : index
    %c19 = arith.constant 19 : index
    %76 = memref.load %arg0[%c0_76, %c19] : memref<2x40xi32, #tpu.memory_space<smem>>
    %77 = arith.index_cast %76 : i32 to index
    %c0_77 = arith.constant 0 : index
    %78 = vector.load %arg1[%77, %c0_77] : memref<512x64xf32, #tpu.memory_space<vmem>>, vector<1x64xf32>
    %c19_78 = arith.constant 19 : index
    %c0_79 = arith.constant 0 : index
    %79 = vector.load %arg12[%c19_78, %c0_79] : memref<80x64xf32, #tpu.memory_space<vmem>>, vector<1x64xf32>
    tpu.vector_store %arg12[%c19_78, %c0_79], %78 {strides = array<i32>} : memref<80x64xf32, #tpu.memory_space<vmem>>, vector<1x64xf32>,
    %c0_80 = arith.constant 0 : index
    %c20 = arith.constant 20 : index
    %80 = memref.load %arg0[%c0_80, %c20] : memref<2x40xi32, #tpu.memory_space<smem>>
    %81 = arith.index_cast %80 : i32 to index
    %c0_81 = arith.constant 0 : index
    %82 = vector.load %arg1[%81, %c0_81] : memref<512x64xf32, #tpu.memory_space<vmem>>, vector<1x64xf32>
    %c20_82 = arith.constant 20 : index
    %c0_83 = arith.constant 0 : index
    %83 = vector.load %arg12[%c20_82, %c0_83] : memref<80x64xf32, #tpu.memory_space<vmem>>, vector<1x64xf32>
    tpu.vector_store %arg12[%c20_82, %c0_83], %82 {strides = array<i32>} : memref<80x64xf32, #tpu.memory_space<vmem>>, vector<1x64xf32>,
    %c0_84 = arith.constant 0 : index
    %c21 = arith.constant 21 : index
    %84 = memref.load %arg0[%c0_84, %c21] : memref<2x40xi32, #tpu.memory_space<smem>>
    %85 = arith.index_cast %84 : i32 to index
    %c0_85 = arith.constant 0 : index
    %86 = vector.load %arg1[%85, %c0_85] : memref<512x64xf32, #tpu.memory_space<vmem>>, vector<1x64xf32>
    %c21_86 = arith.constant 21 : index
    %c0_87 = arith.constant 0 : index
    %87 = vector.load %arg12[%c21_86, %c0_87] : memref<80x64xf32, #tpu.memory_space<vmem>>, vector<1x64xf32>
    tpu.vector_store %arg12[%c21_86, %c0_87], %86 {strides = array<i32>} : memref<80x64xf32, #tpu.memory_space<vmem>>, vector<1x64xf32>,
    %c0_88 = arith.constant 0 : index
    %c22 = arith.constant 22 : index
    %88 = memref.load %arg0[%c0_88, %c22] : memref<2x40xi32, #tpu.memory_space<smem>>
    %89 = arith.index_cast %88 : i32 to index
    %c0_89 = arith.constant 0 : index
    %90 = vector.load %arg1[%89, %c0_89] : memref<512x64xf32, #tpu.memory_space<vmem>>, vector<1x64xf32>
    %c22_90 = arith.constant 22 : index
    %c0_91 = arith.constant 0 : index
    %91 = vector.load %arg12[%c22_90, %c0_91] : memref<80x64xf32, #tpu.memory_space<vmem>>, vector<1x64xf32>
    tpu.vector_store %arg12[%c22_90, %c0_91], %90 {strides = array<i32>} : memref<80x64xf32, #tpu.memory_space<vmem>>, vector<1x64xf32>,
    %c0_92 = arith.constant 0 : index
    %c23 = arith.constant 23 : index
    %92 = memref.load %arg0[%c0_92, %c23] : memref<2x40xi32, #tpu.memory_space<smem>>
    %93 = arith.index_cast %92 : i32 to index
    %c0_93 = arith.constant 0 : index
    %94 = vector.load %arg1[%93, %c0_93] : memref<512x64xf32, #tpu.memory_space<vmem>>, vector<1x64xf32>
    %c23_94 = arith.constant 23 : index
    %c0_95 = arith.constant 0 : index
    %95 = vector.load %arg12[%c23_94, %c0_95] : memref<80x64xf32, #tpu.memory_space<vmem>>, vector<1x64xf32>
    tpu.vector_store %arg12[%c23_94, %c0_95], %94 {strides = array<i32>} : memref<80x64xf32, #tpu.memory_space<vmem>>, vector<1x64xf32>,
    %c0_96 = arith.constant 0 : index
    %c24 = arith.constant 24 : index
    %96 = memref.load %arg0[%c0_96, %c24] : memref<2x40xi32, #tpu.memory_space<smem>>
    %97 = arith.index_cast %96 : i32 to index
    %c0_97 = arith.constant 0 : index
    %98 = vector.load %arg1[%97, %c0_97] : memref<512x64xf32, #tpu.memory_space<vmem>>, vector<1x64xf32>
    %c24_98 = arith.constant 24 : index
    %c0_99 = arith.constant 0 : index
    %99 = vector.load %arg12[%c24_98, %c0_99] : memref<80x64xf32, #tpu.memory_space<vmem>>, vector<1x64xf32>
    tpu.vector_store %arg12[%c24_98, %c0_99], %98 {strides = array<i32>} : memref<80x64xf32, #tpu.memory_space<vmem>>, vector<1x64xf32>,
    %c0_100 = arith.constant 0 : index
    %c25 = arith.constant 25 : index
    %100 = memref.load %arg0[%c0_100, %c25] : memref<2x40xi32, #tpu.memory_space<smem>>
    %101 = arith.index_cast %100 : i32 to index
    %c0_101 = arith.constant 0 : index
    %102 = vector.load %arg1[%101, %c0_101] : memref<512x64xf32, #tpu.memory_space<vmem>>, vector<1x64xf32>
    %c25_102 = arith.constant 25 : index
    %c0_103 = arith.constant 0 : index
    %103 = vector.load %arg12[%c25_102, %c0_103] : memref<80x64xf32, #tpu.memory_space<vmem>>, vector<1x64xf32>
    tpu.vector_store %arg12[%c25_102, %c0_103], %102 {strides = array<i32>} : memref<80x64xf32, #tpu.memory_space<vmem>>, vector<1x64xf32>,
    %c0_104 = arith.constant 0 : index
    %c26 = arith.constant 26 : index
    %104 = memref.load %arg0[%c0_104, %c26] : memref<2x40xi32, #tpu.memory_space<smem>>
    %105 = arith.index_cast %104 : i32 to index
    %c0_105 = arith.constant 0 : index
    %106 = vector.load %arg1[%105, %c0_105] : memref<512x64xf32, #tpu.memory_space<vmem>>, vector<1x64xf32>
    %c26_106 = arith.constant 26 : index
    %c0_107 = arith.constant 0 : index
    %107 = vector.load %arg12[%c26_106, %c0_107] : memref<80x64xf32, #tpu.memory_space<vmem>>, vector<1x64xf32>
    tpu.vector_store %arg12[%c26_106, %c0_107], %106 {strides = array<i32>} : memref<80x64xf32, #tpu.memory_space<vmem>>, vector<1x64xf32>,
    %c0_108 = arith.constant 0 : index
    %c27 = arith.constant 27 : index
    %108 = memref.load %arg0[%c0_108, %c27] : memref<2x40xi32, #tpu.memory_space<smem>>
    %109 = arith.index_cast %108 : i32 to index
    %c0_109 = arith.constant 0 : index
    %110 = vector.load %arg1[%109, %c0_109] : memref<512x64xf32, #tpu.memory_space<vmem>>, vector<1x64xf32>
    %c27_110 = arith.constant 27 : index
    %c0_111 = arith.constant 0 : index
    %111 = vector.load %arg12[%c27_110, %c0_111] : memref<80x64xf32, #tpu.memory_space<vmem>>, vector<1x64xf32>
    tpu.vector_store %arg12[%c27_110, %c0_111], %110 {strides = array<i32>} : memref<80x64xf32, #tpu.memory_space<vmem>>, vector<1x64xf32>,
    %c0_112 = arith.constant 0 : index
    %c28 = arith.constant 28 : index
    %112 = memref.load %arg0[%c0_112, %c28] : memref<2x40xi32, #tpu.memory_space<smem>>
    %113 = arith.index_cast %112 : i32 to index
    %c0_113 = arith.constant 0 : index
    %114 = vector.load %arg1[%113, %c0_113] : memref<512x64xf32, #tpu.memory_space<vmem>>, vector<1x64xf32>
    %c28_114 = arith.constant 28 : index
    %c0_115 = arith.constant 0 : index
    %115 = vector.load %arg12[%c28_114, %c0_115] : memref<80x64xf32, #tpu.memory_space<vmem>>, vector<1x64xf32>
    tpu.vector_store %arg12[%c28_114, %c0_115], %114 {strides = array<i32>} : memref<80x64xf32, #tpu.memory_space<vmem>>, vector<1x64xf32>,
    %c0_116 = arith.constant 0 : index
    %c29 = arith.constant 29 : index
    %116 = memref.load %arg0[%c0_116, %c29] : memref<2x40xi32, #tpu.memory_space<smem>>
    %117 = arith.index_cast %116 : i32 to index
    %c0_117 = arith.constant 0 : index
    %118 = vector.load %arg1[%117, %c0_117] : memref<512x64xf32, #tpu.memory_space<vmem>>, vector<1x64xf32>
    %c29_118 = arith.constant 29 : index
    %c0_119 = arith.constant 0 : index
    %119 = vector.load %arg12[%c29_118, %c0_119] : memref<80x64xf32, #tpu.memory_space<vmem>>, vector<1x64xf32>
    tpu.vector_store %arg12[%c29_118, %c0_119], %118 {strides = array<i32>} : memref<80x64xf32, #tpu.memory_space<vmem>>, vector<1x64xf32>,
    %c0_120 = arith.constant 0 : index
    %c30 = arith.constant 30 : index
    %120 = memref.load %arg0[%c0_120, %c30] : memref<2x40xi32, #tpu.memory_space<smem>>
    %121 = arith.index_cast %120 : i32 to index
    %c0_121 = arith.constant 0 : index
    %122 = vector.load %arg1[%121, %c0_121] : memref<512x64xf32, #tpu.memory_space<vmem>>, vector<1x64xf32>
    %c30_122 = arith.constant 30 : index
    %c0_123 = arith.constant 0 : index
    %123 = vector.load %arg12[%c30_122, %c0_123] : memref<80x64xf32, #tpu.memory_space<vmem>>, vector<1x64xf32>
    tpu.vector_store %arg12[%c30_122, %c0_123], %122 {strides = array<i32>} : memref<80x64xf32, #tpu.memory_space<vmem>>, vector<1x64xf32>,
    %c0_124 = arith.constant 0 : index
    %c31 = arith.constant 31 : index
    %124 = memref.load %arg0[%c0_124, %c31] : memref<2x40xi32, #tpu.memory_space<smem>>
    %125 = arith.index_cast %124 : i32 to index
    %c0_125 = arith.constant 0 : index
    %126 = vector.load %arg1[%125, %c0_125] : memref<512x64xf32, #tpu.memory_space<vmem>>, vector<1x64xf32>
    %c31_126 = arith.constant 31 : index
    %c0_127 = arith.constant 0 : index
    %127 = vector.load %arg12[%c31_126, %c0_127] : memref<80x64xf32, #tpu.memory_space<vmem>>, vector<1x64xf32>
    tpu.vector_store %arg12[%c31_126, %c0_127], %126 {strides = array<i32>} : memref<80x64xf32, #tpu.memory_space<vmem>>, vector<1x64xf32>,
    %c0_128 = arith.constant 0 : index
    %c32 = arith.constant 32 : index
    %128 = memref.load %arg0[%c0_128, %c32] : memref<2x40xi32, #tpu.memory_space<smem>>
    %129 = arith.index_cast %128 : i32 to index
    %c0_129 = arith.constant 0 : index
    %130 = vector.load %arg1[%129, %c0_129] : memref<512x64xf32, #tpu.memory_space<vmem>>, vector<1x64xf32>
    %c32_130 = arith.constant 32 : index
    %c0_131 = arith.constant 0 : index
    %131 = vector.load %arg12[%c32_130, %c0_131] : memref<80x64xf32, #tpu.memory_space<vmem>>, vector<1x64xf32>
    tpu.vector_store %arg12[%c32_130, %c0_131], %130 {strides = array<i32>} : memref<80x64xf32, #tpu.memory_space<vmem>>, vector<1x64xf32>,
    %c0_132 = arith.constant 0 : index
    %c33 = arith.constant 33 : index
    %132 = memref.load %arg0[%c0_132, %c33] : memref<2x40xi32, #tpu.memory_space<smem>>
    %133 = arith.index_cast %132 : i32 to index
    %c0_133 = arith.constant 0 : index
    %134 = vector.load %arg1[%133, %c0_133] : memref<512x64xf32, #tpu.memory_space<vmem>>, vector<1x64xf32>
    %c33_134 = arith.constant 33 : index
    %c0_135 = arith.constant 0 : index
    %135 = vector.load %arg12[%c33_134, %c0_135] : memref<80x64xf32, #tpu.memory_space<vmem>>, vector<1x64xf32>
    tpu.vector_store %arg12[%c33_134, %c0_135], %134 {strides = array<i32>} : memref<80x64xf32, #tpu.memory_space<vmem>>, vector<1x64xf32>,
    %c0_136 = arith.constant 0 : index
    %c34 = arith.constant 34 : index
    %136 = memref.load %arg0[%c0_136, %c34] : memref<2x40xi32, #tpu.memory_space<smem>>
    %137 = arith.index_cast %136 : i32 to index
    %c0_137 = arith.constant 0 : index
    %138 = vector.load %arg1[%137, %c0_137] : memref<512x64xf32, #tpu.memory_space<vmem>>, vector<1x64xf32>
    %c34_138 = arith.constant 34 : index
    %c0_139 = arith.constant 0 : index
    %139 = vector.load %arg12[%c34_138, %c0_139] : memref<80x64xf32, #tpu.memory_space<vmem>>, vector<1x64xf32>
    tpu.vector_store %arg12[%c34_138, %c0_139], %138 {strides = array<i32>} : memref<80x64xf32, #tpu.memory_space<vmem>>, vector<1x64xf32>,
    %c0_140 = arith.constant 0 : index
    %c35 = arith.constant 35 : index
    %140 = memref.load %arg0[%c0_140, %c35] : memref<2x40xi32, #tpu.memory_space<smem>>
    %141 = arith.index_cast %140 : i32 to index
    %c0_141 = arith.constant 0 : index
    %142 = vector.load %arg1[%141, %c0_141] : memref<512x64xf32, #tpu.memory_space<vmem>>, vector<1x64xf32>
    %c35_142 = arith.constant 35 : index
    %c0_143 = arith.constant 0 : index
    %143 = vector.load %arg12[%c35_142, %c0_143] : memref<80x64xf32, #tpu.memory_space<vmem>>, vector<1x64xf32>
    tpu.vector_store %arg12[%c35_142, %c0_143], %142 {strides = array<i32>} : memref<80x64xf32, #tpu.memory_space<vmem>>, vector<1x64xf32>,
    %c0_144 = arith.constant 0 : index
    %c36 = arith.constant 36 : index
    %144 = memref.load %arg0[%c0_144, %c36] : memref<2x40xi32, #tpu.memory_space<smem>>
    %145 = arith.index_cast %144 : i32 to index
    %c0_145 = arith.constant 0 : index
    %146 = vector.load %arg1[%145, %c0_145] : memref<512x64xf32, #tpu.memory_space<vmem>>, vector<1x64xf32>
    %c36_146 = arith.constant 36 : index
    %c0_147 = arith.constant 0 : index
    %147 = vector.load %arg12[%c36_146, %c0_147] : memref<80x64xf32, #tpu.memory_space<vmem>>, vector<1x64xf32>
    tpu.vector_store %arg12[%c36_146, %c0_147], %146 {strides = array<i32>} : memref<80x64xf32, #tpu.memory_space<vmem>>, vector<1x64xf32>,
    %c0_148 = arith.constant 0 : index
    %c37 = arith.constant 37 : index
    %148 = memref.load %arg0[%c0_148, %c37] : memref<2x40xi32, #tpu.memory_space<smem>>
    %149 = arith.index_cast %148 : i32 to index
    %c0_149 = arith.constant 0 : index
    %150 = vector.load %arg1[%149, %c0_149] : memref<512x64xf32, #tpu.memory_space<vmem>>, vector<1x64xf32>
    %c37_150 = arith.constant 37 : index
    %c0_151 = arith.constant 0 : index
    %151 = vector.load %arg12[%c37_150, %c0_151] : memref<80x64xf32, #tpu.memory_space<vmem>>, vector<1x64xf32>
    tpu.vector_store %arg12[%c37_150, %c0_151], %150 {strides = array<i32>} : memref<80x64xf32, #tpu.memory_space<vmem>>, vector<1x64xf32>,
    %c0_152 = arith.constant 0 : index
    %c38 = arith.constant 38 : index
    %152 = memref.load %arg0[%c0_152, %c38] : memref<2x40xi32, #tpu.memory_space<smem>>
    %153 = arith.index_cast %152 : i32 to index
    %c0_153 = arith.constant 0 : index
    %154 = vector.load %arg1[%153, %c0_153] : memref<512x64xf32, #tpu.memory_space<vmem>>, vector<1x64xf32>
    %c38_154 = arith.constant 38 : index
    %c0_155 = arith.constant 0 : index
    %155 = vector.load %arg12[%c38_154, %c0_155] : memref<80x64xf32, #tpu.memory_space<vmem>>, vector<1x64xf32>
    tpu.vector_store %arg12[%c38_154, %c0_155], %154 {strides = array<i32>} : memref<80x64xf32, #tpu.memory_space<vmem>>, vector<1x64xf32>,
    %c0_156 = arith.constant 0 : index
    %c39 = arith.constant 39 : index
    %156 = memref.load %arg0[%c0_156, %c39] : memref<2x40xi32, #tpu.memory_space<smem>>
    %157 = arith.index_cast %156 : i32 to index
    %c0_157 = arith.constant 0 : index
    %158 = vector.load %arg1[%157, %c0_157] : memref<512x64xf32, #tpu.memory_space<vmem>>, vector<1x64xf32>
    %c39_158 = arith.constant 39 : index
    %c0_159 = arith.constant 0 : index
    %159 = vector.load %arg12[%c39_158, %c0_159] : memref<80x64xf32, #tpu.memory_space<vmem>>, vector<1x64xf32>
    tpu.vector_store %arg12[%c39_158, %c0_159], %158 {strides = array<i32>} : memref<80x64xf32, #tpu.memory_space<vmem>>, vector<1x64xf32>,
    %c1_160 = arith.constant 1 : index
    %c0_161 = arith.constant 0 : index
    %160 = memref.load %arg0[%c1_160, %c0_161] : memref<2x40xi32, #tpu.memory_space<smem>>
    %161 = arith.index_cast %160 : i32 to index
    %c0_162 = arith.constant 0 : index
    %162 = vector.load %arg1[%161, %c0_162] : memref<512x64xf32, #tpu.memory_space<vmem>>, vector<1x64xf32>
    %c40 = arith.constant 40 : index
    %c0_163 = arith.constant 0 : index
    %163 = vector.load %arg12[%c40, %c0_163] : memref<80x64xf32, #tpu.memory_space<vmem>>, vector<1x64xf32>
    tpu.vector_store %arg12[%c40, %c0_163], %162 {strides = array<i32>} : memref<80x64xf32, #tpu.memory_space<vmem>>, vector<1x64xf32>,
    %c1_164 = arith.constant 1 : index
    %c1_165 = arith.constant 1 : index
    %164 = memref.load %arg0[%c1_164, %c1_165] : memref<2x40xi32, #tpu.memory_space<smem>>
    %165 = arith.index_cast %164 : i32 to index
    %c0_166 = arith.constant 0 : index
    %166 = vector.load %arg1[%165, %c0_166] : memref<512x64xf32, #tpu.memory_space<vmem>>, vector<1x64xf32>
    %c41 = arith.constant 41 : index
    %c0_167 = arith.constant 0 : index
    %167 = vector.load %arg12[%c41, %c0_167] : memref<80x64xf32, #tpu.memory_space<vmem>>, vector<1x64xf32>
    tpu.vector_store %arg12[%c41, %c0_167], %166 {strides = array<i32>} : memref<80x64xf32, #tpu.memory_space<vmem>>, vector<1x64xf32>,
    %c1_168 = arith.constant 1 : index
    %c2_169 = arith.constant 2 : index
    %168 = memref.load %arg0[%c1_168, %c2_169] : memref<2x40xi32, #tpu.memory_space<smem>>
    %169 = arith.index_cast %168 : i32 to index
    %c0_170 = arith.constant 0 : index
    %170 = vector.load %arg1[%169, %c0_170] : memref<512x64xf32, #tpu.memory_space<vmem>>, vector<1x64xf32>
    %c42 = arith.constant 42 : index
    %c0_171 = arith.constant 0 : index
    %171 = vector.load %arg12[%c42, %c0_171] : memref<80x64xf32, #tpu.memory_space<vmem>>, vector<1x64xf32>
    tpu.vector_store %arg12[%c42, %c0_171], %170 {strides = array<i32>} : memref<80x64xf32, #tpu.memory_space<vmem>>, vector<1x64xf32>,
    %c1_172 = arith.constant 1 : index
    %c3_173 = arith.constant 3 : index
    %172 = memref.load %arg0[%c1_172, %c3_173] : memref<2x40xi32, #tpu.memory_space<smem>>
    %173 = arith.index_cast %172 : i32 to index
    %c0_174 = arith.constant 0 : index
    %174 = vector.load %arg1[%173, %c0_174] : memref<512x64xf32, #tpu.memory_space<vmem>>, vector<1x64xf32>
    %c43 = arith.constant 43 : index
    %c0_175 = arith.constant 0 : index
    %175 = vector.load %arg12[%c43, %c0_175] : memref<80x64xf32, #tpu.memory_space<vmem>>, vector<1x64xf32>
    tpu.vector_store %arg12[%c43, %c0_175], %174 {strides = array<i32>} : memref<80x64xf32, #tpu.memory_space<vmem>>, vector<1x64xf32>,
    %c1_176 = arith.constant 1 : index
    %c4_177 = arith.constant 4 : index
    %176 = memref.load %arg0[%c1_176, %c4_177] : memref<2x40xi32, #tpu.memory_space<smem>>
    %177 = arith.index_cast %176 : i32 to index
    %c0_178 = arith.constant 0 : index
    %178 = vector.load %arg1[%177, %c0_178] : memref<512x64xf32, #tpu.memory_space<vmem>>, vector<1x64xf32>
    %c44 = arith.constant 44 : index
    %c0_179 = arith.constant 0 : index
    %179 = vector.load %arg12[%c44, %c0_179] : memref<80x64xf32, #tpu.memory_space<vmem>>, vector<1x64xf32>
    tpu.vector_store %arg12[%c44, %c0_179], %178 {strides = array<i32>} : memref<80x64xf32, #tpu.memory_space<vmem>>, vector<1x64xf32>,
    %c1_180 = arith.constant 1 : index
    %c5_181 = arith.constant 5 : index
    %180 = memref.load %arg0[%c1_180, %c5_181] : memref<2x40xi32, #tpu.memory_space<smem>>
    %181 = arith.index_cast %180 : i32 to index
    %c0_182 = arith.constant 0 : index
    %182 = vector.load %arg1[%181, %c0_182] : memref<512x64xf32, #tpu.memory_space<vmem>>, vector<1x64xf32>
    %c45 = arith.constant 45 : index
    %c0_183 = arith.constant 0 : index
    %183 = vector.load %arg12[%c45, %c0_183] : memref<80x64xf32, #tpu.memory_space<vmem>>, vector<1x64xf32>
    tpu.vector_store %arg12[%c45, %c0_183], %182 {strides = array<i32>} : memref<80x64xf32, #tpu.memory_space<vmem>>, vector<1x64xf32>,
    %c1_184 = arith.constant 1 : index
    %c6_185 = arith.constant 6 : index
    %184 = memref.load %arg0[%c1_184, %c6_185] : memref<2x40xi32, #tpu.memory_space<smem>>
    %185 = arith.index_cast %184 : i32 to index
    %c0_186 = arith.constant 0 : index
    %186 = vector.load %arg1[%185, %c0_186] : memref<512x64xf32, #tpu.memory_space<vmem>>, vector<1x64xf32>
    %c46 = arith.constant 46 : index
    %c0_187 = arith.constant 0 : index
    %187 = vector.load %arg12[%c46, %c0_187] : memref<80x64xf32, #tpu.memory_space<vmem>>, vector<1x64xf32>
    tpu.vector_store %arg12[%c46, %c0_187], %186 {strides = array<i32>} : memref<80x64xf32, #tpu.memory_space<vmem>>, vector<1x64xf32>,
    %c1_188 = arith.constant 1 : index
    %c7_189 = arith.constant 7 : index
    %188 = memref.load %arg0[%c1_188, %c7_189] : memref<2x40xi32, #tpu.memory_space<smem>>
    %189 = arith.index_cast %188 : i32 to index
    %c0_190 = arith.constant 0 : index
    %190 = vector.load %arg1[%189, %c0_190] : memref<512x64xf32, #tpu.memory_space<vmem>>, vector<1x64xf32>
    %c47 = arith.constant 47 : index
    %c0_191 = arith.constant 0 : index
    %191 = vector.load %arg12[%c47, %c0_191] : memref<80x64xf32, #tpu.memory_space<vmem>>, vector<1x64xf32>
    tpu.vector_store %arg12[%c47, %c0_191], %190 {strides = array<i32>} : memref<80x64xf32, #tpu.memory_space<vmem>>, vector<1x64xf32>,
    %c1_192 = arith.constant 1 : index
    %c8_193 = arith.constant 8 : index
    %192 = memref.load %arg0[%c1_192, %c8_193] : memref<2x40xi32, #tpu.memory_space<smem>>
    %193 = arith.index_cast %192 : i32 to index
    %c0_194 = arith.constant 0 : index
    %194 = vector.load %arg1[%193, %c0_194] : memref<512x64xf32, #tpu.memory_space<vmem>>, vector<1x64xf32>
    %c48 = arith.constant 48 : index
    %c0_195 = arith.constant 0 : index
    %195 = vector.load %arg12[%c48, %c0_195] : memref<80x64xf32, #tpu.memory_space<vmem>>, vector<1x64xf32>
    tpu.vector_store %arg12[%c48, %c0_195], %194 {strides = array<i32>} : memref<80x64xf32, #tpu.memory_space<vmem>>, vector<1x64xf32>,
    %c1_196 = arith.constant 1 : index
    %c9_197 = arith.constant 9 : index
    %196 = memref.load %arg0[%c1_196, %c9_197] : memref<2x40xi32, #tpu.memory_space<smem>>
    %197 = arith.index_cast %196 : i32 to index
    %c0_198 = arith.constant 0 : index
    %198 = vector.load %arg1[%197, %c0_198] : memref<512x64xf32, #tpu.memory_space<vmem>>, vector<1x64xf32>
    %c49 = arith.constant 49 : index
    %c0_199 = arith.constant 0 : index
    %199 = vector.load %arg12[%c49, %c0_199] : memref<80x64xf32, #tpu.memory_space<vmem>>, vector<1x64xf32>
    tpu.vector_store %arg12[%c49, %c0_199], %198 {strides = array<i32>} : memref<80x64xf32, #tpu.memory_space<vmem>>, vector<1x64xf32>,
    %c1_200 = arith.constant 1 : index
    %c10_201 = arith.constant 10 : index
    %200 = memref.load %arg0[%c1_200, %c10_201] : memref<2x40xi32, #tpu.memory_space<smem>>
    %201 = arith.index_cast %200 : i32 to index
    %c0_202 = arith.constant 0 : index
    %202 = vector.load %arg1[%201, %c0_202] : memref<512x64xf32, #tpu.memory_space<vmem>>, vector<1x64xf32>
    %c50 = arith.constant 50 : index
    %c0_203 = arith.constant 0 : index
    %203 = vector.load %arg12[%c50, %c0_203] : memref<80x64xf32, #tpu.memory_space<vmem>>, vector<1x64xf32>
    tpu.vector_store %arg12[%c50, %c0_203], %202 {strides = array<i32>} : memref<80x64xf32, #tpu.memory_space<vmem>>, vector<1x64xf32>,
    %c1_204 = arith.constant 1 : index
    %c11_205 = arith.constant 11 : index
    %204 = memref.load %arg0[%c1_204, %c11_205] : memref<2x40xi32, #tpu.memory_space<smem>>
    %205 = arith.index_cast %204 : i32 to index
    %c0_206 = arith.constant 0 : index
    %206 = vector.load %arg1[%205, %c0_206] : memref<512x64xf32, #tpu.memory_space<vmem>>, vector<1x64xf32>
    %c51 = arith.constant 51 : index
    %c0_207 = arith.constant 0 : index
    %207 = vector.load %arg12[%c51, %c0_207] : memref<80x64xf32, #tpu.memory_space<vmem>>, vector<1x64xf32>
    tpu.vector_store %arg12[%c51, %c0_207], %206 {strides = array<i32>} : memref<80x64xf32, #tpu.memory_space<vmem>>, vector<1x64xf32>,
    %c1_208 = arith.constant 1 : index
    %c12_209 = arith.constant 12 : index
    %208 = memref.load %arg0[%c1_208, %c12_209] : memref<2x40xi32, #tpu.memory_space<smem>>
    %209 = arith.index_cast %208 : i32 to index
    %c0_210 = arith.constant 0 : index
    %210 = vector.load %arg1[%209, %c0_210] : memref<512x64xf32, #tpu.memory_space<vmem>>, vector<1x64xf32>
    %c52 = arith.constant 52 : index
    %c0_211 = arith.constant 0 : index
    %211 = vector.load %arg12[%c52, %c0_211] : memref<80x64xf32, #tpu.memory_space<vmem>>, vector<1x64xf32>
    tpu.vector_store %arg12[%c52, %c0_211], %210 {strides = array<i32>} : memref<80x64xf32, #tpu.memory_space<vmem>>, vector<1x64xf32>,
    %c1_212 = arith.constant 1 : index
    %c13_213 = arith.constant 13 : index
    %212 = memref.load %arg0[%c1_212, %c13_213] : memref<2x40xi32, #tpu.memory_space<smem>>
    %213 = arith.index_cast %212 : i32 to index
    %c0_214 = arith.constant 0 : index
    %214 = vector.load %arg1[%213, %c0_214] : memref<512x64xf32, #tpu.memory_space<vmem>>, vector<1x64xf32>
    %c53 = arith.constant 53 : index
    %c0_215 = arith.constant 0 : index
    %215 = vector.load %arg12[%c53, %c0_215] : memref<80x64xf32, #tpu.memory_space<vmem>>, vector<1x64xf32>
    tpu.vector_store %arg12[%c53, %c0_215], %214 {strides = array<i32>} : memref<80x64xf32, #tpu.memory_space<vmem>>, vector<1x64xf32>,
    %c1_216 = arith.constant 1 : index
    %c14_217 = arith.constant 14 : index
    %216 = memref.load %arg0[%c1_216, %c14_217] : memref<2x40xi32, #tpu.memory_space<smem>>
    %217 = arith.index_cast %216 : i32 to index
    %c0_218 = arith.constant 0 : index
    %218 = vector.load %arg1[%217, %c0_218] : memref<512x64xf32, #tpu.memory_space<vmem>>, vector<1x64xf32>
    %c54 = arith.constant 54 : index
    %c0_219 = arith.constant 0 : index
    %219 = vector.load %arg12[%c54, %c0_219] : memref<80x64xf32, #tpu.memory_space<vmem>>, vector<1x64xf32>
    tpu.vector_store %arg12[%c54, %c0_219], %218 {strides = array<i32>} : memref<80x64xf32, #tpu.memory_space<vmem>>, vector<1x64xf32>,
    %c1_220 = arith.constant 1 : index
    %c15_221 = arith.constant 15 : index
    %220 = memref.load %arg0[%c1_220, %c15_221] : memref<2x40xi32, #tpu.memory_space<smem>>
    %221 = arith.index_cast %220 : i32 to index
    %c0_222 = arith.constant 0 : index
    %222 = vector.load %arg1[%221, %c0_222] : memref<512x64xf32, #tpu.memory_space<vmem>>, vector<1x64xf32>
    %c55 = arith.constant 55 : index
    %c0_223 = arith.constant 0 : index
    %223 = vector.load %arg12[%c55, %c0_223] : memref<80x64xf32, #tpu.memory_space<vmem>>, vector<1x64xf32>
    tpu.vector_store %arg12[%c55, %c0_223], %222 {strides = array<i32>} : memref<80x64xf32, #tpu.memory_space<vmem>>, vector<1x64xf32>,
    %c1_224 = arith.constant 1 : index
    %c16_225 = arith.constant 16 : index
    %224 = memref.load %arg0[%c1_224, %c16_225] : memref<2x40xi32, #tpu.memory_space<smem>>
    %225 = arith.index_cast %224 : i32 to index
    %c0_226 = arith.constant 0 : index
    %226 = vector.load %arg1[%225, %c0_226] : memref<512x64xf32, #tpu.memory_space<vmem>>, vector<1x64xf32>
    %c56 = arith.constant 56 : index
    %c0_227 = arith.constant 0 : index
    %227 = vector.load %arg12[%c56, %c0_227] : memref<80x64xf32, #tpu.memory_space<vmem>>, vector<1x64xf32>
    tpu.vector_store %arg12[%c56, %c0_227], %226 {strides = array<i32>} : memref<80x64xf32, #tpu.memory_space<vmem>>, vector<1x64xf32>,
    %c1_228 = arith.constant 1 : index
    %c17_229 = arith.constant 17 : index
    %228 = memref.load %arg0[%c1_228, %c17_229] : memref<2x40xi32, #tpu.memory_space<smem>>
    %229 = arith.index_cast %228 : i32 to index
    %c0_230 = arith.constant 0 : index
    %230 = vector.load %arg1[%229, %c0_230] : memref<512x64xf32, #tpu.memory_space<vmem>>, vector<1x64xf32>
    %c57 = arith.constant 57 : index
    %c0_231 = arith.constant 0 : index
    %231 = vector.load %arg12[%c57, %c0_231] : memref<80x64xf32, #tpu.memory_space<vmem>>, vector<1x64xf32>
    tpu.vector_store %arg12[%c57, %c0_231], %230 {strides = array<i32>} : memref<80x64xf32, #tpu.memory_space<vmem>>, vector<1x64xf32>,
    %c1_232 = arith.constant 1 : index
    %c18_233 = arith.constant 18 : index
    %232 = memref.load %arg0[%c1_232, %c18_233] : memref<2x40xi32, #tpu.memory_space<smem>>
    %233 = arith.index_cast %232 : i32 to index
    %c0_234 = arith.constant 0 : index
    %234 = vector.load %arg1[%233, %c0_234] : memref<512x64xf32, #tpu.memory_space<vmem>>, vector<1x64xf32>
    %c58 = arith.constant 58 : index
    %c0_235 = arith.constant 0 : index
    %235 = vector.load %arg12[%c58, %c0_235] : memref<80x64xf32, #tpu.memory_space<vmem>>, vector<1x64xf32>
    tpu.vector_store %arg12[%c58, %c0_235], %234 {strides = array<i32>} : memref<80x64xf32, #tpu.memory_space<vmem>>, vector<1x64xf32>,
    %c1_236 = arith.constant 1 : index
    %c19_237 = arith.constant 19 : index
    %236 = memref.load %arg0[%c1_236, %c19_237] : memref<2x40xi32, #tpu.memory_space<smem>>
    %237 = arith.index_cast %236 : i32 to index
    %c0_238 = arith.constant 0 : index
    %238 = vector.load %arg1[%237, %c0_238] : memref<512x64xf32, #tpu.memory_space<vmem>>, vector<1x64xf32>
    %c59 = arith.constant 59 : index
    %c0_239 = arith.constant 0 : index
    %239 = vector.load %arg12[%c59, %c0_239] : memref<80x64xf32, #tpu.memory_space<vmem>>, vector<1x64xf32>
    tpu.vector_store %arg12[%c59, %c0_239], %238 {strides = array<i32>} : memref<80x64xf32, #tpu.memory_space<vmem>>, vector<1x64xf32>,
    %c1_240 = arith.constant 1 : index
    %c20_241 = arith.constant 20 : index
    %240 = memref.load %arg0[%c1_240, %c20_241] : memref<2x40xi32, #tpu.memory_space<smem>>
    %241 = arith.index_cast %240 : i32 to index
    %c0_242 = arith.constant 0 : index
    %242 = vector.load %arg1[%241, %c0_242] : memref<512x64xf32, #tpu.memory_space<vmem>>, vector<1x64xf32>
    %c60 = arith.constant 60 : index
    %c0_243 = arith.constant 0 : index
    %243 = vector.load %arg12[%c60, %c0_243] : memref<80x64xf32, #tpu.memory_space<vmem>>, vector<1x64xf32>
    tpu.vector_store %arg12[%c60, %c0_243], %242 {strides = array<i32>} : memref<80x64xf32, #tpu.memory_space<vmem>>, vector<1x64xf32>,
    %c1_244 = arith.constant 1 : index
    %c21_245 = arith.constant 21 : index
    %244 = memref.load %arg0[%c1_244, %c21_245] : memref<2x40xi32, #tpu.memory_space<smem>>
    %245 = arith.index_cast %244 : i32 to index
    %c0_246 = arith.constant 0 : index
    %246 = vector.load %arg1[%245, %c0_246] : memref<512x64xf32, #tpu.memory_space<vmem>>, vector<1x64xf32>
    %c61 = arith.constant 61 : index
    %c0_247 = arith.constant 0 : index
    %247 = vector.load %arg12[%c61, %c0_247] : memref<80x64xf32, #tpu.memory_space<vmem>>, vector<1x64xf32>
    tpu.vector_store %arg12[%c61, %c0_247], %246 {strides = array<i32>} : memref<80x64xf32, #tpu.memory_space<vmem>>, vector<1x64xf32>,
    %c1_248 = arith.constant 1 : index
    %c22_249 = arith.constant 22 : index
    %248 = memref.load %arg0[%c1_248, %c22_249] : memref<2x40xi32, #tpu.memory_space<smem>>
    %249 = arith.index_cast %248 : i32 to index
    %c0_250 = arith.constant 0 : index
    %250 = vector.load %arg1[%249, %c0_250] : memref<512x64xf32, #tpu.memory_space<vmem>>, vector<1x64xf32>
    %c62 = arith.constant 62 : index
    %c0_251 = arith.constant 0 : index
    %251 = vector.load %arg12[%c62, %c0_251] : memref<80x64xf32, #tpu.memory_space<vmem>>, vector<1x64xf32>
    tpu.vector_store %arg12[%c62, %c0_251], %250 {strides = array<i32>} : memref<80x64xf32, #tpu.memory_space<vmem>>, vector<1x64xf32>,
    %c1_252 = arith.constant 1 : index
    %c23_253 = arith.constant 23 : index
    %252 = memref.load %arg0[%c1_252, %c23_253] : memref<2x40xi32, #tpu.memory_space<smem>>
    %253 = arith.index_cast %252 : i32 to index
    %c0_254 = arith.constant 0 : index
    %254 = vector.load %arg1[%253, %c0_254] : memref<512x64xf32, #tpu.memory_space<vmem>>, vector<1x64xf32>
    %c63 = arith.constant 63 : index
    %c0_255 = arith.constant 0 : index
    %255 = vector.load %arg12[%c63, %c0_255] : memref<80x64xf32, #tpu.memory_space<vmem>>, vector<1x64xf32>
    tpu.vector_store %arg12[%c63, %c0_255], %254 {strides = array<i32>} : memref<80x64xf32, #tpu.memory_space<vmem>>, vector<1x64xf32>,
    %c1_256 = arith.constant 1 : index
    %c24_257 = arith.constant 24 : index
    %256 = memref.load %arg0[%c1_256, %c24_257] : memref<2x40xi32, #tpu.memory_space<smem>>
    %257 = arith.index_cast %256 : i32 to index
    %c0_258 = arith.constant 0 : index
    %258 = vector.load %arg1[%257, %c0_258] : memref<512x64xf32, #tpu.memory_space<vmem>>, vector<1x64xf32>
    %c64 = arith.constant 64 : index
    %c0_259 = arith.constant 0 : index
    %259 = vector.load %arg12[%c64, %c0_259] : memref<80x64xf32, #tpu.memory_space<vmem>>, vector<1x64xf32>
    tpu.vector_store %arg12[%c64, %c0_259], %258 {strides = array<i32>} : memref<80x64xf32, #tpu.memory_space<vmem>>, vector<1x64xf32>,
    %c1_260 = arith.constant 1 : index
    %c25_261 = arith.constant 25 : index
    %260 = memref.load %arg0[%c1_260, %c25_261] : memref<2x40xi32, #tpu.memory_space<smem>>
    %261 = arith.index_cast %260 : i32 to index
    %c0_262 = arith.constant 0 : index
    %262 = vector.load %arg1[%261, %c0_262] : memref<512x64xf32, #tpu.memory_space<vmem>>, vector<1x64xf32>
    %c65 = arith.constant 65 : index
    %c0_263 = arith.constant 0 : index
    %263 = vector.load %arg12[%c65, %c0_263] : memref<80x64xf32, #tpu.memory_space<vmem>>, vector<1x64xf32>
    tpu.vector_store %arg12[%c65, %c0_263], %262 {strides = array<i32>} : memref<80x64xf32, #tpu.memory_space<vmem>>, vector<1x64xf32>,
    %c1_264 = arith.constant 1 : index
    %c26_265 = arith.constant 26 : index
    %264 = memref.load %arg0[%c1_264, %c26_265] : memref<2x40xi32, #tpu.memory_space<smem>>
    %265 = arith.index_cast %264 : i32 to index
    %c0_266 = arith.constant 0 : index
    %266 = vector.load %arg1[%265, %c0_266] : memref<512x64xf32, #tpu.memory_space<vmem>>, vector<1x64xf32>
    %c66 = arith.constant 66 : index
    %c0_267 = arith.constant 0 : index
    %267 = vector.load %arg12[%c66, %c0_267] : memref<80x64xf32, #tpu.memory_space<vmem>>, vector<1x64xf32>
    tpu.vector_store %arg12[%c66, %c0_267], %266 {strides = array<i32>} : memref<80x64xf32, #tpu.memory_space<vmem>>, vector<1x64xf32>,
    %c1_268 = arith.constant 1 : index
    %c27_269 = arith.constant 27 : index
    %268 = memref.load %arg0[%c1_268, %c27_269] : memref<2x40xi32, #tpu.memory_space<smem>>
    %269 = arith.index_cast %268 : i32 to index
    %c0_270 = arith.constant 0 : index
    %270 = vector.load %arg1[%269, %c0_270] : memref<512x64xf32, #tpu.memory_space<vmem>>, vector<1x64xf32>
    %c67 = arith.constant 67 : index
    %c0_271 = arith.constant 0 : index
    %271 = vector.load %arg12[%c67, %c0_271] : memref<80x64xf32, #tpu.memory_space<vmem>>, vector<1x64xf32>
    tpu.vector_store %arg12[%c67, %c0_271], %270 {strides = array<i32>} : memref<80x64xf32, #tpu.memory_space<vmem>>, vector<1x64xf32>,
    %c1_272 = arith.constant 1 : index
    %c28_273 = arith.constant 28 : index
    %272 = memref.load %arg0[%c1_272, %c28_273] : memref<2x40xi32, #tpu.memory_space<smem>>
    %273 = arith.index_cast %272 : i32 to index
    %c0_274 = arith.constant 0 : index
    %274 = vector.load %arg1[%273, %c0_274] : memref<512x64xf32, #tpu.memory_space<vmem>>, vector<1x64xf32>
    %c68 = arith.constant 68 : index
    %c0_275 = arith.constant 0 : index
    %275 = vector.load %arg12[%c68, %c0_275] : memref<80x64xf32, #tpu.memory_space<vmem>>, vector<1x64xf32>
    tpu.vector_store %arg12[%c68, %c0_275], %274 {strides = array<i32>} : memref<80x64xf32, #tpu.memory_space<vmem>>, vector<1x64xf32>,
    %c1_276 = arith.constant 1 : index
    %c29_277 = arith.constant 29 : index
    %276 = memref.load %arg0[%c1_276, %c29_277] : memref<2x40xi32, #tpu.memory_space<smem>>
    %277 = arith.index_cast %276 : i32 to index
    %c0_278 = arith.constant 0 : index
    %278 = vector.load %arg1[%277, %c0_278] : memref<512x64xf32, #tpu.memory_space<vmem>>, vector<1x64xf32>
    %c69 = arith.constant 69 : index
    %c0_279 = arith.constant 0 : index
    %279 = vector.load %arg12[%c69, %c0_279] : memref<80x64xf32, #tpu.memory_space<vmem>>, vector<1x64xf32>
    tpu.vector_store %arg12[%c69, %c0_279], %278 {strides = array<i32>} : memref<80x64xf32, #tpu.memory_space<vmem>>, vector<1x64xf32>,
    %c1_280 = arith.constant 1 : index
    %c30_281 = arith.constant 30 : index
    %280 = memref.load %arg0[%c1_280, %c30_281] : memref<2x40xi32, #tpu.memory_space<smem>>
    %281 = arith.index_cast %280 : i32 to index
    %c0_282 = arith.constant 0 : index
    %282 = vector.load %arg1[%281, %c0_282] : memref<512x64xf32, #tpu.memory_space<vmem>>, vector<1x64xf32>
    %c70 = arith.constant 70 : index
    %c0_283 = arith.constant 0 : index
    %283 = vector.load %arg12[%c70, %c0_283] : memref<80x64xf32, #tpu.memory_space<vmem>>, vector<1x64xf32>
    tpu.vector_store %arg12[%c70, %c0_283], %282 {strides = array<i32>} : memref<80x64xf32, #tpu.memory_space<vmem>>, vector<1x64xf32>,
    %c1_284 = arith.constant 1 : index
    %c31_285 = arith.constant 31 : index
    %284 = memref.load %arg0[%c1_284, %c31_285] : memref<2x40xi32, #tpu.memory_space<smem>>
    %285 = arith.index_cast %284 : i32 to index
    %c0_286 = arith.constant 0 : index
    %286 = vector.load %arg1[%285, %c0_286] : memref<512x64xf32, #tpu.memory_space<vmem>>, vector<1x64xf32>
    %c71 = arith.constant 71 : index
    %c0_287 = arith.constant 0 : index
    %287 = vector.load %arg12[%c71, %c0_287] : memref<80x64xf32, #tpu.memory_space<vmem>>, vector<1x64xf32>
    tpu.vector_store %arg12[%c71, %c0_287], %286 {strides = array<i32>} : memref<80x64xf32, #tpu.memory_space<vmem>>, vector<1x64xf32>,
    %c1_288 = arith.constant 1 : index
    %c32_289 = arith.constant 32 : index
    %288 = memref.load %arg0[%c1_288, %c32_289] : memref<2x40xi32, #tpu.memory_space<smem>>
    %289 = arith.index_cast %288 : i32 to index
    %c0_290 = arith.constant 0 : index
    %290 = vector.load %arg1[%289, %c0_290] : memref<512x64xf32, #tpu.memory_space<vmem>>, vector<1x64xf32>
    %c72 = arith.constant 72 : index
    %c0_291 = arith.constant 0 : index
    %291 = vector.load %arg12[%c72, %c0_291] : memref<80x64xf32, #tpu.memory_space<vmem>>, vector<1x64xf32>
    tpu.vector_store %arg12[%c72, %c0_291], %290 {strides = array<i32>} : memref<80x64xf32, #tpu.memory_space<vmem>>, vector<1x64xf32>,
    %c1_292 = arith.constant 1 : index
    %c33_293 = arith.constant 33 : index
    %292 = memref.load %arg0[%c1_292, %c33_293] : memref<2x40xi32, #tpu.memory_space<smem>>
    %293 = arith.index_cast %292 : i32 to index
    %c0_294 = arith.constant 0 : index
    %294 = vector.load %arg1[%293, %c0_294] : memref<512x64xf32, #tpu.memory_space<vmem>>, vector<1x64xf32>
    %c73 = arith.constant 73 : index
    %c0_295 = arith.constant 0 : index
    %295 = vector.load %arg12[%c73, %c0_295] : memref<80x64xf32, #tpu.memory_space<vmem>>, vector<1x64xf32>
    tpu.vector_store %arg12[%c73, %c0_295], %294 {strides = array<i32>} : memref<80x64xf32, #tpu.memory_space<vmem>>, vector<1x64xf32>,
    %c1_296 = arith.constant 1 : index
    %c34_297 = arith.constant 34 : index
    %296 = memref.load %arg0[%c1_296, %c34_297] : memref<2x40xi32, #tpu.memory_space<smem>>
    %297 = arith.index_cast %296 : i32 to index
    %c0_298 = arith.constant 0 : index
    %298 = vector.load %arg1[%297, %c0_298] : memref<512x64xf32, #tpu.memory_space<vmem>>, vector<1x64xf32>
    %c74 = arith.constant 74 : index
    %c0_299 = arith.constant 0 : index
    %299 = vector.load %arg12[%c74, %c0_299] : memref<80x64xf32, #tpu.memory_space<vmem>>, vector<1x64xf32>
    tpu.vector_store %arg12[%c74, %c0_299], %298 {strides = array<i32>} : memref<80x64xf32, #tpu.memory_space<vmem>>, vector<1x64xf32>,
    %c1_300 = arith.constant 1 : index
    %c35_301 = arith.constant 35 : index
    %300 = memref.load %arg0[%c1_300, %c35_301] : memref<2x40xi32, #tpu.memory_space<smem>>
    %301 = arith.index_cast %300 : i32 to index
    %c0_302 = arith.constant 0 : index
    %302 = vector.load %arg1[%301, %c0_302] : memref<512x64xf32, #tpu.memory_space<vmem>>, vector<1x64xf32>
    %c75 = arith.constant 75 : index
    %c0_303 = arith.constant 0 : index
    %303 = vector.load %arg12[%c75, %c0_303] : memref<80x64xf32, #tpu.memory_space<vmem>>, vector<1x64xf32>
    tpu.vector_store %arg12[%c75, %c0_303], %302 {strides = array<i32>} : memref<80x64xf32, #tpu.memory_space<vmem>>, vector<1x64xf32>,
    %c1_304 = arith.constant 1 : index
    %c36_305 = arith.constant 36 : index
    %304 = memref.load %arg0[%c1_304, %c36_305] : memref<2x40xi32, #tpu.memory_space<smem>>
    %305 = arith.index_cast %304 : i32 to index
    %c0_306 = arith.constant 0 : index
    %306 = vector.load %arg1[%305, %c0_306] : memref<512x64xf32, #tpu.memory_space<vmem>>, vector<1x64xf32>
    %c76 = arith.constant 76 : index
    %c0_307 = arith.constant 0 : index
    %307 = vector.load %arg12[%c76, %c0_307] : memref<80x64xf32, #tpu.memory_space<vmem>>, vector<1x64xf32>
    tpu.vector_store %arg12[%c76, %c0_307], %306 {strides = array<i32>} : memref<80x64xf32, #tpu.memory_space<vmem>>, vector<1x64xf32>,
    %c1_308 = arith.constant 1 : index
    %c37_309 = arith.constant 37 : index
    %308 = memref.load %arg0[%c1_308, %c37_309] : memref<2x40xi32, #tpu.memory_space<smem>>
    %309 = arith.index_cast %308 : i32 to index
    %c0_310 = arith.constant 0 : index
    %310 = vector.load %arg1[%309, %c0_310] : memref<512x64xf32, #tpu.memory_space<vmem>>, vector<1x64xf32>
    %c77 = arith.constant 77 : index
    %c0_311 = arith.constant 0 : index
    %311 = vector.load %arg12[%c77, %c0_311] : memref<80x64xf32, #tpu.memory_space<vmem>>, vector<1x64xf32>
    tpu.vector_store %arg12[%c77, %c0_311], %310 {strides = array<i32>} : memref<80x64xf32, #tpu.memory_space<vmem>>, vector<1x64xf32>,
    %c1_312 = arith.constant 1 : index
    %c38_313 = arith.constant 38 : index
    %312 = memref.load %arg0[%c1_312, %c38_313] : memref<2x40xi32, #tpu.memory_space<smem>>
    %313 = arith.index_cast %312 : i32 to index
    %c0_314 = arith.constant 0 : index
    %314 = vector.load %arg1[%313, %c0_314] : memref<512x64xf32, #tpu.memory_space<vmem>>, vector<1x64xf32>
    %c78 = arith.constant 78 : index
    %c0_315 = arith.constant 0 : index
    %315 = vector.load %arg12[%c78, %c0_315] : memref<80x64xf32, #tpu.memory_space<vmem>>, vector<1x64xf32>
    tpu.vector_store %arg12[%c78, %c0_315], %314 {strides = array<i32>} : memref<80x64xf32, #tpu.memory_space<vmem>>, vector<1x64xf32>,
    %c1_316 = arith.constant 1 : index
    %c39_317 = arith.constant 39 : index
    %316 = memref.load %arg0[%c1_316, %c39_317] : memref<2x40xi32, #tpu.memory_space<smem>>
    %317 = arith.index_cast %316 : i32 to index
    %c0_318 = arith.constant 0 : index
    %318 = vector.load %arg1[%317, %c0_318] : memref<512x64xf32, #tpu.memory_space<vmem>>, vector<1x64xf32>
    %c79 = arith.constant 79 : index
    %c0_319 = arith.constant 0 : index
    %319 = vector.load %arg12[%c79, %c0_319] : memref<80x64xf32, #tpu.memory_space<vmem>>, vector<1x64xf32>
    tpu.vector_store %arg12[%c79, %c0_319], %318 {strides = array<i32>} : memref<80x64xf32, #tpu.memory_space<vmem>>, vector<1x64xf32>,
    %c0_320 = arith.constant 0 : index
    %c0_321 = arith.constant 0 : index
    %320 = vector.load %arg12[%c0_320, %c0_321] : memref<80x64xf32, #tpu.memory_space<vmem>>, vector<80x64xf32>
    %cst = arith.constant 0.000000e+00 : f32
    %321 = vector.broadcast %cst : f32 to vector<80x64xf32>
    %322 = arith.maximumf %320, %321 : vector<80x64xf32>
    %323 = arith.truncf %322 : vector<80x64xf32> to vector<80x64xbf16>
    %c0_322 = arith.constant 0 : index
    %c0_323 = arith.constant 0 : index
    %c0_324 = arith.constant 0 : index
    %324 = vector.load %arg2[%c0_322, %c0_323, %c0_324] : memref<5x36x80xbf16, #tpu.memory_space<vmem>>, vector<1x36x80xbf16>
    %325 = vector.shape_cast %324 : vector<1x36x80xbf16> to vector<36x80xbf16>
    %cst_325 = arith.constant dense<0.000000e+00> : vector<36x64xf32>
    %326 = tpu.matmul %325, %323, %cst_325 {dimension_numbers = #tpu.dot_dimension_numbers<[1], [0], [0], [1], [0, 0, 1, 1], [], []>} : vector<36x80xbf16>, vector<80x64xbf16>, vector<36x64xf32> -> vector<36x64xf32>
    %327 = arith.truncf %326 : vector<36x64xf32> to vector<36x64xbf16>
    %c1_326 = arith.constant 1 : index
    %c0_327 = arith.constant 0 : index
    %c0_328 = arith.constant 0 : index
    %328 = vector.load %arg2[%c1_326, %c0_327, %c0_328] : memref<5x36x80xbf16, #tpu.memory_space<vmem>>, vector<1x36x80xbf16>
    %329 = vector.shape_cast %328 : vector<1x36x80xbf16> to vector<36x80xbf16>
    %cst_329 = arith.constant dense<0.000000e+00> : vector<36x64xf32>
    %330 = tpu.matmul %329, %323, %cst_329 {dimension_numbers = #tpu.dot_dimension_numbers<[1], [0], [0], [1], [0, 0, 1, 1], [], []>} : vector<36x80xbf16>, vector<80x64xbf16>, vector<36x64xf32> -> vector<36x64xf32>
    %331 = arith.truncf %330 : vector<36x64xf32> to vector<36x64xbf16>
    %c2_330 = arith.constant 2 : index
    %c0_331 = arith.constant 0 : index
    %c0_332 = arith.constant 0 : index
    %332 = vector.load %arg2[%c2_330, %c0_331, %c0_332] : memref<5x36x80xbf16, #tpu.memory_space<vmem>>, vector<1x36x80xbf16>
    %333 = vector.shape_cast %332 : vector<1x36x80xbf16> to vector<36x80xbf16>
    %cst_333 = arith.constant dense<0.000000e+00> : vector<36x64xf32>
    %334 = tpu.matmul %333, %323, %cst_333 {dimension_numbers = #tpu.dot_dimension_numbers<[1], [0], [0], [1], [0, 0, 1, 1], [], []>} : vector<36x80xbf16>, vector<80x64xbf16>, vector<36x64xf32> -> vector<36x64xf32>
    %335 = arith.truncf %334 : vector<36x64xf32> to vector<36x64xbf16>
    %c3_334 = arith.constant 3 : index
    %c0_335 = arith.constant 0 : index
    %c0_336 = arith.constant 0 : index
    %336 = vector.load %arg2[%c3_334, %c0_335, %c0_336] : memref<5x36x80xbf16, #tpu.memory_space<vmem>>, vector<1x36x80xbf16>
    %337 = vector.shape_cast %336 : vector<1x36x80xbf16> to vector<36x80xbf16>
    %cst_337 = arith.constant dense<0.000000e+00> : vector<36x64xf32>
    %338 = tpu.matmul %337, %323, %cst_337 {dimension_numbers = #tpu.dot_dimension_numbers<[1], [0], [0], [1], [0, 0, 1, 1], [], []>} : vector<36x80xbf16>, vector<80x64xbf16>, vector<36x64xf32> -> vector<36x64xf32>
    %339 = arith.truncf %338 : vector<36x64xf32> to vector<36x64xbf16>
    %c4_338 = arith.constant 4 : index
    %c0_339 = arith.constant 0 : index
    %c0_340 = arith.constant 0 : index
    %340 = vector.load %arg2[%c4_338, %c0_339, %c0_340] : memref<5x36x80xbf16, #tpu.memory_space<vmem>>, vector<1x36x80xbf16>
    %341 = vector.shape_cast %340 : vector<1x36x80xbf16> to vector<36x80xbf16>
    %cst_341 = arith.constant dense<0.000000e+00> : vector<36x64xf32>
    %342 = tpu.matmul %341, %323, %cst_341 {dimension_numbers = #tpu.dot_dimension_numbers<[1], [0], [0], [1], [0, 0, 1, 1], [], []>} : vector<36x80xbf16>, vector<80x64xbf16>, vector<36x64xf32> -> vector<36x64xf32>
    %343 = arith.truncf %342 : vector<36x64xf32> to vector<36x64xbf16>
    %344 = tpu.concatenate %327, %331, %335, %339, %343 in 1 : vector<36x64xbf16>, vector<36x64xbf16>, vector<36x64xbf16>, vector<36x64xbf16>, vector<36x64xbf16> -> vector<36x320xbf16>
    %c0_342 = arith.constant 0 : index
    %c0_343 = arith.constant 0 : index
    %345 = vector.load %arg3[%c0_342, %c0_343] : memref<320x64xbf16, #tpu.memory_space<vmem>>, vector<320x64xbf16>
    %cst_344 = arith.constant dense<0.000000e+00> : vector<36x64xf32>
    %346 = tpu.matmul %344, %345, %cst_344 {dimension_numbers = #tpu.dot_dimension_numbers<[1], [0], [0], [1], [0, 0, 1, 1], [], []>} : vector<36x320xbf16>, vector<320x64xbf16>, vector<36x64xf32> -> vector<36x64xf32>
    %c0_345 = arith.constant 0 : index
    %c0_346 = arith.constant 0 : index
    %347 = vector.load %arg4[%c0_345, %c0_346] : memref<1x64xf32, #tpu.memory_space<vmem>>, vector<1x64xf32>
    %348 = vector.broadcast %347 : vector<1x64xf32> to vector<36x64xf32>
    %349 = arith.addf %346, %348 : vector<36x64xf32>
    %cst_347 = arith.constant 0.000000e+00 : f32
    %350 = vector.broadcast %cst_347 : f32 to vector<36x64xf32>
    %351 = arith.maximumf %349, %350 : vector<36x64xf32>
    %352 = arith.truncf %351 : vector<36x64xf32> to vector<36x64xbf16>
    %c0_348 = arith.constant 0 : index
    %c0_349 = arith.constant 0 : index
    %c0_350 = arith.constant 0 : index
    %353 = vector.load %arg5[%c0_348, %c0_349, %c0_350] : memref<5x14x36xbf16, #tpu.memory_space<vmem>>, vector<1x14x36xbf16>
    %354 = vector.shape_cast %353 : vector<1x14x36xbf16> to vector<14x36xbf16>
    %cst_351 = arith.constant dense<0.000000e+00> : vector<14x64xf32>
    %355 = tpu.matmul %354, %352, %cst_351 {dimension_numbers = #tpu.dot_dimension_numbers<[1], [0], [0], [1], [0, 0, 1, 1], [], []>} : vector<14x36xbf16>, vector<36x64xbf16>, vector<14x64xf32> -> vector<14x64xf32>
    %356 = arith.truncf %355 : vector<14x64xf32> to vector<14x64xbf16>
    %c1_352 = arith.constant 1 : index
    %c0_353 = arith.constant 0 : index
    %c0_354 = arith.constant 0 : index
    %357 = vector.load %arg5[%c1_352, %c0_353, %c0_354] : memref<5x14x36xbf16, #tpu.memory_space<vmem>>, vector<1x14x36xbf16>
    %358 = vector.shape_cast %357 : vector<1x14x36xbf16> to vector<14x36xbf16>
    %cst_355 = arith.constant dense<0.000000e+00> : vector<14x64xf32>
    %359 = tpu.matmul %358, %352, %cst_355 {dimension_numbers = #tpu.dot_dimension_numbers<[1], [0], [0], [1], [0, 0, 1, 1], [], []>} : vector<14x36xbf16>, vector<36x64xbf16>, vector<14x64xf32> -> vector<14x64xf32>
    %360 = arith.truncf %359 : vector<14x64xf32> to vector<14x64xbf16>
    %c2_356 = arith.constant 2 : index
    %c0_357 = arith.constant 0 : index
    %c0_358 = arith.constant 0 : index
    %361 = vector.load %arg5[%c2_356, %c0_357, %c0_358] : memref<5x14x36xbf16, #tpu.memory_space<vmem>>, vector<1x14x36xbf16>
    %362 = vector.shape_cast %361 : vector<1x14x36xbf16> to vector<14x36xbf16>
    %cst_359 = arith.constant dense<0.000000e+00> : vector<14x64xf32>
    %363 = tpu.matmul %362, %352, %cst_359 {dimension_numbers = #tpu.dot_dimension_numbers<[1], [0], [0], [1], [0, 0, 1, 1], [], []>} : vector<14x36xbf16>, vector<36x64xbf16>, vector<14x64xf32> -> vector<14x64xf32>
    %364 = arith.truncf %363 : vector<14x64xf32> to vector<14x64xbf16>
    %c3_360 = arith.constant 3 : index
    %c0_361 = arith.constant 0 : index
    %c0_362 = arith.constant 0 : index
    %365 = vector.load %arg5[%c3_360, %c0_361, %c0_362] : memref<5x14x36xbf16, #tpu.memory_space<vmem>>, vector<1x14x36xbf16>
    %366 = vector.shape_cast %365 : vector<1x14x36xbf16> to vector<14x36xbf16>
    %cst_363 = arith.constant dense<0.000000e+00> : vector<14x64xf32>
    %367 = tpu.matmul %366, %352, %cst_363 {dimension_numbers = #tpu.dot_dimension_numbers<[1], [0], [0], [1], [0, 0, 1, 1], [], []>} : vector<14x36xbf16>, vector<36x64xbf16>, vector<14x64xf32> -> vector<14x64xf32>
    %368 = arith.truncf %367 : vector<14x64xf32> to vector<14x64xbf16>
    %c4_364 = arith.constant 4 : index
    %c0_365 = arith.constant 0 : index
    %c0_366 = arith.constant 0 : index
    %369 = vector.load %arg5[%c4_364, %c0_365, %c0_366] : memref<5x14x36xbf16, #tpu.memory_space<vmem>>, vector<1x14x36xbf16>
    %370 = vector.shape_cast %369 : vector<1x14x36xbf16> to vector<14x36xbf16>
    %cst_367 = arith.constant dense<0.000000e+00> : vector<14x64xf32>
    %371 = tpu.matmul %370, %352, %cst_367 {dimension_numbers = #tpu.dot_dimension_numbers<[1], [0], [0], [1], [0, 0, 1, 1], [], []>} : vector<14x36xbf16>, vector<36x64xbf16>, vector<14x64xf32> -> vector<14x64xf32>
    %372 = arith.truncf %371 : vector<14x64xf32> to vector<14x64xbf16>
    %373 = tpu.concatenate %356, %360, %364, %368, %372 in 1 : vector<14x64xbf16>, vector<14x64xbf16>, vector<14x64xbf16>, vector<14x64xbf16>, vector<14x64xbf16> -> vector<14x320xbf16>
    %c0_368 = arith.constant 0 : index
    %c0_369 = arith.constant 0 : index
    %374 = vector.load %arg6[%c0_368, %c0_369] : memref<320x128xbf16, #tpu.memory_space<vmem>>, vector<320x128xbf16>
    %cst_370 = arith.constant dense<0.000000e+00> : vector<14x128xf32>
    %375 = tpu.matmul %373, %374, %cst_370 {dimension_numbers = #tpu.dot_dimension_numbers<[1], [0], [0], [1], [0, 0, 1, 1], [], []>} : vector<14x320xbf16>, vector<320x128xbf16>, vector<14x128xf32> -> vector<14x128xf32>
    %c0_371 = arith.constant 0 : index
    %c0_372 = arith.constant 0 : index
    %376 = vector.load %arg7[%c0_371, %c0_372] : memref<1x128xf32, #tpu.memory_space<vmem>>, vector<1x128xf32>
    %377 = vector.broadcast %376 : vector<1x128xf32> to vector<14x128xf32>
    %378 = arith.addf %375, %377 : vector<14x128xf32>
    %cst_373 = arith.constant 0.000000e+00 : f32
    %379 = vector.broadcast %cst_373 : f32 to vector<14x128xf32>
    %380 = arith.maximumf %378, %379 : vector<14x128xf32>
    %381 = arith.truncf %380 : vector<14x128xf32> to vector<14x128xbf16>
    %c0_374 = arith.constant 0 : index
    %c0_375 = arith.constant 0 : index
    %c0_376 = arith.constant 0 : index
    %382 = vector.load %arg8[%c0_374, %c0_375, %c0_376] : memref<3x6x14xbf16, #tpu.memory_space<vmem>>, vector<1x6x14xbf16>
    %383 = vector.shape_cast %382 : vector<1x6x14xbf16> to vector<6x14xbf16>
    %cst_377 = arith.constant dense<0.000000e+00> : vector<6x128xf32>
    %384 = tpu.matmul %383, %381, %cst_377 {dimension_numbers = #tpu.dot_dimension_numbers<[1], [0], [0], [1], [0, 0, 1, 1], [], []>} : vector<6x14xbf16>, vector<14x128xbf16>, vector<6x128xf32> -> vector<6x128xf32>
    %385 = arith.truncf %384 : vector<6x128xf32> to vector<6x128xbf16>
    %c1_378 = arith.constant 1 : index
    %c0_379 = arith.constant 0 : index
    %c0_380 = arith.constant 0 : index
    %386 = vector.load %arg8[%c1_378, %c0_379, %c0_380] : memref<3x6x14xbf16, #tpu.memory_space<vmem>>, vector<1x6x14xbf16>
    %387 = vector.shape_cast %386 : vector<1x6x14xbf16> to vector<6x14xbf16>
    %cst_381 = arith.constant dense<0.000000e+00> : vector<6x128xf32>
    %388 = tpu.matmul %387, %381, %cst_381 {dimension_numbers = #tpu.dot_dimension_numbers<[1], [0], [0], [1], [0, 0, 1, 1], [], []>} : vector<6x14xbf16>, vector<14x128xbf16>, vector<6x128xf32> -> vector<6x128xf32>
    %389 = arith.truncf %388 : vector<6x128xf32> to vector<6x128xbf16>
    %c2_382 = arith.constant 2 : index
    %c0_383 = arith.constant 0 : index
    %c0_384 = arith.constant 0 : index
    %390 = vector.load %arg8[%c2_382, %c0_383, %c0_384] : memref<3x6x14xbf16, #tpu.memory_space<vmem>>, vector<1x6x14xbf16>
    %391 = vector.shape_cast %390 : vector<1x6x14xbf16> to vector<6x14xbf16>
    %cst_385 = arith.constant dense<0.000000e+00> : vector<6x128xf32>
    %392 = tpu.matmul %391, %381, %cst_385 {dimension_numbers = #tpu.dot_dimension_numbers<[1], [0], [0], [1], [0, 0, 1, 1], [], []>} : vector<6x14xbf16>, vector<14x128xbf16>, vector<6x128xf32> -> vector<6x128xf32>
    %393 = arith.truncf %392 : vector<6x128xf32> to vector<6x128xbf16>
    %394 = tpu.concatenate %385, %389, %393 in 1 : vector<6x128xbf16>, vector<6x128xbf16>, vector<6x128xbf16> -> vector<6x384xbf16>
    %c0_386 = arith.constant 0 : index
    %c0_387 = arith.constant 0 : index
    %395 = vector.load %arg9[%c0_386, %c0_387] : memref<384x128xbf16, #tpu.memory_space<vmem>>, vector<384x128xbf16>
    %cst_388 = arith.constant dense<0.000000e+00> : vector<6x128xf32>
    %396 = tpu.matmul %394, %395, %cst_388 {dimension_numbers = #tpu.dot_dimension_numbers<[1], [0], [0], [1], [0, 0, 1, 1], [], []>} : vector<6x384xbf16>, vector<384x128xbf16>, vector<6x128xf32> -> vector<6x128xf32>
    %c0_389 = arith.constant 0 : index
    %c0_390 = arith.constant 0 : index
    %397 = vector.load %arg10[%c0_389, %c0_390] : memref<1x128xf32, #tpu.memory_space<vmem>>, vector<1x128xf32>
    %398 = vector.broadcast %397 : vector<1x128xf32> to vector<6x128xf32>
    %399 = arith.addf %396, %398 : vector<6x128xf32>
    %c0_391 = arith.constant 0 : index
    %c0_392 = arith.constant 0 : index
    %400 = vector.load %arg11[%c0_391, %c0_392] : memref<6x128xf32, #tpu.memory_space<vmem>>, vector<6x128xf32>
    tpu.vector_store %arg11[%c0_391, %c0_392], %399 {strides = array<i32>} : memref<6x128xf32, #tpu.memory_space<vmem>>, vector<6x128xf32>,
    return
  }
}

</mosaic_0001>

<llo_original>
// kernel: tpu_custom_call.1
$region0: #{tpu_custom_call.1}
  #allocation0 [shape = 'u32[]', space=smem, size = 0x4, offset = 0x4, fixed_abs, tag = 'smem constant byte address 0x4 - core index']
  #allocation1 [shape = 'u32[144,128]{1,0:T(1,128)}', space=vmem, size = 0x12000, scoped, tag = 'internal scratch']
  #allocation2 [shape = 'f32[80,64]{1,0:T(8,128)}', space=vmem, size = 0xa000, scoped, tag = 'scratch operand']
  %s0 = inlined_call_operand.vmem [shape: s32[2,40], index: 0, kind: input, shape index: {}]
  %s1 = inlined_call_operand.vmem [shape: f32[512,64], index: 1, kind: input, shape index: {}]
  %s2 = inlined_call_operand.vmem [shape: bf16[5,36,80], index: 2, kind: input, shape index: {}]
  %s3 = inlined_call_operand.vmem [shape: bf16[320,64], index: 3, kind: input, shape index: {}]
  %s4 = inlined_call_operand.vmem [shape: f32[1,64], index: 4, kind: input, shape index: {}]
  %s5 = inlined_call_operand.vmem [shape: bf16[5,14,36], index: 5, kind: input, shape index: {}]
  %s6 = inlined_call_operand.vmem [shape: bf16[320,128], index: 6, kind: input, shape index: {}]
  %s7 = inlined_call_operand.vmem [shape: f32[1,128], index: 7, kind: input, shape index: {}]
  %s8 = inlined_call_operand.vmem [shape: bf16[3,6,14], index: 8, kind: input, shape index: {}]
  %s9 = inlined_call_operand.vmem [shape: bf16[384,128], index: 9, kind: input, shape index: {}]
  %s10 = inlined_call_operand.vmem [shape: f32[1,128], index: 10, kind: input, shape index: {}]
  %s11 = inlined_call_operand.hbm [shape: f32[6,128], index: 11, kind: output, shape index: {}]
  %s12 = sld [smem:[#allocation0]]
  $region58: #{tpu_custom_call.1} parent=0
    _
  %s14 = ssub.s32 1, %s12
  %s15 = scalar_select 0, %s14, %s12
  $region1: #{tpu_custom_call.1} parent=0
    #allocation3 [shape = 'u8[1024]{0}', space=smem, size = 0x400, scoped, tag = 'input window, operand 0, single buffered']
    #allocation4 [shape = 's32[1]{0}', space=sflag, size = 0x4, scoped, tag = 'scoped memory for tpu_custom_call.1']
    #allocation5 [shape = 's32[1]{0}', space=sflag, size = 0x4, scoped, tag = 'scoped memory for tpu_custom_call.1']
    #allocation6 [shape = 'u8[4096]{0}', space=vmem, size = 0x1000, scoped, tag = 'output window, operand 0, single buffered']
    %16 = vsyncpa [#allocation5], 0
    %17 = vsyncpa [#allocation4], 0
    // Predicated region
    $region2: #{tpu_custom_call.1} parent=1 // pred_check
      _
    $region3: #{tpu_custom_call.1} parent=1 // pred_check_branch
      %19 = sbr.rel (0) target = $region5
    $region4: #{tpu_custom_call.1} parent=1 // pred_region
      %s21 = ssub.s32 32, 32
      %22 = vsyncadd [#allocation5], %s21
      %s24 = sshll.u32 %s0, 4
      %s25 = int_to_ptr.vmem [resolvable:$true] %s24
      %27 = dma.vmem_to_smem %s25, 32, [#allocation3], [#allocation5]
    $region5: #{tpu_custom_call.1} parent=1 // pred_fallthru
      _
    // Predicated region
    $region6: #{tpu_custom_call.1} parent=1 // pred_check
      _
    $region7: #{tpu_custom_call.1} parent=1 // pred_check_branch
      %29 = sbr.rel (0) target = $region9
    $region8: #{tpu_custom_call.1} parent=1 // pred_region
      _
    $region9: #{tpu_custom_call.1} parent=1 // pred_fallthru
      _
    // Predicated region
    $region10: #{tpu_custom_call.1} parent=1 // pred_check
      _
    $region11: #{tpu_custom_call.1} parent=1 // pred_check_branch
      %31 = sbr.rel (0) target = $region13
    $region12: #{tpu_custom_call.1} parent=1 // pred_region
      _
    $region13: #{tpu_custom_call.1} parent=1 // pred_fallthru
      _
    // Predicated region
    $region14: #{tpu_custom_call.1} parent=1 // pred_check
      _
    $region15: #{tpu_custom_call.1} parent=1 // pred_check_branch
      %33 = sbr.rel (0) target = $region17
    $region16: #{tpu_custom_call.1} parent=1 // pred_region
      _
    $region17: #{tpu_custom_call.1} parent=1 // pred_fallthru
      _
    // Predicated region
    $region18: #{tpu_custom_call.1} parent=1 // pred_check
      _
    $region19: #{tpu_custom_call.1} parent=1 // pred_check_branch
      %35 = sbr.rel (0) target = $region21
    $region20: #{tpu_custom_call.1} parent=1 // pred_region
      _
    $region21: #{tpu_custom_call.1} parent=1 // pred_fallthru
      _
    // Predicated region
    $region22: #{tpu_custom_call.1} parent=1 // pred_check
      _
    $region23: #{tpu_custom_call.1} parent=1 // pred_check_branch
      %37 = sbr.rel (0) target = $region25
    $region24: #{tpu_custom_call.1} parent=1 // pred_region
      _
    $region25: #{tpu_custom_call.1} parent=1 // pred_fallthru
      _
    // Predicated region
    $region26: #{tpu_custom_call.1} parent=1 // pred_check
      _
    $region27: #{tpu_custom_call.1} parent=1 // pred_check_branch
      %39 = sbr.rel (0) target = $region29
    $region28: #{tpu_custom_call.1} parent=1 // pred_region
      _
    $region29: #{tpu_custom_call.1} parent=1 // pred_fallthru
      _
    // Predicated region
    $region30: #{tpu_custom_call.1} parent=1 // pred_check
      _
    $region31: #{tpu_custom_call.1} parent=1 // pred_check_branch
      %41 = sbr.rel (0) target = $region33
    $region32: #{tpu_custom_call.1} parent=1 // pred_region
      _
    $region33: #{tpu_custom_call.1} parent=1 // pred_fallthru
      _
    // Predicated region
    $region34: #{tpu_custom_call.1} parent=1 // pred_check
      _
    $region35: #{tpu_custom_call.1} parent=1 // pred_check_branch
      %43 = sbr.rel (0) target = $region37
    $region36: #{tpu_custom_call.1} parent=1 // pred_region
      _
    $region37: #{tpu_custom_call.1} parent=1 // pred_fallthru
      _
    // Predicated region
    $region38: #{tpu_custom_call.1} parent=1 // pred_check
      _
    $region39: #{tpu_custom_call.1} parent=1 // pred_check_branch
      %45 = sbr.rel (0) target = $region41
    $region40: #{tpu_custom_call.1} parent=1 // pred_region
      _
    $region41: #{tpu_custom_call.1} parent=1 // pred_fallthru
      _
    // Predicated region
    $region42: #{tpu_custom_call.1} parent=1 // pred_check
      _
    $region43: #{tpu_custom_call.1} parent=1 // pred_check_branch
      %47 = sbr.rel (0) target = $region45
    $region44: #{tpu_custom_call.1} parent=1 // pred_region
      _
    $region45: #{tpu_custom_call.1} parent=1 // pred_fallthru
      _
    // Predicated region
    $region46: #{tpu_custom_call.1} parent=1 // pred_check
      _
    $region47: #{tpu_custom_call.1} parent=1 // pred_check_branch
      %49 = sbr.rel (0) target = $region49
    $region48: #{tpu_custom_call.1} parent=1 // pred_region
      %50 = dma.done [#allocation5], 32
    $region49: #{tpu_custom_call.1} parent=1 // pred_fallthru
      _
    %51 = sfence
    %s53 = sld [smem:[#allocation3]]
    %s54 = scalar_lea.vmem %s1, %s53
    %v55 = vld [vmem:[%s54] sm:$0x1]
    %vm56 = vcmask 516096
    %57 = vst.msk [vmem:[#allocation2] sm:$0x1] %vm56, %v55
    %s58 = sld [smem:[#allocation3 + $0x1]]
    %s59 = scalar_lea.vmem %s1, %s58
    %v60 = vld [vmem:[%s59] sm:$0x1]
    %61 = vst.msk [vmem:[#allocation2 + $0x1] sm:$0x1] %vm56, %v60
    %s62 = sld [smem:[#allocation3 + $0x2]]
    %s63 = scalar_lea.vmem %s1, %s62
    %v64 = vld [vmem:[%s63] sm:$0x1]
    %65 = vst.msk [vmem:[#allocation2 + $0x2] sm:$0x1] %vm56, %v64
    %s66 = sld [smem:[#allocation3 + $0x3]]
    %s67 = scalar_lea.vmem %s1, %s66
    %v68 = vld [vmem:[%s67] sm:$0x1]
    %69 = vst.msk [vmem:[#allocation2 + $0x3] sm:$0x1] %vm56, %v68
    %s70 = sld [smem:[#allocation3 + $0x4]]
    %s71 = scalar_lea.vmem %s1, %s70
    %v72 = vld [vmem:[%s71] sm:$0x1]
    %73 = vst.msk [vmem:[#allocation2 + $0x4] sm:$0x1] %vm56, %v72
    %s74 = sld [smem:[#allocation3 + $0x5]]
    %s75 = scalar_lea.vmem %s1, %s74
    %v76 = vld [vmem:[%s75] sm:$0x1]
    %77 = vst.msk [vmem:[#allocation2 + $0x5] sm:$0x1] %vm56, %v76
    %s78 = sld [smem:[#allocation3 + $0x6]]
    %s79 = scalar_lea.vmem %s1, %s78
    %v80 = vld [vmem:[%s79] sm:$0x1]
    %81 = vst.msk [vmem:[#allocation2 + $0x6] sm:$0x1] %vm56, %v80
    %s82 = sld [smem:[#allocation3 + $0x7]]
    %s83 = scalar_lea.vmem %s1, %s82
    %v84 = vld [vmem:[%s83] sm:$0x1]
    %85 = vst.msk [vmem:[#allocation2 + $0x7] sm:$0x1] %vm56, %v84
    %s86 = sld [smem:[#allocation3 + $0x8]]
    %s87 = scalar_lea.vmem %s1, %s86
    %v88 = vld [vmem:[%s87] sm:$0x1]
    %89 = vst.msk [vmem:[#allocation2 + $0x8] sm:$0x1] %vm56, %v88
    %s90 = sld [smem:[#allocation3 + $0x9]]
    %s91 = scalar_lea.vmem %s1, %s90
    %v92 = vld [vmem:[%s91] sm:$0x1]
    %93 = vst.msk [vmem:[#allocation2 + $0x9] sm:$0x1] %vm56, %v92
    %s94 = sld [smem:[#allocation3 + $0xa]]
    %s95 = scalar_lea.vmem %s1, %s94
    %v96 = vld [vmem:[%s95] sm:$0x1]
    %97 = vst.msk [vmem:[#allocation2 + $0xa] sm:$0x1] %vm56, %v96
    %s98 = sld [smem:[#allocation3 + $0xb]]
    %s99 = scalar_lea.vmem %s1, %s98
    %v100 = vld [vmem:[%s99] sm:$0x1]
    %101 = vst.msk [vmem:[#allocation2 + $0xb] sm:$0x1] %vm56, %v100
    %s102 = sld [smem:[#allocation3 + $0xc]]
    %s103 = scalar_lea.vmem %s1, %s102
    %v104 = vld [vmem:[%s103] sm:$0x1]
    %105 = vst.msk [vmem:[#allocation2 + $0xc] sm:$0x1] %vm56, %v104
    %s106 = sld [smem:[#allocation3 + $0xd]]
    %s107 = scalar_lea.vmem %s1, %s106
    %v108 = vld [vmem:[%s107] sm:$0x1]
    %109 = vst.msk [vmem:[#allocation2 + $0xd] sm:$0x1] %vm56, %v108
    %s110 = sld [smem:[#allocation3 + $0xe]]
    %s111 = scalar_lea.vmem %s1, %s110
    %v112 = vld [vmem:[%s111] sm:$0x1]
    %113 = vst.msk [vmem:[#allocation2 + $0xe] sm:$0x1] %vm56, %v112
    %s114 = sld [smem:[#allocation3 + $0xf]]
    %s115 = scalar_lea.vmem %s1, %s114
    %v116 = vld [vmem:[%s115] sm:$0x1]
    %117 = vst.msk [vmem:[#allocation2 + $0xf] sm:$0x1] %vm56, %v116
    %s118 = sld [smem:[#allocation3 + $0x10]]
    %s119 = scalar_lea.vmem %s1, %s118
    %v120 = vld [vmem:[%s119] sm:$0x1]
    %121 = vst.msk [vmem:[#allocation2 + $0x10] sm:$0x1] %vm56, %v120
    %s122 = sld [smem:[#allocation3 + $0x11]]
    %s123 = scalar_lea.vmem %s1, %s122
    %v124 = vld [vmem:[%s123] sm:$0x1]
    %125 = vst.msk [vmem:[#allocation2 + $0x11] sm:$0x1] %vm56, %v124
    %s126 = sld [smem:[#allocation3 + $0x12]]
    %s127 = scalar_lea.vmem %s1, %s126
    %v128 = vld [vmem:[%s127] sm:$0x1]
    %129 = vst.msk [vmem:[#allocation2 + $0x12] sm:$0x1] %vm56, %v128
    %s130 = sld [smem:[#allocation3 + $0x13]]
    %s131 = scalar_lea.vmem %s1, %s130
    %v132 = vld [vmem:[%s131] sm:$0x1]
    %133 = vst.msk [vmem:[#allocation2 + $0x13] sm:$0x1] %vm56, %v132
    %s134 = sld [smem:[#allocation3 + $0x14]]
    %s135 = scalar_lea.vmem %s1, %s134
    %v136 = vld [vmem:[%s135] sm:$0x1]
    %137 = vst.msk [vmem:[#allocation2 + $0x14] sm:$0x1] %vm56, %v136
    %s138 = sld [smem:[#allocation3 + $0x15]]
    %s139 = scalar_lea.vmem %s1, %s138
    %v140 = vld [vmem:[%s139] sm:$0x1]
    %141 = vst.msk [vmem:[#allocation2 + $0x15] sm:$0x1] %vm56, %v140
    %s142 = sld [smem:[#allocation3 + $0x16]]
    %s143 = scalar_lea.vmem %s1, %s142
    %v144 = vld [vmem:[%s143] sm:$0x1]
    %145 = vst.msk [vmem:[#allocation2 + $0x16] sm:$0x1] %vm56, %v144
    %s146 = sld [smem:[#allocation3 + $0x17]]
    %s147 = scalar_lea.vmem %s1, %s146
    %v148 = vld [vmem:[%s147] sm:$0x1]
    %149 = vst.msk [vmem:[#allocation2 + $0x17] sm:$0x1] %vm56, %v148
    %s150 = sld [smem:[#allocation3 + $0x18]]
    %s151 = scalar_lea.vmem %s1, %s150
    %v152 = vld [vmem:[%s151] sm:$0x1]
    %153 = vst.msk [vmem:[#allocation2 + $0x18] sm:$0x1] %vm56, %v152
    %s154 = sld [smem:[#allocation3 + $0x19]]
    %s155 = scalar_lea.vmem %s1, %s154
    %v156 = vld [vmem:[%s155] sm:$0x1]
    %157 = vst.msk [vmem:[#allocation2 + $0x19] sm:$0x1] %vm56, %v156
    %s158 = sld [smem:[#allocation3 + $0x1a]]
    %s159 = scalar_lea.vmem %s1, %s158
    %v160 = vld [vmem:[%s159] sm:$0x1]
    %161 = vst.msk [vmem:[#allocation2 + $0x1a] sm:$0x1] %vm56, %v160
    %s162 = sld [smem:[#allocation3 + $0x1b]]
    %s163 = scalar_lea.vmem %s1, %s162
    %v164 = vld [vmem:[%s163] sm:$0x1]
    %165 = vst.msk [vmem:[#allocation2 + $0x1b] sm:$0x1] %vm56, %v164
    %s166 = sld [smem:[#allocation3 + $0x1c]]
    %s167 = scalar_lea.vmem %s1, %s166
    %v168 = vld [vmem:[%s167] sm:$0x1]
    %169 = vst.msk [vmem:[#allocation2 + $0x1c] sm:$0x1] %vm56, %v168
    %s170 = sld [smem:[#allocation3 + $0x1d]]
    %s171 = scalar_lea.vmem %s1, %s170
    %v172 = vld [vmem:[%s171] sm:$0x1]
    %173 = vst.msk [vmem:[#allocation2 + $0x1d] sm:$0x1] %vm56, %v172
    %s174 = sld [smem:[#allocation3 + $0x1e]]
    %s175 = scalar_lea.vmem %s1, %s174
    %v176 = vld [vmem:[%s175] sm:$0x1]
    %177 = vst.msk [vmem:[#allocation2 + $0x1e] sm:$0x1] %vm56, %v176
    %s178 = sld [smem:[#allocation3 + $0x1f]]
    %s179 = scalar_lea.vmem %s1, %s178
    %v180 = vld [vmem:[%s179] sm:$0x1]
    %181 = vst.msk [vmem:[#allocation2 + $0x1f] sm:$0x1] %vm56, %v180
    %s182 = sld [smem:[#allocation3 + $0x20]]
    %s183 = scalar_lea.vmem %s1, %s182
    %v184 = vld [vmem:[%s183] sm:$0x1]
    %185 = vst.msk [vmem:[#allocation2 + $0x20] sm:$0x1] %vm56, %v184
    %s186 = sld [smem:[#allocation3 + $0x21]]
    %s187 = scalar_lea.vmem %s1, %s186
    %v188 = vld [vmem:[%s187] sm:$0x1]
    %189 = vst.msk [vmem:[#allocation2 + $0x21] sm:$0x1] %vm56, %v188
    %s190 = sld [smem:[#allocation3 + $0x22]]
    %s191 = scalar_lea.vmem %s1, %s190
    %v192 = vld [vmem:[%s191] sm:$0x1]
    %193 = vst.msk [vmem:[#allocation2 + $0x22] sm:$0x1] %vm56, %v192
    %s194 = sld [smem:[#allocation3 + $0x23]]
    %s195 = scalar_lea.vmem %s1, %s194
    %v196 = vld [vmem:[%s195] sm:$0x1]
    %197 = vst.msk [vmem:[#allocation2 + $0x23] sm:$0x1] %vm56, %v196
    %s198 = sld [smem:[#allocation3 + $0x24]]
    %s199 = scalar_lea.vmem %s1, %s198
    %v200 = vld [vmem:[%s199] sm:$0x1]
    %201 = vst.msk [vmem:[#allocation2 + $0x24] sm:$0x1] %vm56, %v200
    %s202 = sld [smem:[#allocation3 + $0x25]]
    %s203 = scalar_lea.vmem %s1, %s202
    %v204 = vld [vmem:[%s203] sm:$0x1]
    %205 = vst.msk [vmem:[#allocation2 + $0x25] sm:$0x1] %vm56, %v204
    %s206 = sld [smem:[#allocation3 + $0x26]]
    %s207 = scalar_lea.vmem %s1, %s206
    %v208 = vld [vmem:[%s207] sm:$0x1]
    %209 = vst.msk [vmem:[#allocation2 + $0x26] sm:$0x1] %vm56, %v208
    %s210 = sld [smem:[#allocation3 + $0x27]]
    %s211 = scalar_lea.vmem %s1, %s210
    %v212 = vld [vmem:[%s211] sm:$0x1]
    %213 = vst.msk [vmem:[#allocation2 + $0x27] sm:$0x1] %vm56, %v212
    %s214 = sld [smem:[#allocation3 + $0x80]]
    %s215 = scalar_lea.vmem %s1, %s214
    %v216 = vld [vmem:[%s215] sm:$0x1]
    %217 = vst.msk [vmem:[#allocation2 + $0x28] sm:$0x1] %vm56, %v216
    %s218 = sld [smem:[#allocation3 + $0x81]]
    %s219 = scalar_lea.vmem %s1, %s218
    %v220 = vld [vmem:[%s219] sm:$0x1]
    %221 = vst.msk [vmem:[#allocation2 + $0x29] sm:$0x1] %vm56, %v220
    %s222 = sld [smem:[#allocation3 + $0x82]]
    %s223 = scalar_lea.vmem %s1, %s222
    %v224 = vld [vmem:[%s223] sm:$0x1]
    %225 = vst.msk [vmem:[#allocation2 + $0x2a] sm:$0x1] %vm56, %v224
    %s226 = sld [smem:[#allocation3 + $0x83]]
    %s227 = scalar_lea.vmem %s1, %s226
    %v228 = vld [vmem:[%s227] sm:$0x1]
    %229 = vst.msk [vmem:[#allocation2 + $0x2b] sm:$0x1] %vm56, %v228
    %s230 = sld [smem:[#allocation3 + $0x84]]
    %s231 = scalar_lea.vmem %s1, %s230
    %v232 = vld [vmem:[%s231] sm:$0x1]
    %233 = vst.msk [vmem:[#allocation2 + $0x2c] sm:$0x1] %vm56, %v232
    %s234 = sld [smem:[#allocation3 + $0x85]]
    %s235 = scalar_lea.vmem %s1, %s234
    %v236 = vld [vmem:[%s235] sm:$0x1]
    %237 = vst.msk [vmem:[#allocation2 + $0x2d] sm:$0x1] %vm56, %v236
    %s238 = sld [smem:[#allocation3 + $0x86]]
    %s239 = scalar_lea.vmem %s1, %s238
    %v240 = vld [vmem:[%s239] sm:$0x1]
    %241 = vst.msk [vmem:[#allocation2 + $0x2e] sm:$0x1] %vm56, %v240
    %s242 = sld [smem:[#allocation3 + $0x87]]
    %s243 = scalar_lea.vmem %s1, %s242
    %v244 = vld [vmem:[%s243] sm:$0x1]
    %245 = vst.msk [vmem:[#allocation2 + $0x2f] sm:$0x1] %vm56, %v244
    %s246 = sld [smem:[#allocation3 + $0x88]]
    %s247 = scalar_lea.vmem %s1, %s246
    %v248 = vld [vmem:[%s247] sm:$0x1]
    %249 = vst.msk [vmem:[#allocation2 + $0x30] sm:$0x1] %vm56, %v248
    %s250 = sld [smem:[#allocation3 + $0x89]]
    %s251 = scalar_lea.vmem %s1, %s250
    %v252 = vld [vmem:[%s251] sm:$0x1]
    %253 = vst.msk [vmem:[#allocation2 + $0x31] sm:$0x1] %vm56, %v252
    %s254 = sld [smem:[#allocation3 + $0x8a]]
    %s255 = scalar_lea.vmem %s1, %s254
    %v256 = vld [vmem:[%s255] sm:$0x1]
    %257 = vst.msk [vmem:[#allocation2 + $0x32] sm:$0x1] %vm56, %v256
    %s258 = sld [smem:[#allocation3 + $0x8b]]
    %s259 = scalar_lea.vmem %s1, %s258
    %v260 = vld [vmem:[%s259] sm:$0x1]
    %261 = vst.msk [vmem:[#allocation2 + $0x33] sm:$0x1] %vm56, %v260
    %s262 = sld [smem:[#allocation3 + $0x8c]]
    %s263 = scalar_lea.vmem %s1, %s262
    %v264 = vld [vmem:[%s263] sm:$0x1]
    %265 = vst.msk [vmem:[#allocation2 + $0x34] sm:$0x1] %vm56, %v264
    %s266 = sld [smem:[#allocation3 + $0x8d]]
    %s267 = scalar_lea.vmem %s1, %s266
    %v268 = vld [vmem:[%s267] sm:$0x1]
    %269 = vst.msk [vmem:[#allocation2 + $0x35] sm:$0x1] %vm56, %v268
    %s270 = sld [smem:[#allocation3 + $0x8e]]
    %s271 = scalar_lea.vmem %s1, %s270
    %v272 = vld [vmem:[%s271] sm:$0x1]
    %273 = vst.msk [vmem:[#allocation2 + $0x36] sm:$0x1] %vm56, %v272
    %s274 = sld [smem:[#allocation3 + $0x8f]]
    %s275 = scalar_lea.vmem %s1, %s274
    %v276 = vld [vmem:[%s275] sm:$0x1]
    %277 = vst.msk [vmem:[#allocation2 + $0x37] sm:$0x1] %vm56, %v276
    %s278 = sld [smem:[#allocation3 + $0x90]]
    %s279 = scalar_lea.vmem %s1, %s278
    %v280 = vld [vmem:[%s279] sm:$0x1]
    %281 = vst.msk [vmem:[#allocation2 + $0x38] sm:$0x1] %vm56, %v280
    %s282 = sld [smem:[#allocation3 + $0x91]]
    %s283 = scalar_lea.vmem %s1, %s282
    %v284 = vld [vmem:[%s283] sm:$0x1]
    %285 = vst.msk [vmem:[#allocation2 + $0x39] sm:$0x1] %vm56, %v284
    %s286 = sld [smem:[#allocation3 + $0x92]]
    %s287 = scalar_lea.vmem %s1, %s286
    %v288 = vld [vmem:[%s287] sm:$0x1]
    %289 = vst.msk [vmem:[#allocation2 + $0x3a] sm:$0x1] %vm56, %v288
    %s290 = sld [smem:[#allocation3 + $0x93]]
    %s291 = scalar_lea.vmem %s1, %s290
    %v292 = vld [vmem:[%s291] sm:$0x1]
    %293 = vst.msk [vmem:[#allocation2 + $0x3b] sm:$0x1] %vm56, %v292
    %s294 = sld [smem:[#allocation3 + $0x94]]
    %s295 = scalar_lea.vmem %s1, %s294
    %v296 = vld [vmem:[%s295] sm:$0x1]
    %297 = vst.msk [vmem:[#allocation2 + $0x3c] sm:$0x1] %vm56, %v296
    %s298 = sld [smem:[#allocation3 + $0x95]]
    %s299 = scalar_lea.vmem %s1, %s298
    %v300 = vld [vmem:[%s299] sm:$0x1]
    %301 = vst.msk [vmem:[#allocation2 + $0x3d] sm:$0x1] %vm56, %v300
    %s302 = sld [smem:[#allocation3 + $0x96]]
    %s303 = scalar_lea.vmem %s1, %s302
    %v304 = vld [vmem:[%s303] sm:$0x1]
    %305 = vst.msk [vmem:[#allocation2 + $0x3e] sm:$0x1] %vm56, %v304
    %s306 = sld [smem:[#allocation3 + $0x97]]
    %s307 = scalar_lea.vmem %s1, %s306
    %v308 = vld [vmem:[%s307] sm:$0x1]
    %309 = vst.msk [vmem:[#allocation2 + $0x3f] sm:$0x1] %vm56, %v308
    %s310 = sld [smem:[#allocation3 + $0x98]]
    %s311 = scalar_lea.vmem %s1, %s310
    %v312 = vld [vmem:[%s311] sm:$0x1]
    %313 = vst.msk [vmem:[#allocation2 + $0x40] sm:$0x1] %vm56, %v312
    %s314 = sld [smem:[#allocation3 + $0x99]]
    %s315 = scalar_lea.vmem %s1, %s314
    %v316 = vld [vmem:[%s315] sm:$0x1]
    %317 = vst.msk [vmem:[#allocation2 + $0x41] sm:$0x1] %vm56, %v316
    %s318 = sld [smem:[#allocation3 + $0x9a]]
    %s319 = scalar_lea.vmem %s1, %s318
    %v320 = vld [vmem:[%s319] sm:$0x1]
    %321 = vst.msk [vmem:[#allocation2 + $0x42] sm:$0x1] %vm56, %v320
    %s322 = sld [smem:[#allocation3 + $0x9b]]
    %s323 = scalar_lea.vmem %s1, %s322
    %v324 = vld [vmem:[%s323] sm:$0x1]
    %325 = vst.msk [vmem:[#allocation2 + $0x43] sm:$0x1] %vm56, %v324
    %s326 = sld [smem:[#allocation3 + $0x9c]]
    %s327 = scalar_lea.vmem %s1, %s326
    %v328 = vld [vmem:[%s327] sm:$0x1]
    %329 = vst.msk [vmem:[#allocation2 + $0x44] sm:$0x1] %vm56, %v328
    %s330 = sld [smem:[#allocation3 + $0x9d]]
    %s331 = scalar_lea.vmem %s1, %s330
    %v332 = vld [vmem:[%s331] sm:$0x1]
    %333 = vst.msk [vmem:[#allocation2 + $0x45] sm:$0x1] %vm56, %v332
    %s334 = sld [smem:[#allocation3 + $0x9e]]
    %s335 = scalar_lea.vmem %s1, %s334
    %v336 = vld [vmem:[%s335] sm:$0x1]
    %337 = vst.msk [vmem:[#allocation2 + $0x46] sm:$0x1] %vm56, %v336
    %s338 = sld [smem:[#allocation3 + $0x9f]]
    %s339 = scalar_lea.vmem %s1, %s338
    %v340 = vld [vmem:[%s339] sm:$0x1]
    %341 = vst.msk [vmem:[#allocation2 + $0x47] sm:$0x1] %vm56, %v340
    %s342 = sld [smem:[#allocation3 + $0xa0]]
    %s343 = scalar_lea.vmem %s1, %s342
    %v344 = vld [vmem:[%s343] sm:$0x1]
    %345 = vst.msk [vmem:[#allocation2 + $0x48] sm:$0x1] %vm56, %v344
    %s346 = sld [smem:[#allocation3 + $0xa1]]
    %s347 = scalar_lea.vmem %s1, %s346
    %v348 = vld [vmem:[%s347] sm:$0x1]
    %349 = vst.msk [vmem:[#allocation2 + $0x49] sm:$0x1] %vm56, %v348
    %s350 = sld [smem:[#allocation3 + $0xa2]]
    %s351 = scalar_lea.vmem %s1, %s350
    %v352 = vld [vmem:[%s351] sm:$0x1]
    %353 = vst.msk [vmem:[#allocation2 + $0x4a] sm:$0x1] %vm56, %v352
    %s354 = sld [smem:[#allocation3 + $0xa3]]
    %s355 = scalar_lea.vmem %s1, %s354
    %v356 = vld [vmem:[%s355] sm:$0x1]
    %357 = vst.msk [vmem:[#allocation2 + $0x4b] sm:$0x1] %vm56, %v356
    %s358 = sld [smem:[#allocation3 + $0xa4]]
    %s359 = scalar_lea.vmem %s1, %s358
    %v360 = vld [vmem:[%s359] sm:$0x1]
    %361 = vst.msk [vmem:[#allocation2 + $0x4c] sm:$0x1] %vm56, %v360
    %s362 = sld [smem:[#allocation3 + $0xa5]]
    %s363 = scalar_lea.vmem %s1, %s362
    %v364 = vld [vmem:[%s363] sm:$0x1]
    %365 = vst.msk [vmem:[#allocation2 + $0x4d] sm:$0x1] %vm56, %v364
    %s366 = sld [smem:[#allocation3 + $0xa6]]
    %s367 = scalar_lea.vmem %s1, %s366
    %v368 = vld [vmem:[%s367] sm:$0x1]
    %369 = vst.msk [vmem:[#allocation2 + $0x4e] sm:$0x1] %vm56, %v368
    %s370 = sld [smem:[#allocation3 + $0xa7]]
    %s371 = scalar_lea.vmem %s1, %s370
    %v372 = vld [vmem:[%s371] sm:$0x1]
    %373 = vst.msk [vmem:[#allocation2 + $0x4f] sm:$0x1] %vm56, %v372
    %v374 = vld [vmem:[#allocation2] sm:$0xff]
    %v375 = vld [vmem:[#allocation2 + $0x8] sm:$0xff]
    %v376 = vld [vmem:[#allocation2 + $0x10] sm:$0xff]
    %v377 = vld [vmem:[#allocation2 + $0x18] sm:$0xff]
    %v378 = vld [vmem:[#allocation2 + $0x20] sm:$0xff]
    %v379 = vld [vmem:[#allocation2 + $0x28] sm:$0xff]
    %v380 = vld [vmem:[#allocation2 + $0x30] sm:$0xff]
    %v381 = vld [vmem:[#allocation2 + $0x38] sm:$0xff]
    %v382 = vld [vmem:[#allocation2 + $0x40] sm:$0xff]
    %v383 = vld [vmem:[#allocation2 + $0x48] sm:$0xff]
    %v384 = vmax.f32 %v374, 0.0
    %v385 = vmax.f32 %v375, 0.0
    %v386 = vmax.f32 %v376, 0.0
    %v387 = vmax.f32 %v377, 0.0
    %v388 = vmax.f32 %v378, 0.0
    %v389 = vmax.f32 %v379, 0.0
    %v390 = vmax.f32 %v380, 0.0
    %v391 = vmax.f32 %v381, 0.0
    %v392 = vmax.f32 %v382, 0.0
    %v393 = vmax.f32 %v383, 0.0
    %v394 = vpack.c.bf16 %v385, %v384
    %v395 = vpack.c.bf16 %v387, %v386
    %v396 = vpack.c.bf16 %v389, %v388
    %v397 = vpack.c.bf16 %v391, %v390
    %v398 = vpack.c.bf16 %v393, %v392
    %v399 = vld [vmem:[%s2] sm:$0xf]
    %v400 = vld [vmem:[%s2 + $0x4] sm:$0xf]
    %v401 = vld [vmem:[%s2 + $0x8] sm:$0xf]
    %v402 = vld [vmem:[%s2 + $0xc] sm:$0xf]
    %v403 = vld [vmem:[%s2 + $0x10] sm:$0x3]
    %v409 = vunpack.c.l.b16 %v399
    %v410 = vunpack.c.l.b16 %v400
    %v411 = vunpack.c.l.b16 %v401
    %v412 = vunpack.c.l.b16 %v402
    %v413 = vunpack.c.l.b16 %v403
    %v414 = vpack.c.b16 %v410, %v409
    %v415 = vpack.c.b16 %v412, %v411
    %v416 = vpack.c.b16 %v413, %v413
    %vm417 = vcmask 654336
    %v419 = vsel %vm417, %v414, 0
    %v422 = vsel %vm417, %v415, 0
    %v425 = vsel %vm417, %v416, 0
    %427 = vmatprep.subr.bf16.mxu0 0
    %428 = vmatpush1.bf16.msra.mxu0 %v394
    %429 = vmatprep.subr.bf16.mxu0 0
    %430 = vmatpush1.bf16.msra.mxu0 %v395
    %431 = vmatprep.subr.bf16.mxu0 0
    %432 = vmatpush1.bf16.msra.mxu0 %v396
    %433 = vmatprep.subr.bf16.mxu0 0
    %434 = vmatpush1.bf16.msra.mxu0 %v397
    %435 = vmatprep.subr.bf16.mxu0 0
    %436 = vmatpush1.bf16.msra.mxu0 %v398
    %437 = vmatprep.subr.bf16.mxu0 0
    %438 = vmatpush1.bf16.msra.mxu0 0
    %439 = vmatprep.subr.bf16.mxu0 0
    %440 = vmatpush1.bf16.msra.mxu0 0
    %441 = vmatprep.subr.bf16.mxu0 0
    %442 = vmatpush1.bf16.msra.mxu0 0
    %443 = vmatprep.subr.bf16.mxu0 0
    %444 = vmatpush1.bf16.msra.mxu0 0
    %445 = vmatprep.subr.bf16.mxu0 0
    %446 = vmatpush1.bf16.msra.mxu0 0
    %447 = vmatprep.subr.bf16.mxu0 0
    %448 = vmatpush1.bf16.msra.mxu0 0
    %449 = vmatprep.subr.bf16.mxu0 0
    %450 = vmatpush1.bf16.msra.mxu0 0
    %451 = vmatprep.subr.bf16.mxu0 0
    %452 = vmatpush1.bf16.msra.mxu0 0
    %453 = vmatprep.subr.bf16.mxu0 0
    %454 = vmatpush1.bf16.msra.mxu0 0
    %455 = vmatprep.subr.bf16.mxu0 0
    %456 = vmatpush1.bf16.msra.mxu0 0
    %457 = vmatprep.subr.bf16.mxu0 0
    %458 = vmatpush1.bf16.msra.mxu0 0
    %459 = vmatprep.mubr.bf16.mxu0 0
    %460 = vmatmul.mubr.bf16.gmra.mrb[0].mxu0 %v419
    %v461 = vpop.f32.mrb[0].mxu0
    %v462 = vadd.f32 0.0, %v461
    %v463 = vpop.f32.mrb[0].mxu0
    %v464 = vpop.f32.mrb[0].mxu0
    %v465 = vadd.f32 0.0, %v464
    %v466 = vpop.f32.mrb[0].mxu0
    %467 = vmatprep.mubr.bf16.mxu0 0
    %468 = vmatmul.mubr.bf16.gmra.mrb[0].mxu0 %v422
    %v469 = vpop.f32.mrb[0].mxu0
    %v470 = vadd.f32 0.0, %v469
    %v471 = vpop.f32.mrb[0].mxu0
    %v472 = vpop.f32.mrb[0].mxu0
    %v473 = vadd.f32 0.0, %v472
    %v474 = vpop.f32.mrb[0].mxu0
    %475 = vmatprep.mubr.bf16.mxu0 0
    %476 = vmatmul.mubr.bf16.gmra.mrb[0].mxu0 %v425
    %v477 = vpop.f32.mrb[0].mxu0
    %v478 = vadd.f32 0.0, %v477
    %v479 = vpop.f32.mrb[0].mxu0
    %v480 = vpop.f32.mrb[0].mxu0
    %v481 = vpop.f32.mrb[0].mxu0
    %482 = vdwg.mxu0
    %v483 = vpack.c.bf16 %v465, %v462
    %v484 = vpack.c.bf16 %v473, %v470
    %v485 = vpack.c.bf16 %v478, %v478
    %s486 = scalar_lea.vmem %s2, 20
    %v487 = vld [vmem:[%s486] sm:$0xf]
    %v488 = vld [vmem:[%s486 + $0x4] sm:$0xf]
    %v489 = vld [vmem:[%s486 + $0x8] sm:$0xf]
    %v490 = vld [vmem:[%s486 + $0xc] sm:$0xf]
    %v491 = vld [vmem:[%s486 + $0x10] sm:$0x3]
    %v497 = vunpack.c.l.b16 %v487
    %v498 = vunpack.c.l.b16 %v488
    %v499 = vunpack.c.l.b16 %v489
    %v500 = vunpack.c.l.b16 %v490
    %v501 = vunpack.c.l.b16 %v491
    %v502 = vpack.c.b16 %v498, %v497
    %v503 = vpack.c.b16 %v500, %v499
    %v504 = vpack.c.b16 %v501, %v501
    %v506 = vsel %vm417, %v502, 0
    %v509 = vsel %vm417, %v503, 0
    %v512 = vsel %vm417, %v504, 0
    %514 = vmatprep.subr.bf16.mxu0 0
    %515 = vmatpush1.bf16.msra.mxu0 %v394
    %516 = vmatprep.subr.bf16.mxu0 0
    %517 = vmatpush1.bf16.msra.mxu0 %v395
    %518 = vmatprep.subr.bf16.mxu0 0
    %519 = vmatpush1.bf16.msra.mxu0 %v396
    %520 = vmatprep.subr.bf16.mxu0 0
    %521 = vmatpush1.bf16.msra.mxu0 %v397
    %522 = vmatprep.subr.bf16.mxu0 0
    %523 = vmatpush1.bf16.msra.mxu0 %v398
    %524 = vmatprep.subr.bf16.mxu0 0
    %525 = vmatpush1.bf16.msra.mxu0 0
    %526 = vmatprep.subr.bf16.mxu0 0
    %527 = vmatpush1.bf16.msra.mxu0 0
    %528 = vmatprep.subr.bf16.mxu0 0
    %529 = vmatpush1.bf16.msra.mxu0 0
    %530 = vmatprep.subr.bf16.mxu0 0
    %531 = vmatpush1.bf16.msra.mxu0 0
    %532 = vmatprep.subr.bf16.mxu0 0
    %533 = vmatpush1.bf16.msra.mxu0 0
    %534 = vmatprep.subr.bf16.mxu0 0
    %535 = vmatpush1.bf16.msra.mxu0 0
    %536 = vmatprep.subr.bf16.mxu0 0
    %537 = vmatpush1.bf16.msra.mxu0 0
    %538 = vmatprep.subr.bf16.mxu0 0
    %539 = vmatpush1.bf16.msra.mxu0 0
    %540 = vmatprep.subr.bf16.mxu0 0
    %541 = vmatpush1.bf16.msra.mxu0 0
    %542 = vmatprep.subr.bf16.mxu0 0
    %543 = vmatpush1.bf16.msra.mxu0 0
    %544 = vmatprep.subr.bf16.mxu0 0
    %545 = vmatpush1.bf16.msra.mxu0 0
    %546 = vmatprep.mubr.bf16.mxu0 0
    %547 = vmatmul.mubr.bf16.gmra.mrb[0].mxu0 %v506
    %v548 = vpop.f32.mrb[0].mxu0
    %v549 = vadd.f32 0.0, %v548
    %v550 = vpop.f32.mrb[0].mxu0
    %v551 = vpop.f32.mrb[0].mxu0
    %v552 = vadd.f32 0.0, %v551
    %v553 = vpop.f32.mrb[0].mxu0
    %554 = vmatprep.mubr.bf16.mxu0 0
    %555 = vmatmul.mubr.bf16.gmra.mrb[0].mxu0 %v509
    %v556 = vpop.f32.mrb[0].mxu0
    %v557 = vadd.f32 0.0, %v556
    %v558 = vpop.f32.mrb[0].mxu0
    %v559 = vpop.f32.mrb[0].mxu0
    %v560 = vadd.f32 0.0, %v559
    %v561 = vpop.f32.mrb[0].mxu0
    %562 = vmatprep.mubr.bf16.mxu0 0
    %563 = vmatmul.mubr.bf16.gmra.mrb[0].mxu0 %v512
    %v564 = vpop.f32.mrb[0].mxu0
    %v565 = vadd.f32 0.0, %v564
    %v566 = vpop.f32.mrb[0].mxu0
    %v567 = vpop.f32.mrb[0].mxu0
    %v568 = vpop.f32.mrb[0].mxu0
    %569 = vdwg.mxu0
    %v570 = vpack.c.bf16 %v552, %v549
    %v571 = vpack.c.bf16 %v560, %v557
    %v572 = vpack.c.bf16 %v565, %v565
    %s573 = scalar_lea.vmem %s2, 40
    %v574 = vld [vmem:[%s573] sm:$0xf]
    %v575 = vld [vmem:[%s573 + $0x4] sm:$0xf]
    %v576 = vld [vmem:[%s573 + $0x8] sm:$0xf]
    %v577 = vld [vmem:[%s573 + $0xc] sm:$0xf]
    %v578 = vld [vmem:[%s573 + $0x10] sm:$0x3]
    %v584 = vunpack.c.l.b16 %v574
    %v585 = vunpack.c.l.b16 %v575
    %v586 = vunpack.c.l.b16 %v576
    %v587 = vunpack.c.l.b16 %v577
    %v588 = vunpack.c.l.b16 %v578
    %v589 = vpack.c.b16 %v585, %v584
    %v590 = vpack.c.b16 %v587, %v586
    %v591 = vpack.c.b16 %v588, %v588
    %v593 = vsel %vm417, %v589, 0
    %v596 = vsel %vm417, %v590, 0
    %v599 = vsel %vm417, %v591, 0
    %601 = vmatprep.subr.bf16.mxu0 0
    %602 = vmatpush1.bf16.msra.mxu0 %v394
    %603 = vmatprep.subr.bf16.mxu0 0
    %604 = vmatpush1.bf16.msra.mxu0 %v395
    %605 = vmatprep.subr.bf16.mxu0 0
    %606 = vmatpush1.bf16.msra.mxu0 %v396
    %607 = vmatprep.subr.bf16.mxu0 0
    %608 = vmatpush1.bf16.msra.mxu0 %v397
    %609 = vmatprep.subr.bf16.mxu0 0
    %610 = vmatpush1.bf16.msra.mxu0 %v398
    %611 = vmatprep.subr.bf16.mxu0 0
    %612 = vmatpush1.bf16.msra.mxu0 0
    %613 = vmatprep.subr.bf16.mxu0 0
    %614 = vmatpush1.bf16.msra.mxu0 0
    %615 = vmatprep.subr.bf16.mxu0 0
    %616 = vmatpush1.bf16.msra.mxu0 0
    %617 = vmatprep.subr.bf16.mxu0 0
    %618 = vmatpush1.bf16.msra.mxu0 0
    %619 = vmatprep.subr.bf16.mxu0 0
    %620 = vmatpush1.bf16.msra.mxu0 0
    %621 = vmatprep.subr.bf16.mxu0 0
    %622 = vmatpush1.bf16.msra.mxu0 0
    %623 = vmatprep.subr.bf16.mxu0 0
    %624 = vmatpush1.bf16.msra.mxu0 0
    %625 = vmatprep.subr.bf16.mxu0 0
    %626 = vmatpush1.bf16.msra.mxu0 0
    %627 = vmatprep.subr.bf16.mxu0 0
    %628 = vmatpush1.bf16.msra.mxu0 0
    %629 = vmatprep.subr.bf16.mxu0 0
    %630 = vmatpush1.bf16.msra.mxu0 0
    %631 = vmatprep.subr.bf16.mxu0 0
    %632 = vmatpush1.bf16.msra.mxu0 0
    %633 = vmatprep.mubr.bf16.mxu0 0
    %634 = vmatmul.mubr.bf16.gmra.mrb[0].mxu0 %v593
    %v635 = vpop.f32.mrb[0].mxu0
    %v636 = vadd.f32 0.0, %v635
    %v637 = vpop.f32.mrb[0].mxu0
    %v638 = vpop.f32.mrb[0].mxu0
    %v639 = vadd.f32 0.0, %v638
    %v640 = vpop.f32.mrb[0].mxu0
    %641 = vmatprep.mubr.bf16.mxu0 0
    %642 = vmatmul.mubr.bf16.gmra.mrb[0].mxu0 %v596
    %v643 = vpop.f32.mrb[0].mxu0
    %v644 = vadd.f32 0.0, %v643
    %v645 = vpop.f32.mrb[0].mxu0
    %v646 = vpop.f32.mrb[0].mxu0
    %v647 = vadd.f32 0.0, %v646
    %v648 = vpop.f32.mrb[0].mxu0
    %649 = vmatprep.mubr.bf16.mxu0 0
    %650 = vmatmul.mubr.bf16.gmra.mrb[0].mxu0 %v599
    %v651 = vpop.f32.mrb[0].mxu0
    %v652 = vadd.f32 0.0, %v651
    %v653 = vpop.f32.mrb[0].mxu0
    %v654 = vpop.f32.mrb[0].mxu0
    %v655 = vpop.f32.mrb[0].mxu0
    %656 = vdwg.mxu0
    %v657 = vpack.c.bf16 %v639, %v636
    %v658 = vpack.c.bf16 %v647, %v644
    %v659 = vpack.c.bf16 %v652, %v652
    %s660 = scalar_lea.vmem %s2, 60
    %v661 = vld [vmem:[%s660] sm:$0xf]
    %v662 = vld [vmem:[%s660 + $0x4] sm:$0xf]
    %v663 = vld [vmem:[%s660 + $0x8] sm:$0xf]
    %v664 = vld [vmem:[%s660 + $0xc] sm:$0xf]
    %v665 = vld [vmem:[%s660 + $0x10] sm:$0x3]
    %v671 = vunpack.c.l.b16 %v661
    %v672 = vunpack.c.l.b16 %v662
    %v673 = vunpack.c.l.b16 %v663
    %v674 = vunpack.c.l.b16 %v664
    %v675 = vunpack.c.l.b16 %v665
    %v676 = vpack.c.b16 %v672, %v671
    %v677 = vpack.c.b16 %v674, %v673
    %v678 = vpack.c.b16 %v675, %v675
    %v680 = vsel %vm417, %v676, 0
    %v683 = vsel %vm417, %v677, 0
    %v686 = vsel %vm417, %v678, 0
    %688 = vmatprep.subr.bf16.mxu0 0
    %689 = vmatpush1.bf16.msra.mxu0 %v394
    %690 = vmatprep.subr.bf16.mxu0 0
    %691 = vmatpush1.bf16.msra.mxu0 %v395
    %692 = vmatprep.subr.bf16.mxu0 0
    %693 = vmatpush1.bf16.msra.mxu0 %v396
    %694 = vmatprep.subr.bf16.mxu0 0
    %695 = vmatpush1.bf16.msra.mxu0 %v397
    %696 = vmatprep.subr.bf16.mxu0 0
    %697 = vmatpush1.bf16.msra.mxu0 %v398
    %698 = vmatprep.subr.bf16.mxu0 0
    %699 = vmatpush1.bf16.msra.mxu0 0
    %700 = vmatprep.subr.bf16.mxu0 0
    %701 = vmatpush1.bf16.msra.mxu0 0
    %702 = vmatprep.subr.bf16.mxu0 0
    %703 = vmatpush1.bf16.msra.mxu0 0
    %704 = vmatprep.subr.bf16.mxu0 0
    %705 = vmatpush1.bf16.msra.mxu0 0
    %706 = vmatprep.subr.bf16.mxu0 0
    %707 = vmatpush1.bf16.msra.mxu0 0
    %708 = vmatprep.subr.bf16.mxu0 0
    %709 = vmatpush1.bf16.msra.mxu0 0
    %710 = vmatprep.subr.bf16.mxu0 0
    %711 = vmatpush1.bf16.msra.mxu0 0
    %712 = vmatprep.subr.bf16.mxu0 0
    %713 = vmatpush1.bf16.msra.mxu0 0
    %714 = vmatprep.subr.bf16.mxu0 0
    %715 = vmatpush1.bf16.msra.mxu0 0
    %716 = vmatprep.subr.bf16.mxu0 0
    %717 = vmatpush1.bf16.msra.mxu0 0
    %718 = vmatprep.subr.bf16.mxu0 0
    %719 = vmatpush1.bf16.msra.mxu0 0
    %720 = vmatprep.mubr.bf16.mxu0 0
    %721 = vmatmul.mubr.bf16.gmra.mrb[0].mxu0 %v680
    %v722 = vpop.f32.mrb[0].mxu0
    %v723 = vadd.f32 0.0, %v722
    %v724 = vpop.f32.mrb[0].mxu0
    %v725 = vpop.f32.mrb[0].mxu0
    %v726 = vadd.f32 0.0, %v725
    %v727 = vpop.f32.mrb[0].mxu0
    %728 = vmatprep.mubr.bf16.mxu0 0
    %729 = vmatmul.mubr.bf16.gmra.mrb[0].mxu0 %v683
    %v730 = vpop.f32.mrb[0].mxu0
    %v731 = vadd.f32 0.0, %v730
    %v732 = vpop.f32.mrb[0].mxu0
    %v733 = vpop.f32.mrb[0].mxu0
    %v734 = vadd.f32 0.0, %v733
    %v735 = vpop.f32.mrb[0].mxu0
    %736 = vmatprep.mubr.bf16.mxu0 0
    %737 = vmatmul.mubr.bf16.gmra.mrb[0].mxu0 %v686
    %v738 = vpop.f32.mrb[0].mxu0
    %v739 = vadd.f32 0.0, %v738
    %v740 = vpop.f32.mrb[0].mxu0
    %v741 = vpop.f32.mrb[0].mxu0
    %v742 = vpop.f32.mrb[0].mxu0
    %743 = vdwg.mxu0
    %v744 = vpack.c.bf16 %v726, %v723
    %v745 = vpack.c.bf16 %v734, %v731
    %v746 = vpack.c.bf16 %v739, %v739
    %s747 = scalar_lea.vmem %s2, 80
    %v748 = vld [vmem:[%s747] sm:$0xf]
    %v749 = vld [vmem:[%s747 + $0x4] sm:$0xf]
    %v750 = vld [vmem:[%s747 + $0x8] sm:$0xf]
    %v751 = vld [vmem:[%s747 + $0xc] sm:$0xf]
    %v752 = vld [vmem:[%s747 + $0x10] sm:$0x3]
    %v758 = vunpack.c.l.b16 %v748
    %v759 = vunpack.c.l.b16 %v749
    %v760 = vunpack.c.l.b16 %v750
    %v761 = vunpack.c.l.b16 %v751
    %v762 = vunpack.c.l.b16 %v752
    %v763 = vpack.c.b16 %v759, %v758
    %v764 = vpack.c.b16 %v761, %v760
    %v765 = vpack.c.b16 %v762, %v762
    %v767 = vsel %vm417, %v763, 0
    %v770 = vsel %vm417, %v764, 0
    %v773 = vsel %vm417, %v765, 0
    %775 = vmatprep.subr.bf16.mxu0 0
    %776 = vmatpush1.bf16.msra.mxu0 %v394
    %777 = vmatprep.subr.bf16.mxu0 0
    %778 = vmatpush1.bf16.msra.mxu0 %v395
    %779 = vmatprep.subr.bf16.mxu0 0
    %780 = vmatpush1.bf16.msra.mxu0 %v396
    %781 = vmatprep.subr.bf16.mxu0 0
    %782 = vmatpush1.bf16.msra.mxu0 %v397
    %783 = vmatprep.subr.bf16.mxu0 0
    %784 = vmatpush1.bf16.msra.mxu0 %v398
    %785 = vmatprep.subr.bf16.mxu0 0
    %786 = vmatpush1.bf16.msra.mxu0 0
    %787 = vmatprep.subr.bf16.mxu0 0
    %788 = vmatpush1.bf16.msra.mxu0 0
    %789 = vmatprep.subr.bf16.mxu0 0
    %790 = vmatpush1.bf16.msra.mxu0 0
    %791 = vmatprep.subr.bf16.mxu0 0
    %792 = vmatpush1.bf16.msra.mxu0 0
    %793 = vmatprep.subr.bf16.mxu0 0
    %794 = vmatpush1.bf16.msra.mxu0 0
    %795 = vmatprep.subr.bf16.mxu0 0
    %796 = vmatpush1.bf16.msra.mxu0 0
    %797 = vmatprep.subr.bf16.mxu0 0
    %798 = vmatpush1.bf16.msra.mxu0 0
    %799 = vmatprep.subr.bf16.mxu0 0
    %800 = vmatpush1.bf16.msra.mxu0 0
    %801 = vmatprep.subr.bf16.mxu0 0
    %802 = vmatpush1.bf16.msra.mxu0 0
    %803 = vmatprep.subr.bf16.mxu0 0
    %804 = vmatpush1.bf16.msra.mxu0 0
    %805 = vmatprep.subr.bf16.mxu0 0
    %806 = vmatpush1.bf16.msra.mxu0 0
    %807 = vmatprep.mubr.bf16.mxu0 0
    %808 = vmatmul.mubr.bf16.gmra.mrb[0].mxu0 %v767
    %v809 = vpop.f32.mrb[0].mxu0
    %v810 = vadd.f32 0.0, %v809
    %v811 = vpop.f32.mrb[0].mxu0
    %v812 = vpop.f32.mrb[0].mxu0
    %v813 = vadd.f32 0.0, %v812
    %v814 = vpop.f32.mrb[0].mxu0
    %815 = vmatprep.mubr.bf16.mxu0 0
    %816 = vmatmul.mubr.bf16.gmra.mrb[0].mxu0 %v770
    %v817 = vpop.f32.mrb[0].mxu0
    %v818 = vadd.f32 0.0, %v817
    %v819 = vpop.f32.mrb[0].mxu0
    %v820 = vpop.f32.mrb[0].mxu0
    %v821 = vadd.f32 0.0, %v820
    %v822 = vpop.f32.mrb[0].mxu0
    %823 = vmatprep.mubr.bf16.mxu0 0
    %824 = vmatmul.mubr.bf16.gmra.mrb[0].mxu0 %v773
    %v825 = vpop.f32.mrb[0].mxu0
    %v826 = vadd.f32 0.0, %v825
    %v827 = vpop.f32.mrb[0].mxu0
    %v828 = vpop.f32.mrb[0].mxu0
    %v829 = vpop.f32.mrb[0].mxu0
    %830 = vdwg.mxu0
    %v831 = vpack.c.bf16 %v813, %v810
    %v832 = vpack.c.bf16 %v821, %v818
    %v833 = vpack.c.bf16 %v826, %v826
    %837 = vrot.lane.b32.xlu0 %v570, 64
    %v838 = vpop.permute.xlu0 %837
    %839 = vrot.lane.b32.xlu0 %v571, 64
    %v840 = vpop.permute.xlu0 %839
    %841 = vrot.lane.b32.xlu0 %v572, 64
    %v842 = vpop.permute.xlu0 %841
    %846 = vrot.lane.b32.xlu0 %v744, 64
    %v847 = vpop.permute.xlu0 %846
    %848 = vrot.lane.b32.xlu0 %v745, 64
    %v849 = vpop.permute.xlu0 %848
    %850 = vrot.lane.b32.xlu0 %v746, 64
    %v851 = vpop.permute.xlu0 %850
    %vm852 = vcmask 523264
    %v855 = vsel %vm852, %v483, %v838
    %v859 = vsel %vm852, %v484, %v840
    %v863 = vsel %vm852, %v485, %v842
    %v867 = vsel %vm852, %v657, %v847
    %v871 = vsel %vm852, %v658, %v849
    %v875 = vsel %vm852, %v659, %v851
    %v877 = vld [vmem:[%s3] sm:$0xf]
    %v878 = vld [vmem:[%s3 + $0x4] sm:$0xf]
    %v879 = vld [vmem:[%s3 + $0x8] sm:$0xf]
    %v880 = vld [vmem:[%s3 + $0xc] sm:$0xf]
    %v881 = vld [vmem:[%s3 + $0x10] sm:$0xf]
    %v882 = vld [vmem:[%s3 + $0x14] sm:$0xf]
    %v883 = vld [vmem:[%s3 + $0x18] sm:$0xf]
    %v884 = vld [vmem:[%s3 + $0x1c] sm:$0xf]
    %v885 = vld [vmem:[%s3 + $0x20] sm:$0xf]
    %v886 = vld [vmem:[%s3 + $0x24] sm:$0xf]
    %v887 = vld [vmem:[%s3 + $0x28] sm:$0xf]
    %v888 = vld [vmem:[%s3 + $0x2c] sm:$0xf]
    %v889 = vld [vmem:[%s3 + $0x30] sm:$0xf]
    %v890 = vld [vmem:[%s3 + $0x34] sm:$0xf]
    %v891 = vld [vmem:[%s3 + $0x38] sm:$0xf]
    %v892 = vld [vmem:[%s3 + $0x3c] sm:$0xf]
    %v893 = vld [vmem:[%s3 + $0x40] sm:$0xf]
    %v894 = vld [vmem:[%s3 + $0x44] sm:$0xf]
    %v895 = vld [vmem:[%s3 + $0x48] sm:$0xf]
    %v896 = vld [vmem:[%s3 + $0x4c] sm:$0xf]
    %v897 = vld [vmem:[%s3 + $0x50] sm:$0xf]
    %v898 = vld [vmem:[%s3 + $0x54] sm:$0xf]
    %v899 = vld [vmem:[%s3 + $0x58] sm:$0xf]
    %v900 = vld [vmem:[%s3 + $0x5c] sm:$0xf]
    %v901 = vld [vmem:[%s3 + $0x60] sm:$0xf]
    %v902 = vld [vmem:[%s3 + $0x64] sm:$0xf]
    %v903 = vld [vmem:[%s3 + $0x68] sm:$0xf]
    %v904 = vld [vmem:[%s3 + $0x6c] sm:$0xf]
    %v905 = vld [vmem:[%s3 + $0x70] sm:$0xf]
    %v906 = vld [vmem:[%s3 + $0x74] sm:$0xf]
    %v907 = vld [vmem:[%s3 + $0x78] sm:$0xf]
    %v908 = vld [vmem:[%s3 + $0x7c] sm:$0xf]
    %v909 = vld [vmem:[%s3 + $0x80] sm:$0xf]
    %v910 = vld [vmem:[%s3 + $0x84] sm:$0xf]
    %v911 = vld [vmem:[%s3 + $0x88] sm:$0xf]
    %v912 = vld [vmem:[%s3 + $0x8c] sm:$0xf]
    %v913 = vld [vmem:[%s3 + $0x90] sm:$0xf]
    %v914 = vld [vmem:[%s3 + $0x94] sm:$0xf]
    %v915 = vld [vmem:[%s3 + $0x98] sm:$0xf]
    %v916 = vld [vmem:[%s3 + $0x9c] sm:$0xf]
    %v917 = vld [vmem:[%s4] sm:$0x1]
    %v919 = vlaneseq
    %v920 = vshrl.u32 %v919, 7
    %v921 = vsub.s32 0, %v920
    %v922 = vrot.slane %v917, %v921
    %v964 = vunpack.c.l.b16 %v877
    %v965 = vunpack.c.l.b16 %v878
    %v966 = vunpack.c.l.b16 %v879
    %v967 = vunpack.c.l.b16 %v880
    %v968 = vunpack.c.l.b16 %v881
    %v969 = vunpack.c.l.b16 %v882
    %v970 = vunpack.c.l.b16 %v883
    %v971 = vunpack.c.l.b16 %v884
    %v972 = vunpack.c.l.b16 %v885
    %v973 = vunpack.c.l.b16 %v886
    %v974 = vunpack.c.l.b16 %v887
    %v975 = vunpack.c.l.b16 %v888
    %v976 = vunpack.c.l.b16 %v889
    %v977 = vunpack.c.l.b16 %v890
    %v978 = vunpack.c.l.b16 %v891
    %v979 = vunpack.c.l.b16 %v892
    %v980 = vunpack.c.l.b16 %v893
    %v981 = vunpack.c.l.b16 %v894
    %v982 = vunpack.c.l.b16 %v895
    %v983 = vunpack.c.l.b16 %v896
    %v984 = vunpack.c.l.b16 %v897
    %v985 = vunpack.c.l.b16 %v898
    %v986 = vunpack.c.l.b16 %v899
    %v987 = vunpack.c.l.b16 %v900
    %v988 = vunpack.c.l.b16 %v901
    %v989 = vunpack.c.l.b16 %v902
    %v990 = vunpack.c.l.b16 %v903
    %v991 = vunpack.c.l.b16 %v904
    %v992 = vunpack.c.l.b16 %v905
    %v993 = vunpack.c.l.b16 %v906
    %v994 = vunpack.c.l.b16 %v907
    %v995 = vunpack.c.l.b16 %v908
    %v996 = vunpack.c.l.b16 %v909
    %v997 = vunpack.c.l.b16 %v910
    %v998 = vunpack.c.l.b16 %v911
    %v999 = vunpack.c.l.b16 %v912
    %v1000 = vunpack.c.l.b16 %v913
    %v1001 = vunpack.c.l.b16 %v914
    %v1002 = vunpack.c.l.b16 %v915
    %v1003 = vunpack.c.l.b16 %v916
    %v1004 = vpack.c.b16 %v965, %v964
    %v1005 = vpack.c.b16 %v967, %v966
    %v1006 = vpack.c.b16 %v969, %v968
    %v1007 = vpack.c.b16 %v971, %v970
    %v1008 = vpack.c.b16 %v973, %v972
    %v1009 = vpack.c.b16 %v975, %v974
    %v1010 = vpack.c.b16 %v977, %v976
    %v1011 = vpack.c.b16 %v979, %v978
    %v1012 = vpack.c.b16 %v981, %v980
    %v1013 = vpack.c.b16 %v983, %v982
    %v1014 = vpack.c.b16 %v985, %v984
    %v1015 = vpack.c.b16 %v987, %v986
    %v1016 = vpack.c.b16 %v989, %v988
    %v1017 = vpack.c.b16 %v991, %v990
    %v1018 = vpack.c.b16 %v993, %v992
    %v1019 = vpack.c.b16 %v995, %v994
    %v1020 = vpack.c.b16 %v997, %v996
    %v1021 = vpack.c.b16 %v999, %v998
    %v1022 = vpack.c.b16 %v1001, %v1000
    %v1023 = vpack.c.b16 %v1003, %v1002
    %v1045 = vsel %vm852, %v831, 0
    %v1048 = vsel %vm852, %v832, 0
    %v1051 = vsel %vm852, %v833, 0
    %1053 = vmatprep.subr.bf16.mxu0 0
    %1054 = vmatpush1.bf16.msra.mxu0 %v1004
    %1055 = vmatprep.subr.bf16.mxu0 0
    %1056 = vmatpush1.bf16.msra.mxu0 %v1005
    %1057 = vmatprep.subr.bf16.mxu0 0
    %1058 = vmatpush1.bf16.msra.mxu0 %v1006
    %1059 = vmatprep.subr.bf16.mxu0 0
    %1060 = vmatpush1.bf16.msra.mxu0 %v1007
    %1061 = vmatprep.subr.bf16.mxu0 0
    %1062 = vmatpush1.bf16.msra.mxu0 %v1008
    %1063 = vmatprep.subr.bf16.mxu0 0
    %1064 = vmatpush1.bf16.msra.mxu0 %v1009
    %1065 = vmatprep.subr.bf16.mxu0 0
    %1066 = vmatpush1.bf16.msra.mxu0 %v1010
    %1067 = vmatprep.subr.bf16.mxu0 0
    %1068 = vmatpush1.bf16.msra.mxu0 %v1011
    %1069 = vmatprep.subr.bf16.mxu0 0
    %1070 = vmatpush1.bf16.msra.mxu0 %v1012
    %1071 = vmatprep.subr.bf16.mxu0 0
    %1072 = vmatpush1.bf16.msra.mxu0 %v1013
    %1073 = vmatprep.subr.bf16.mxu0 0
    %1074 = vmatpush1.bf16.msra.mxu0 %v1014
    %1075 = vmatprep.subr.bf16.mxu0 0
    %1076 = vmatpush1.bf16.msra.mxu0 %v1015
    %1077 = vmatprep.subr.bf16.mxu0 0
    %1078 = vmatpush1.bf16.msra.mxu0 %v1016
    %1079 = vmatprep.subr.bf16.mxu0 0
    %1080 = vmatpush1.bf16.msra.mxu0 %v1017
    %1081 = vmatprep.subr.bf16.mxu0 0
    %1082 = vmatpush1.bf16.msra.mxu0 %v1018
    %1083 = vmatprep.subr.bf16.mxu0 0
    %1084 = vmatpush1.bf16.msra.mxu0 %v1019
    %1085 = vmatprep.mubr.bf16.mxu0 %v867
    %1086 = vmatmul.mubr.bf16.gmra.mrb[0].mxu0 %v855
    %v1087 = vpop.f32.mrb[0].mxu0
    %v1088 = vadd.f32 %v922, %v1087
    %v1089 = vpop.f32.mrb[0].mxu0
    %v1090 = vpop.f32.mrb[0].mxu0
    %v1091 = vadd.f32 %v922, %v1090
    %v1092 = vpop.f32.mrb[0].mxu0
    %1093 = vmatprep.mubr.bf16.mxu0 %v871
    %1094 = vmatmul.mubr.bf16.gmra.mrb[0].mxu0 %v859
    %v1095 = vpop.f32.mrb[0].mxu0
    %v1096 = vadd.f32 %v922, %v1095
    %v1097 = vpop.f32.mrb[0].mxu0
    %v1098 = vpop.f32.mrb[0].mxu0
    %v1099 = vadd.f32 %v922, %v1098
    %v1100 = vpop.f32.mrb[0].mxu0
    %1101 = vmatprep.mubr.bf16.mxu0 %v875
    %1102 = vmatmul.mubr.bf16.gmra.mrb[0].mxu0 %v863
    %v1103 = vpop.f32.mrb[0].mxu0
    %v1104 = vadd.f32 %v922, %v1103
    %v1105 = vpop.f32.mrb[0].mxu0
    %v1106 = vpop.f32.mrb[0].mxu0
    %v1107 = vpop.f32.mrb[0].mxu0
    %1108 = vdwg.mxu0
    %1109 = vmatprep.subr.bf16.mxu0 0
    %1110 = vmatpush1.bf16.msra.mxu0 %v1020
    %1111 = vmatprep.subr.bf16.mxu0 0
    %1112 = vmatpush1.bf16.msra.mxu0 %v1021
    %1113 = vmatprep.subr.bf16.mxu0 0
    %1114 = vmatpush1.bf16.msra.mxu0 %v1022
    %1115 = vmatprep.subr.bf16.mxu0 0
    %1116 = vmatpush1.bf16.msra.mxu0 %v1023
    %1117 = vmatprep.subr.bf16.mxu0 0
    %1118 = vmatpush1.bf16.msra.mxu0 0
    %1119 = vmatprep.subr.bf16.mxu0 0
    %1120 = vmatpush1.bf16.msra.mxu0 0
    %1121 = vmatprep.subr.bf16.mxu0 0
    %1122 = vmatpush1.bf16.msra.mxu0 0
    %1123 = vmatprep.subr.bf16.mxu0 0
    %1124 = vmatpush1.bf16.msra.mxu0 0
    %1125 = vmatprep.subr.bf16.mxu0 0
    %1126 = vmatpush1.bf16.msra.mxu0 0
    %1127 = vmatprep.subr.bf16.mxu0 0
    %1128 = vmatpush1.bf16.msra.mxu0 0
    %1129 = vmatprep.subr.bf16.mxu0 0
    %1130 = vmatpush1.bf16.msra.mxu0 0
    %1131 = vmatprep.subr.bf16.mxu0 0
    %1132 = vmatpush1.bf16.msra.mxu0 0
    %1133 = vmatprep.subr.bf16.mxu0 0
    %1134 = vmatpush1.bf16.msra.mxu0 0
    %1135 = vmatprep.subr.bf16.mxu0 0
    %1136 = vmatpush1.bf16.msra.mxu0 0
    %1137 = vmatprep.subr.bf16.mxu0 0
    %1138 = vmatpush1.bf16.msra.mxu0 0
    %1139 = vmatprep.subr.bf16.mxu0 0
    %1140 = vmatpush1.bf16.msra.mxu0 0
    %1141 = vmatprep.mubr.bf16.mxu0 0
    %1142 = vmatmul.mubr.bf16.gmra.mrb[0].mxu0 %v1045
    %v1143 = vpop.f32.mrb[0].mxu0
    %v1144 = vadd.f32 %v1088, %v1143
    %v1145 = vpop.f32.mrb[0].mxu0
    %v1146 = vpop.f32.mrb[0].mxu0
    %v1147 = vadd.f32 %v1091, %v1146
    %v1148 = vpop.f32.mrb[0].mxu0
    %1149 = vmatprep.mubr.bf16.mxu0 0
    %1150 = vmatmul.mubr.bf16.gmra.mrb[0].mxu0 %v1048
    %v1151 = vpop.f32.mrb[0].mxu0
    %v1152 = vadd.f32 %v1096, %v1151
    %v1153 = vpop.f32.mrb[0].mxu0
    %v1154 = vpop.f32.mrb[0].mxu0
    %v1155 = vadd.f32 %v1099, %v1154
    %v1156 = vpop.f32.mrb[0].mxu0
    %1157 = vmatprep.mubr.bf16.mxu0 0
    %1158 = vmatmul.mubr.bf16.gmra.mrb[0].mxu0 %v1051
    %v1159 = vpop.f32.mrb[0].mxu0
    %v1160 = vadd.f32 %v1104, %v1159
    %v1161 = vpop.f32.mrb[0].mxu0
    %v1162 = vpop.f32.mrb[0].mxu0
    %v1163 = vpop.f32.mrb[0].mxu0
    %1164 = vdwg.mxu0
    %v1165 = vmax.f32 %v1144, 0.0
    %v1166 = vmax.f32 %v1147, 0.0
    %v1167 = vmax.f32 %v1152, 0.0
    %v1168 = vmax.f32 %v1155, 0.0
    %v1169 = vmax.f32 %v1160, 0.0
    %v1170 = vpack.c.bf16 %v1166, %v1165
    %v1171 = vpack.c.bf16 %v1168, %v1167
    %v1172 = vpack.c.bf16 %v1169, %v1169
    %v1173 = vld [vmem:[%s5] sm:$0xf]
    %v1174 = vld [vmem:[%s5 + $0x4] sm:$0x7]
    %v1177 = vunpack.c.l.b16 %v1173
    %v1178 = vunpack.c.l.b16 %v1174
    %v1179 = vpack.c.b16 %v1178, %v1177
    %vm1180 = vcmask 293888
    %v1182 = vsel %vm1180, %v1179, 0
    %vm1184 = vcmask 1041408
    %v1186 = vsel %vm1184, %v1172, 0
    %1188 = vmatprep.subr.bf16.mxu0 0
    %1189 = vmatpush1.bf16.msra.mxu0 %v1170
    %1190 = vmatprep.subr.bf16.mxu0 0
    %1191 = vmatpush1.bf16.msra.mxu0 %v1171
    %1192 = vmatprep.subr.bf16.mxu0 0
    %1193 = vmatpush1.bf16.msra.mxu0 %v1186
    %1194 = vmatprep.subr.bf16.mxu0 0
    %1195 = vmatpush1.bf16.msra.mxu0 0
    %1196 = vmatprep.subr.bf16.mxu0 0
    %1197 = vmatpush1.bf16.msra.mxu0 0
    %1198 = vmatprep.subr.bf16.mxu0 0
    %1199 = vmatpush1.bf16.msra.mxu0 0
    %1200 = vmatprep.subr.bf16.mxu0 0
    %1201 = vmatpush1.bf16.msra.mxu0 0
    %1202 = vmatprep.subr.bf16.mxu0 0
    %1203 = vmatpush1.bf16.msra.mxu0 0
    %1204 = vmatprep.subr.bf16.mxu0 0
    %1205 = vmatpush1.bf16.msra.mxu0 0
    %1206 = vmatprep.subr.bf16.mxu0 0
    %1207 = vmatpush1.bf16.msra.mxu0 0
    %1208 = vmatprep.subr.bf16.mxu0 0
    %1209 = vmatpush1.bf16.msra.mxu0 0
    %1210 = vmatprep.subr.bf16.mxu0 0
    %1211 = vmatpush1.bf16.msra.mxu0 0
    %1212 = vmatprep.subr.bf16.mxu0 0
    %1213 = vmatpush1.bf16.msra.mxu0 0
    %1214 = vmatprep.subr.bf16.mxu0 0
    %1215 = vmatpush1.bf16.msra.mxu0 0
    %1216 = vmatprep.subr.bf16.mxu0 0
    %1217 = vmatpush1.bf16.msra.mxu0 0
    %1218 = vmatprep.subr.bf16.mxu0 0
    %1219 = vmatpush1.bf16.msra.mxu0 0
    %1220 = vmatprep.mubr.bf16.mxu0 0
    %1221 = vmatmul.mubr.bf16.gmra.mrb[0].mxu0 %v1182
    %v1222 = vpop.f32.mrb[0].mxu0
    %v1223 = vadd.f32 0.0, %v1222
    %v1224 = vpop.f32.mrb[0].mxu0
    %v1225 = vpop.f32.mrb[0].mxu0
    %v1226 = vadd.f32 0.0, %v1225
    %v1227 = vpop.f32.mrb[0].mxu0
    %1228 = vdwg.mxu0
    %v1229 = vpack.c.bf16 %v1226, %v1223
    %s1230 = scalar_lea.vmem %s5, 8
    %v1231 = vld [vmem:[%s1230] sm:$0xf]
    %v1232 = vld [vmem:[%s1230 + $0x4] sm:$0x7]
    %v1235 = vunpack.c.l.b16 %v1231
    %v1236 = vunpack.c.l.b16 %v1232
    %v1237 = vpack.c.b16 %v1236, %v1235
    %v1239 = vsel %vm1180, %v1237, 0
    %1241 = vmatprep.subr.bf16.mxu0 0
    %1242 = vmatpush1.bf16.msra.mxu0 %v1170
    %1243 = vmatprep.subr.bf16.mxu0 0
    %1244 = vmatpush1.bf16.msra.mxu0 %v1171
    %1245 = vmatprep.subr.bf16.mxu0 0
    %1246 = vmatpush1.bf16.msra.mxu0 %v1186
    %1247 = vmatprep.subr.bf16.mxu0 0
    %1248 = vmatpush1.bf16.msra.mxu0 0
    %1249 = vmatprep.subr.bf16.mxu0 0
    %1250 = vmatpush1.bf16.msra.mxu0 0
    %1251 = vmatprep.subr.bf16.mxu0 0
    %1252 = vmatpush1.bf16.msra.mxu0 0
    %1253 = vmatprep.subr.bf16.mxu0 0
    %1254 = vmatpush1.bf16.msra.mxu0 0
    %1255 = vmatprep.subr.bf16.mxu0 0
    %1256 = vmatpush1.bf16.msra.mxu0 0
    %1257 = vmatprep.subr.bf16.mxu0 0
    %1258 = vmatpush1.bf16.msra.mxu0 0
    %1259 = vmatprep.subr.bf16.mxu0 0
    %1260 = vmatpush1.bf16.msra.mxu0 0
    %1261 = vmatprep.subr.bf16.mxu0 0
    %1262 = vmatpush1.bf16.msra.mxu0 0
    %1263 = vmatprep.subr.bf16.mxu0 0
    %1264 = vmatpush1.bf16.msra.mxu0 0
    %1265 = vmatprep.subr.bf16.mxu0 0
    %1266 = vmatpush1.bf16.msra.mxu0 0
    %1267 = vmatprep.subr.bf16.mxu0 0
    %1268 = vmatpush1.bf16.msra.mxu0 0
    %1269 = vmatprep.subr.bf16.mxu0 0
    %1270 = vmatpush1.bf16.msra.mxu0 0
    %1271 = vmatprep.subr.bf16.mxu0 0
    %1272 = vmatpush1.bf16.msra.mxu0 0
    %1273 = vmatprep.mubr.bf16.mxu0 0
    %1274 = vmatmul.mubr.bf16.gmra.mrb[0].mxu0 %v1239
    %v1275 = vpop.f32.mrb[0].mxu0
    %v1276 = vadd.f32 0.0, %v1275
    %v1277 = vpop.f32.mrb[0].mxu0
    %v1278 = vpop.f32.mrb[0].mxu0
    %v1279 = vadd.f32 0.0, %v1278
    %v1280 = vpop.f32.mrb[0].mxu0
    %1281 = vdwg.mxu0
    %v1282 = vpack.c.bf16 %v1279, %v1276
    %s1283 = scalar_lea.vmem %s5, 16
    %v1284 = vld [vmem:[%s1283] sm:$0xf]
    %v1285 = vld [vmem:[%s1283 + $0x4] sm:$0x7]
    %v1288 = vunpack.c.l.b16 %v1284
    %v1289 = vunpack.c.l.b16 %v1285
    %v1290 = vpack.c.b16 %v1289, %v1288
    %v1292 = vsel %vm1180, %v1290, 0
    %1294 = vmatprep.subr.bf16.mxu0 0
    %1295 = vmatpush1.bf16.msra.mxu0 %v1170
    %1296 = vmatprep.subr.bf16.mxu0 0
    %1297 = vmatpush1.bf16.msra.mxu0 %v1171
    %1298 = vmatprep.subr.bf16.mxu0 0
    %1299 = vmatpush1.bf16.msra.mxu0 %v1186
    %1300 = vmatprep.subr.bf16.mxu0 0
    %1301 = vmatpush1.bf16.msra.mxu0 0
    %1302 = vmatprep.subr.bf16.mxu0 0
    %1303 = vmatpush1.bf16.msra.mxu0 0
    %1304 = vmatprep.subr.bf16.mxu0 0
    %1305 = vmatpush1.bf16.msra.mxu0 0
    %1306 = vmatprep.subr.bf16.mxu0 0
    %1307 = vmatpush1.bf16.msra.mxu0 0
    %1308 = vmatprep.subr.bf16.mxu0 0
    %1309 = vmatpush1.bf16.msra.mxu0 0
    %1310 = vmatprep.subr.bf16.mxu0 0
    %1311 = vmatpush1.bf16.msra.mxu0 0
    %1312 = vmatprep.subr.bf16.mxu0 0
    %1313 = vmatpush1.bf16.msra.mxu0 0
    %1314 = vmatprep.subr.bf16.mxu0 0
    %1315 = vmatpush1.bf16.msra.mxu0 0
    %1316 = vmatprep.subr.bf16.mxu0 0
    %1317 = vmatpush1.bf16.msra.mxu0 0
    %1318 = vmatprep.subr.bf16.mxu0 0
    %1319 = vmatpush1.bf16.msra.mxu0 0
    %1320 = vmatprep.subr.bf16.mxu0 0
    %1321 = vmatpush1.bf16.msra.mxu0 0
    %1322 = vmatprep.subr.bf16.mxu0 0
    %1323 = vmatpush1.bf16.msra.mxu0 0
    %1324 = vmatprep.subr.bf16.mxu0 0
    %1325 = vmatpush1.bf16.msra.mxu0 0
    %1326 = vmatprep.mubr.bf16.mxu0 0
    %1327 = vmatmul.mubr.bf16.gmra.mrb[0].mxu0 %v1292
    %v1328 = vpop.f32.mrb[0].mxu0
    %v1329 = vadd.f32 0.0, %v1328
    %v1330 = vpop.f32.mrb[0].mxu0
    %v1331 = vpop.f32.mrb[0].mxu0
    %v1332 = vadd.f32 0.0, %v1331
    %v1333 = vpop.f32.mrb[0].mxu0
    %1334 = vdwg.mxu0
    %v1335 = vpack.c.bf16 %v1332, %v1329
    %s1336 = scalar_lea.vmem %s5, 24
    %v1337 = vld [vmem:[%s1336] sm:$0xf]
    %v1338 = vld [vmem:[%s1336 + $0x4] sm:$0x7]
    %v1341 = vunpack.c.l.b16 %v1337
    %v1342 = vunpack.c.l.b16 %v1338
    %v1343 = vpack.c.b16 %v1342, %v1341
    %v1345 = vsel %vm1180, %v1343, 0
    %1347 = vmatprep.subr.bf16.mxu0 0
    %1348 = vmatpush1.bf16.msra.mxu0 %v1170
    %1349 = vmatprep.subr.bf16.mxu0 0
    %1350 = vmatpush1.bf16.msra.mxu0 %v1171
    %1351 = vmatprep.subr.bf16.mxu0 0
    %1352 = vmatpush1.bf16.msra.mxu0 %v1186
    %1353 = vmatprep.subr.bf16.mxu0 0
    %1354 = vmatpush1.bf16.msra.mxu0 0
    %1355 = vmatprep.subr.bf16.mxu0 0
    %1356 = vmatpush1.bf16.msra.mxu0 0
    %1357 = vmatprep.subr.bf16.mxu0 0
    %1358 = vmatpush1.bf16.msra.mxu0 0
    %1359 = vmatprep.subr.bf16.mxu0 0
    %1360 = vmatpush1.bf16.msra.mxu0 0
    %1361 = vmatprep.subr.bf16.mxu0 0
    %1362 = vmatpush1.bf16.msra.mxu0 0
    %1363 = vmatprep.subr.bf16.mxu0 0
    %1364 = vmatpush1.bf16.msra.mxu0 0
    %1365 = vmatprep.subr.bf16.mxu0 0
    %1366 = vmatpush1.bf16.msra.mxu0 0
    %1367 = vmatprep.subr.bf16.mxu0 0
    %1368 = vmatpush1.bf16.msra.mxu0 0
    %1369 = vmatprep.subr.bf16.mxu0 0
    %1370 = vmatpush1.bf16.msra.mxu0 0
    %1371 = vmatprep.subr.bf16.mxu0 0
    %1372 = vmatpush1.bf16.msra.mxu0 0
    %1373 = vmatprep.subr.bf16.mxu0 0
    %1374 = vmatpush1.bf16.msra.mxu0 0
    %1375 = vmatprep.subr.bf16.mxu0 0
    %1376 = vmatpush1.bf16.msra.mxu0 0
    %1377 = vmatprep.subr.bf16.mxu0 0
    %1378 = vmatpush1.bf16.msra.mxu0 0
    %1379 = vmatprep.mubr.bf16.mxu0 0
    %1380 = vmatmul.mubr.bf16.gmra.mrb[0].mxu0 %v1345
    %v1381 = vpop.f32.mrb[0].mxu0
    %v1382 = vadd.f32 0.0, %v1381
    %v1383 = vpop.f32.mrb[0].mxu0
    %v1384 = vpop.f32.mrb[0].mxu0
    %v1385 = vadd.f32 0.0, %v1384
    %v1386 = vpop.f32.mrb[0].mxu0
    %1387 = vdwg.mxu0
    %v1388 = vpack.c.bf16 %v1385, %v1382
    %s1389 = scalar_lea.vmem %s5, 32
    %v1390 = vld [vmem:[%s1389] sm:$0xf]
    %v1391 = vld [vmem:[%s1389 + $0x4] sm:$0x7]
    %v1394 = vunpack.c.l.b16 %v1390
    %v1395 = vunpack.c.l.b16 %v1391
    %v1396 = vpack.c.b16 %v1395, %v1394
    %v1398 = vsel %vm1180, %v1396, 0
    %1400 = vmatprep.subr.bf16.mxu0 0
    %1401 = vmatpush1.bf16.msra.mxu0 %v1170
    %1402 = vmatprep.subr.bf16.mxu0 0
    %1403 = vmatpush1.bf16.msra.mxu0 %v1171
    %1404 = vmatprep.subr.bf16.mxu0 0
    %1405 = vmatpush1.bf16.msra.mxu0 %v1186
    %1406 = vmatprep.subr.bf16.mxu0 0
    %1407 = vmatpush1.bf16.msra.mxu0 0
    %1408 = vmatprep.subr.bf16.mxu0 0
    %1409 = vmatpush1.bf16.msra.mxu0 0
    %1410 = vmatprep.subr.bf16.mxu0 0
    %1411 = vmatpush1.bf16.msra.mxu0 0
    %1412 = vmatprep.subr.bf16.mxu0 0
    %1413 = vmatpush1.bf16.msra.mxu0 0
    %1414 = vmatprep.subr.bf16.mxu0 0
    %1415 = vmatpush1.bf16.msra.mxu0 0
    %1416 = vmatprep.subr.bf16.mxu0 0
    %1417 = vmatpush1.bf16.msra.mxu0 0
    %1418 = vmatprep.subr.bf16.mxu0 0
    %1419 = vmatpush1.bf16.msra.mxu0 0
    %1420 = vmatprep.subr.bf16.mxu0 0
    %1421 = vmatpush1.bf16.msra.mxu0 0
    %1422 = vmatprep.subr.bf16.mxu0 0
    %1423 = vmatpush1.bf16.msra.mxu0 0
    %1424 = vmatprep.subr.bf16.mxu0 0
    %1425 = vmatpush1.bf16.msra.mxu0 0
    %1426 = vmatprep.subr.bf16.mxu0 0
    %1427 = vmatpush1.bf16.msra.mxu0 0
    %1428 = vmatprep.subr.bf16.mxu0 0
    %1429 = vmatpush1.bf16.msra.mxu0 0
    %1430 = vmatprep.subr.bf16.mxu0 0
    %1431 = vmatpush1.bf16.msra.mxu0 0
    %1432 = vmatprep.mubr.bf16.mxu0 0
    %1433 = vmatmul.mubr.bf16.gmra.mrb[0].mxu0 %v1398
    %v1434 = vpop.f32.mrb[0].mxu0
    %v1435 = vadd.f32 0.0, %v1434
    %v1436 = vpop.f32.mrb[0].mxu0
    %v1437 = vpop.f32.mrb[0].mxu0
    %v1438 = vadd.f32 0.0, %v1437
    %v1439 = vpop.f32.mrb[0].mxu0
    %1440 = vdwg.mxu0
    %v1441 = vpack.c.bf16 %v1438, %v1435
    %1443 = vrot.lane.b32.xlu0 %v1282, 64
    %v1444 = vpop.permute.xlu0 %1443
    %1446 = vrot.lane.b32.xlu0 %v1388, 64
    %v1447 = vpop.permute.xlu0 %1446
    %v1450 = vsel %vm852, %v1229, %v1444
    %v1454 = vsel %vm852, %v1335, %v1447
    %v1456 = vld [vmem:[%s6] sm:$0xf]
    %v1457 = vld [vmem:[%s6 + $0x4] sm:$0xf]
    %v1458 = vld [vmem:[%s6 + $0x8] sm:$0xf]
    %v1459 = vld [vmem:[%s6 + $0xc] sm:$0xf]
    %v1460 = vld [vmem:[%s6 + $0x10] sm:$0xf]
    %v1461 = vld [vmem:[%s6 + $0x14] sm:$0xf]
    %v1462 = vld [vmem:[%s6 + $0x18] sm:$0xf]
    %v1463 = vld [vmem:[%s6 + $0x1c] sm:$0xf]
    %v1464 = vld [vmem:[%s6 + $0x20] sm:$0xf]
    %v1465 = vld [vmem:[%s6 + $0x24] sm:$0xf]
    %v1466 = vld [vmem:[%s6 + $0x28] sm:$0xf]
    %v1467 = vld [vmem:[%s6 + $0x2c] sm:$0xf]
    %v1468 = vld [vmem:[%s6 + $0x30] sm:$0xf]
    %v1469 = vld [vmem:[%s6 + $0x34] sm:$0xf]
    %v1470 = vld [vmem:[%s6 + $0x38] sm:$0xf]
    %v1471 = vld [vmem:[%s6 + $0x3c] sm:$0xf]
    %v1472 = vld [vmem:[%s6 + $0x40] sm:$0xf]
    %v1473 = vld [vmem:[%s6 + $0x44] sm:$0xf]
    %v1474 = vld [vmem:[%s6 + $0x48] sm:$0xf]
    %v1475 = vld [vmem:[%s6 + $0x4c] sm:$0xf]
    %v1476 = vld [vmem:[%s6 + $0x50] sm:$0xf]
    %v1477 = vld [vmem:[%s6 + $0x54] sm:$0xf]
    %v1478 = vld [vmem:[%s6 + $0x58] sm:$0xf]
    %v1479 = vld [vmem:[%s6 + $0x5c] sm:$0xf]
    %v1480 = vld [vmem:[%s6 + $0x60] sm:$0xf]
    %v1481 = vld [vmem:[%s6 + $0x64] sm:$0xf]
    %v1482 = vld [vmem:[%s6 + $0x68] sm:$0xf]
    %v1483 = vld [vmem:[%s6 + $0x6c] sm:$0xf]
    %v1484 = vld [vmem:[%s6 + $0x70] sm:$0xf]
    %v1485 = vld [vmem:[%s6 + $0x74] sm:$0xf]
    %v1486 = vld [vmem:[%s6 + $0x78] sm:$0xf]
    %v1487 = vld [vmem:[%s6 + $0x7c] sm:$0xf]
    %v1488 = vld [vmem:[%s6 + $0x80] sm:$0xf]
    %v1489 = vld [vmem:[%s6 + $0x84] sm:$0xf]
    %v1490 = vld [vmem:[%s6 + $0x88] sm:$0xf]
    %v1491 = vld [vmem:[%s6 + $0x8c] sm:$0xf]
    %v1492 = vld [vmem:[%s6 + $0x90] sm:$0xf]
    %v1493 = vld [vmem:[%s6 + $0x94] sm:$0xf]
    %v1494 = vld [vmem:[%s6 + $0x98] sm:$0xf]
    %v1495 = vld [vmem:[%s6 + $0x9c] sm:$0xf]
    %v1496 = vld [vmem:[%s7] sm:$0x1]
    %v1498 = vlaneseq
    %v1499 = vshrl.u32 %v1498, 7
    %v1500 = vsub.s32 0, %v1499
    %v1501 = vrot.slane %v1496, %v1500
    %v1543 = vunpack.c.l.b16 %v1456
    %v1544 = vunpack.c.l.b16 %v1457
    %v1545 = vunpack.c.l.b16 %v1458
    %v1546 = vunpack.c.l.b16 %v1459
    %v1547 = vunpack.c.l.b16 %v1460
    %v1548 = vunpack.c.l.b16 %v1461
    %v1549 = vunpack.c.l.b16 %v1462
    %v1550 = vunpack.c.l.b16 %v1463
    %v1551 = vunpack.c.l.b16 %v1464
    %v1552 = vunpack.c.l.b16 %v1465
    %v1553 = vunpack.c.l.b16 %v1466
    %v1554 = vunpack.c.l.b16 %v1467
    %v1555 = vunpack.c.l.b16 %v1468
    %v1556 = vunpack.c.l.b16 %v1469
    %v1557 = vunpack.c.l.b16 %v1470
    %v1558 = vunpack.c.l.b16 %v1471
    %v1559 = vunpack.c.l.b16 %v1472
    %v1560 = vunpack.c.l.b16 %v1473
    %v1561 = vunpack.c.l.b16 %v1474
    %v1562 = vunpack.c.l.b16 %v1475
    %v1563 = vunpack.c.l.b16 %v1476
    %v1564 = vunpack.c.l.b16 %v1477
    %v1565 = vunpack.c.l.b16 %v1478
    %v1566 = vunpack.c.l.b16 %v1479
    %v1567 = vunpack.c.l.b16 %v1480
    %v1568 = vunpack.c.l.b16 %v1481
    %v1569 = vunpack.c.l.b16 %v1482
    %v1570 = vunpack.c.l.b16 %v1483
    %v1571 = vunpack.c.l.b16 %v1484
    %v1572 = vunpack.c.l.b16 %v1485
    %v1573 = vunpack.c.l.b16 %v1486
    %v1574 = vunpack.c.l.b16 %v1487
    %v1575 = vunpack.c.l.b16 %v1488
    %v1576 = vunpack.c.l.b16 %v1489
    %v1577 = vunpack.c.l.b16 %v1490
    %v1578 = vunpack.c.l.b16 %v1491
    %v1579 = vunpack.c.l.b16 %v1492
    %v1580 = vunpack.c.l.b16 %v1493
    %v1581 = vunpack.c.l.b16 %v1494
    %v1582 = vunpack.c.l.b16 %v1495
    %v1583 = vpack.c.b16 %v1544, %v1543
    %v1584 = vpack.c.b16 %v1546, %v1545
    %v1585 = vpack.c.b16 %v1548, %v1547
    %v1586 = vpack.c.b16 %v1550, %v1549
    %v1587 = vpack.c.b16 %v1552, %v1551
    %v1588 = vpack.c.b16 %v1554, %v1553
    %v1589 = vpack.c.b16 %v1556, %v1555
    %v1590 = vpack.c.b16 %v1558, %v1557
    %v1591 = vpack.c.b16 %v1560, %v1559
    %v1592 = vpack.c.b16 %v1562, %v1561
    %v1593 = vpack.c.b16 %v1564, %v1563
    %v1594 = vpack.c.b16 %v1566, %v1565
    %v1595 = vpack.c.b16 %v1568, %v1567
    %v1596 = vpack.c.b16 %v1570, %v1569
    %v1597 = vpack.c.b16 %v1572, %v1571
    %v1598 = vpack.c.b16 %v1574, %v1573
    %v1599 = vpack.c.b16 %v1576, %v1575
    %v1600 = vpack.c.b16 %v1578, %v1577
    %v1601 = vpack.c.b16 %v1580, %v1579
    %v1602 = vpack.c.b16 %v1582, %v1581
    %v1624 = vsel %vm852, %v1441, 0
    %1626 = vmatprep.subr.bf16.mxu0 0
    %1627 = vmatpush1.bf16.msra.mxu0 %v1583
    %1628 = vmatprep.subr.bf16.mxu0 0
    %1629 = vmatpush1.bf16.msra.mxu0 %v1584
    %1630 = vmatprep.subr.bf16.mxu0 0
    %1631 = vmatpush1.bf16.msra.mxu0 %v1585
    %1632 = vmatprep.subr.bf16.mxu0 0
    %1633 = vmatpush1.bf16.msra.mxu0 %v1586
    %1634 = vmatprep.subr.bf16.mxu0 0
    %1635 = vmatpush1.bf16.msra.mxu0 %v1587
    %1636 = vmatprep.subr.bf16.mxu0 0
    %1637 = vmatpush1.bf16.msra.mxu0 %v1588
    %1638 = vmatprep.subr.bf16.mxu0 0
    %1639 = vmatpush1.bf16.msra.mxu0 %v1589
    %1640 = vmatprep.subr.bf16.mxu0 0
    %1641 = vmatpush1.bf16.msra.mxu0 %v1590
    %1642 = vmatprep.subr.bf16.mxu0 0
    %1643 = vmatpush1.bf16.msra.mxu0 %v1591
    %1644 = vmatprep.subr.bf16.mxu0 0
    %1645 = vmatpush1.bf16.msra.mxu0 %v1592
    %1646 = vmatprep.subr.bf16.mxu0 0
    %1647 = vmatpush1.bf16.msra.mxu0 %v1593
    %1648 = vmatprep.subr.bf16.mxu0 0
    %1649 = vmatpush1.bf16.msra.mxu0 %v1594
    %1650 = vmatprep.subr.bf16.mxu0 0
    %1651 = vmatpush1.bf16.msra.mxu0 %v1595
    %1652 = vmatprep.subr.bf16.mxu0 0
    %1653 = vmatpush1.bf16.msra.mxu0 %v1596
    %1654 = vmatprep.subr.bf16.mxu0 0
    %1655 = vmatpush1.bf16.msra.mxu0 %v1597
    %1656 = vmatprep.subr.bf16.mxu0 0
    %1657 = vmatpush1.bf16.msra.mxu0 %v1598
    %1658 = vmatprep.mubr.bf16.mxu0 %v1454
    %1659 = vmatmul.mubr.bf16.gmra.mrb[0].mxu0 %v1450
    %v1660 = vpop.f32.mrb[0].mxu0
    %v1661 = vadd.f32 %v1501, %v1660
    %v1662 = vpop.f32.mrb[0].mxu0
    %v1663 = vpop.f32.mrb[0].mxu0
    %v1664 = vadd.f32 %v1501, %v1663
    %v1665 = vpop.f32.mrb[0].mxu0
    %1666 = vdwg.mxu0
    %1667 = vmatprep.subr.bf16.mxu0 0
    %1668 = vmatpush1.bf16.msra.mxu0 %v1599
    %1669 = vmatprep.subr.bf16.mxu0 0
    %1670 = vmatpush1.bf16.msra.mxu0 %v1600
    %1671 = vmatprep.subr.bf16.mxu0 0
    %1672 = vmatpush1.bf16.msra.mxu0 %v1601
    %1673 = vmatprep.subr.bf16.mxu0 0
    %1674 = vmatpush1.bf16.msra.mxu0 %v1602
    %1675 = vmatprep.subr.bf16.mxu0 0
    %1676 = vmatpush1.bf16.msra.mxu0 0
    %1677 = vmatprep.subr.bf16.mxu0 0
    %1678 = vmatpush1.bf16.msra.mxu0 0
    %1679 = vmatprep.subr.bf16.mxu0 0
    %1680 = vmatpush1.bf16.msra.mxu0 0
    %1681 = vmatprep.subr.bf16.mxu0 0
    %1682 = vmatpush1.bf16.msra.mxu0 0
    %1683 = vmatprep.subr.bf16.mxu0 0
    %1684 = vmatpush1.bf16.msra.mxu0 0
    %1685 = vmatprep.subr.bf16.mxu0 0
    %1686 = vmatpush1.bf16.msra.mxu0 0
    %1687 = vmatprep.subr.bf16.mxu0 0
    %1688 = vmatpush1.bf16.msra.mxu0 0
    %1689 = vmatprep.subr.bf16.mxu0 0
    %1690 = vmatpush1.bf16.msra.mxu0 0
    %1691 = vmatprep.subr.bf16.mxu0 0
    %1692 = vmatpush1.bf16.msra.mxu0 0
    %1693 = vmatprep.subr.bf16.mxu0 0
    %1694 = vmatpush1.bf16.msra.mxu0 0
    %1695 = vmatprep.subr.bf16.mxu0 0
    %1696 = vmatpush1.bf16.msra.mxu0 0
    %1697 = vmatprep.subr.bf16.mxu0 0
    %1698 = vmatpush1.bf16.msra.mxu0 0
    %1699 = vmatprep.mubr.bf16.mxu0 0
    %1700 = vmatmul.mubr.bf16.gmra.mrb[0].mxu0 %v1624
    %v1701 = vpop.f32.mrb[0].mxu0
    %v1702 = vadd.f32 %v1661, %v1701
    %v1703 = vpop.f32.mrb[0].mxu0
    %v1704 = vpop.f32.mrb[0].mxu0
    %v1705 = vadd.f32 %v1664, %v1704
    %v1706 = vpop.f32.mrb[0].mxu0
    %1707 = vdwg.mxu0
    %v1708 = vmax.f32 %v1702, 0.0
    %v1709 = vmax.f32 %v1705, 0.0
    %v1710 = vpack.c.bf16 %v1709, %v1708
    %v1711 = vld [vmem:[%s8] sm:$0x7]
    %vm1712 = vcmask 113664
    %v1714 = vsel %vm1712, %v1711, 0
    %vm1716 = vcmask 1046528
    %v1718 = vsel %vm1716, %v1710, 0
    %1720 = vmatprep.subr.bf16.mxu0 0
    %1721 = vmatpush1.bf16.msra.mxu0 %v1718
    %1722 = vmatprep.subr.bf16.mxu0 0
    %1723 = vmatpush1.bf16.msra.mxu0 0
    %1724 = vmatprep.subr.bf16.mxu0 0
    %1725 = vmatpush1.bf16.msra.mxu0 0
    %1726 = vmatprep.subr.bf16.mxu0 0
    %1727 = vmatpush1.bf16.msra.mxu0 0
    %1728 = vmatprep.subr.bf16.mxu0 0
    %1729 = vmatpush1.bf16.msra.mxu0 0
    %1730 = vmatprep.subr.bf16.mxu0 0
    %1731 = vmatpush1.bf16.msra.mxu0 0
    %1732 = vmatprep.subr.bf16.mxu0 0
    %1733 = vmatpush1.bf16.msra.mxu0 0
    %1734 = vmatprep.subr.bf16.mxu0 0
    %1735 = vmatpush1.bf16.msra.mxu0 0
    %1736 = vmatprep.subr.bf16.mxu0 0
    %1737 = vmatpush1.bf16.msra.mxu0 0
    %1738 = vmatprep.subr.bf16.mxu0 0
    %1739 = vmatpush1.bf16.msra.mxu0 0
    %1740 = vmatprep.subr.bf16.mxu0 0
    %1741 = vmatpush1.bf16.msra.mxu0 0
    %1742 = vmatprep.subr.bf16.mxu0 0
    %1743 = vmatpush1.bf16.msra.mxu0 0
    %1744 = vmatprep.subr.bf16.mxu0 0
    %1745 = vmatpush1.bf16.msra.mxu0 0
    %1746 = vmatprep.subr.bf16.mxu0 0
    %1747 = vmatpush1.bf16.msra.mxu0 0
    %1748 = vmatprep.subr.bf16.mxu0 0
    %1749 = vmatpush1.bf16.msra.mxu0 0
    %1750 = vmatprep.subr.bf16.mxu0 0
    %1751 = vmatpush1.bf16.msra.mxu0 0
    %1752 = vmatprep.mubr.bf16.mxu0 0
    %1753 = vmatmul.mubr.bf16.gmra.mrb[0].mxu0 %v1714
    %v1754 = vpop.f32.mrb[0].mxu0
    %v1755 = vadd.f32 0.0, %v1754
    %v1756 = vpop.f32.mrb[0].mxu0
    %v1757 = vpop.f32.mrb[0].mxu0
    %v1758 = vpop.f32.mrb[0].mxu0
    %1759 = vdwg.mxu0
    %v1760 = vpack.c.bf16 %v1755, %v1755
    %s1761 = scalar_lea.vmem %s8, 4
    %v1762 = vld [vmem:[%s1761] sm:$0x7]
    %v1764 = vsel %vm1712, %v1762, 0
    %1766 = vmatprep.subr.bf16.mxu0 0
    %1767 = vmatpush1.bf16.msra.mxu0 %v1718
    %1768 = vmatprep.subr.bf16.mxu0 0
    %1769 = vmatpush1.bf16.msra.mxu0 0
    %1770 = vmatprep.subr.bf16.mxu0 0
    %1771 = vmatpush1.bf16.msra.mxu0 0
    %1772 = vmatprep.subr.bf16.mxu0 0
    %1773 = vmatpush1.bf16.msra.mxu0 0
    %1774 = vmatprep.subr.bf16.mxu0 0
    %1775 = vmatpush1.bf16.msra.mxu0 0
    %1776 = vmatprep.subr.bf16.mxu0 0
    %1777 = vmatpush1.bf16.msra.mxu0 0
    %1778 = vmatprep.subr.bf16.mxu0 0
    %1779 = vmatpush1.bf16.msra.mxu0 0
    %1780 = vmatprep.subr.bf16.mxu0 0
    %1781 = vmatpush1.bf16.msra.mxu0 0
    %1782 = vmatprep.subr.bf16.mxu0 0
    %1783 = vmatpush1.bf16.msra.mxu0 0
    %1784 = vmatprep.subr.bf16.mxu0 0
    %1785 = vmatpush1.bf16.msra.mxu0 0
    %1786 = vmatprep.subr.bf16.mxu0 0
    %1787 = vmatpush1.bf16.msra.mxu0 0
    %1788 = vmatprep.subr.bf16.mxu0 0
    %1789 = vmatpush1.bf16.msra.mxu0 0
    %1790 = vmatprep.subr.bf16.mxu0 0
    %1791 = vmatpush1.bf16.msra.mxu0 0
    %1792 = vmatprep.subr.bf16.mxu0 0
    %1793 = vmatpush1.bf16.msra.mxu0 0
    %1794 = vmatprep.subr.bf16.mxu0 0
    %1795 = vmatpush1.bf16.msra.mxu0 0
    %1796 = vmatprep.subr.bf16.mxu0 0
    %1797 = vmatpush1.bf16.msra.mxu0 0
    %1798 = vmatprep.mubr.bf16.mxu0 0
    %1799 = vmatmul.mubr.bf16.gmra.mrb[0].mxu0 %v1764
    %v1800 = vpop.f32.mrb[0].mxu0
    %v1801 = vadd.f32 0.0, %v1800
    %v1802 = vpop.f32.mrb[0].mxu0
    %v1803 = vpop.f32.mrb[0].mxu0
    %v1804 = vpop.f32.mrb[0].mxu0
    %1805 = vdwg.mxu0
    %v1806 = vpack.c.bf16 %v1801, %v1801
    %s1807 = scalar_lea.vmem %s8, 8
    %v1808 = vld [vmem:[%s1807] sm:$0x7]
    %v1810 = vsel %vm1712, %v1808, 0
    %1812 = vmatprep.subr.bf16.mxu0 0
    %1813 = vmatpush1.bf16.msra.mxu0 %v1718
    %1814 = vmatprep.subr.bf16.mxu0 0
    %1815 = vmatpush1.bf16.msra.mxu0 0
    %1816 = vmatprep.subr.bf16.mxu0 0
    %1817 = vmatpush1.bf16.msra.mxu0 0
    %1818 = vmatprep.subr.bf16.mxu0 0
    %1819 = vmatpush1.bf16.msra.mxu0 0
    %1820 = vmatprep.subr.bf16.mxu0 0
    %1821 = vmatpush1.bf16.msra.mxu0 0
    %1822 = vmatprep.subr.bf16.mxu0 0
    %1823 = vmatpush1.bf16.msra.mxu0 0
    %1824 = vmatprep.subr.bf16.mxu0 0
    %1825 = vmatpush1.bf16.msra.mxu0 0
    %1826 = vmatprep.subr.bf16.mxu0 0
    %1827 = vmatpush1.bf16.msra.mxu0 0
    %1828 = vmatprep.subr.bf16.mxu0 0
    %1829 = vmatpush1.bf16.msra.mxu0 0
    %1830 = vmatprep.subr.bf16.mxu0 0
    %1831 = vmatpush1.bf16.msra.mxu0 0
    %1832 = vmatprep.subr.bf16.mxu0 0
    %1833 = vmatpush1.bf16.msra.mxu0 0
    %1834 = vmatprep.subr.bf16.mxu0 0
    %1835 = vmatpush1.bf16.msra.mxu0 0
    %1836 = vmatprep.subr.bf16.mxu0 0
    %1837 = vmatpush1.bf16.msra.mxu0 0
    %1838 = vmatprep.subr.bf16.mxu0 0
    %1839 = vmatpush1.bf16.msra.mxu0 0
    %1840 = vmatprep.subr.bf16.mxu0 0
    %1841 = vmatpush1.bf16.msra.mxu0 0
    %1842 = vmatprep.subr.bf16.mxu0 0
    %1843 = vmatpush1.bf16.msra.mxu0 0
    %1844 = vmatprep.mubr.bf16.mxu0 0
    %1845 = vmatmul.mubr.bf16.gmra.mrb[0].mxu0 %v1810
    %v1846 = vpop.f32.mrb[0].mxu0
    %v1847 = vadd.f32 0.0, %v1846
    %v1848 = vpop.f32.mrb[0].mxu0
    %v1849 = vpop.f32.mrb[0].mxu0
    %v1850 = vpop.f32.mrb[0].mxu0
    %1851 = vdwg.mxu0
    %v1852 = vpack.c.bf16 %v1847, %v1847
    %v1853 = vld [vmem:[%s9] sm:$0xf]
    %v1854 = vld [vmem:[%s9 + $0x4] sm:$0xf]
    %v1855 = vld [vmem:[%s9 + $0x8] sm:$0xf]
    %v1856 = vld [vmem:[%s9 + $0xc] sm:$0xf]
    %v1857 = vld [vmem:[%s9 + $0x10] sm:$0xf]
    %v1858 = vld [vmem:[%s9 + $0x14] sm:$0xf]
    %v1859 = vld [vmem:[%s9 + $0x18] sm:$0xf]
    %v1860 = vld [vmem:[%s9 + $0x1c] sm:$0xf]
    %v1861 = vld [vmem:[%s9 + $0x20] sm:$0xf]
    %v1862 = vld [vmem:[%s9 + $0x24] sm:$0xf]
    %v1863 = vld [vmem:[%s9 + $0x28] sm:$0xf]
    %v1864 = vld [vmem:[%s9 + $0x2c] sm:$0xf]
    %v1865 = vld [vmem:[%s9 + $0x30] sm:$0xf]
    %v1866 = vld [vmem:[%s9 + $0x34] sm:$0xf]
    %v1867 = vld [vmem:[%s9 + $0x38] sm:$0xf]
    %v1868 = vld [vmem:[%s9 + $0x3c] sm:$0xf]
    %v1869 = vld [vmem:[%s9 + $0x40] sm:$0xf]
    %v1870 = vld [vmem:[%s9 + $0x44] sm:$0xf]
    %v1871 = vld [vmem:[%s9 + $0x48] sm:$0xf]
    %v1872 = vld [vmem:[%s9 + $0x4c] sm:$0xf]
    %v1873 = vld [vmem:[%s9 + $0x50] sm:$0xf]
    %v1874 = vld [vmem:[%s9 + $0x54] sm:$0xf]
    %v1875 = vld [vmem:[%s9 + $0x58] sm:$0xf]
    %v1876 = vld [vmem:[%s9 + $0x5c] sm:$0xf]
    %v1877 = vld [vmem:[%s9 + $0x60] sm:$0xf]
    %v1878 = vld [vmem:[%s9 + $0x64] sm:$0xf]
    %v1879 = vld [vmem:[%s9 + $0x68] sm:$0xf]
    %v1880 = vld [vmem:[%s9 + $0x6c] sm:$0xf]
    %v1881 = vld [vmem:[%s9 + $0x70] sm:$0xf]
    %v1882 = vld [vmem:[%s9 + $0x74] sm:$0xf]
    %v1883 = vld [vmem:[%s9 + $0x78] sm:$0xf]
    %v1884 = vld [vmem:[%s9 + $0x7c] sm:$0xf]
    %v1885 = vld [vmem:[%s9 + $0x80] sm:$0xf]
    %v1886 = vld [vmem:[%s9 + $0x84] sm:$0xf]
    %v1887 = vld [vmem:[%s9 + $0x88] sm:$0xf]
    %v1888 = vld [vmem:[%s9 + $0x8c] sm:$0xf]
    %v1889 = vld [vmem:[%s9 + $0x90] sm:$0xf]
    %v1890 = vld [vmem:[%s9 + $0x94] sm:$0xf]
    %v1891 = vld [vmem:[%s9 + $0x98] sm:$0xf]
    %v1892 = vld [vmem:[%s9 + $0x9c] sm:$0xf]
    %v1893 = vld [vmem:[%s9 + $0xa0] sm:$0xf]
    %v1894 = vld [vmem:[%s9 + $0xa4] sm:$0xf]
    %v1895 = vld [vmem:[%s9 + $0xa8] sm:$0xf]
    %v1896 = vld [vmem:[%s9 + $0xac] sm:$0xf]
    %v1897 = vld [vmem:[%s9 + $0xb0] sm:$0xf]
    %v1898 = vld [vmem:[%s9 + $0xb4] sm:$0xf]
    %v1899 = vld [vmem:[%s9 + $0xb8] sm:$0xf]
    %v1900 = vld [vmem:[%s9 + $0xbc] sm:$0xf]
    %v1901 = vld [vmem:[%s10] sm:$0x1]
    %v1903 = vlaneseq
    %v1904 = vshrl.u32 %v1903, 7
    %v1905 = vsub.s32 0, %v1904
    %v1906 = vrot.slane %v1901, %v1905
    %v1956 = vunpack.c.l.b16 %v1853
    %v1957 = vunpack.c.l.b16 %v1854
    %v1958 = vunpack.c.l.b16 %v1855
    %v1959 = vunpack.c.l.b16 %v1856
    %v1960 = vunpack.c.l.b16 %v1857
    %v1961 = vunpack.c.l.b16 %v1858
    %v1962 = vunpack.c.l.b16 %v1859
    %v1963 = vunpack.c.l.b16 %v1860
    %v1964 = vunpack.c.l.b16 %v1861
    %v1965 = vunpack.c.l.b16 %v1862
    %v1966 = vunpack.c.l.b16 %v1863
    %v1967 = vunpack.c.l.b16 %v1864
    %v1968 = vunpack.c.l.b16 %v1865
    %v1969 = vunpack.c.l.b16 %v1866
    %v1970 = vunpack.c.l.b16 %v1867
    %v1971 = vunpack.c.l.b16 %v1868
    %v1972 = vunpack.c.l.b16 %v1869
    %v1973 = vunpack.c.l.b16 %v1870
    %v1974 = vunpack.c.l.b16 %v1871
    %v1975 = vunpack.c.l.b16 %v1872
    %v1976 = vunpack.c.l.b16 %v1873
    %v1977 = vunpack.c.l.b16 %v1874
    %v1978 = vunpack.c.l.b16 %v1875
    %v1979 = vunpack.c.l.b16 %v1876
    %v1980 = vunpack.c.l.b16 %v1877
    %v1981 = vunpack.c.l.b16 %v1878
    %v1982 = vunpack.c.l.b16 %v1879
    %v1983 = vunpack.c.l.b16 %v1880
    %v1984 = vunpack.c.l.b16 %v1881
    %v1985 = vunpack.c.l.b16 %v1882
    %v1986 = vunpack.c.l.b16 %v1883
    %v1987 = vunpack.c.l.b16 %v1884
    %v1988 = vunpack.c.l.b16 %v1885
    %v1989 = vunpack.c.l.b16 %v1886
    %v1990 = vunpack.c.l.b16 %v1887
    %v1991 = vunpack.c.l.b16 %v1888
    %v1992 = vunpack.c.l.b16 %v1889
    %v1993 = vunpack.c.l.b16 %v1890
    %v1994 = vunpack.c.l.b16 %v1891
    %v1995 = vunpack.c.l.b16 %v1892
    %v1996 = vunpack.c.l.b16 %v1893
    %v1997 = vunpack.c.l.b16 %v1894
    %v1998 = vunpack.c.l.b16 %v1895
    %v1999 = vunpack.c.l.b16 %v1896
    %v2000 = vunpack.c.l.b16 %v1897
    %v2001 = vunpack.c.l.b16 %v1898
    %v2002 = vunpack.c.l.b16 %v1899
    %v2003 = vunpack.c.l.b16 %v1900
    %v2004 = vpack.c.b16 %v1957, %v1956
    %v2005 = vpack.c.b16 %v1959, %v1958
    %v2006 = vpack.c.b16 %v1961, %v1960
    %v2007 = vpack.c.b16 %v1963, %v1962
    %v2008 = vpack.c.b16 %v1965, %v1964
    %v2009 = vpack.c.b16 %v1967, %v1966
    %v2010 = vpack.c.b16 %v1969, %v1968
    %v2011 = vpack.c.b16 %v1971, %v1970
    %v2012 = vpack.c.b16 %v1973, %v1972
    %v2013 = vpack.c.b16 %v1975, %v1974
    %v2014 = vpack.c.b16 %v1977, %v1976
    %v2015 = vpack.c.b16 %v1979, %v1978
    %v2016 = vpack.c.b16 %v1981, %v1980
    %v2017 = vpack.c.b16 %v1983, %v1982
    %v2018 = vpack.c.b16 %v1985, %v1984
    %v2019 = vpack.c.b16 %v1987, %v1986
    %v2020 = vpack.c.b16 %v1989, %v1988
    %v2021 = vpack.c.b16 %v1991, %v1990
    %v2022 = vpack.c.b16 %v1993, %v1992
    %v2023 = vpack.c.b16 %v1995, %v1994
    %v2024 = vpack.c.b16 %v1997, %v1996
    %v2025 = vpack.c.b16 %v1999, %v1998
    %v2026 = vpack.c.b16 %v2001, %v2000
    %v2027 = vpack.c.b16 %v2003, %v2002
    %2052 = vmatprep.subr.bf16.mxu0 0
    %2053 = vmatpush1.bf16.msra.mxu0 %v2004
    %2054 = vmatprep.subr.bf16.mxu0 0
    %2055 = vmatpush1.bf16.msra.mxu0 %v2005
    %2056 = vmatprep.subr.bf16.mxu0 0
    %2057 = vmatpush1.bf16.msra.mxu0 %v2006
    %2058 = vmatprep.subr.bf16.mxu0 0
    %2059 = vmatpush1.bf16.msra.mxu0 %v2007
    %2060 = vmatprep.subr.bf16.mxu0 0
    %2061 = vmatpush1.bf16.msra.mxu0 %v2008
    %2062 = vmatprep.subr.bf16.mxu0 0
    %2063 = vmatpush1.bf16.msra.mxu0 %v2009
    %2064 = vmatprep.subr.bf16.mxu0 0
    %2065 = vmatpush1.bf16.msra.mxu0 %v2010
    %2066 = vmatprep.subr.bf16.mxu0 0
    %2067 = vmatpush1.bf16.msra.mxu0 %v2011
    %2068 = vmatprep.subr.bf16.mxu0 0
    %2069 = vmatpush1.bf16.msra.mxu0 %v2012
    %2070 = vmatprep.subr.bf16.mxu0 0
    %2071 = vmatpush1.bf16.msra.mxu0 %v2013
    %2072 = vmatprep.subr.bf16.mxu0 0
    %2073 = vmatpush1.bf16.msra.mxu0 %v2014
    %2074 = vmatprep.subr.bf16.mxu0 0
    %2075 = vmatpush1.bf16.msra.mxu0 %v2015
    %2076 = vmatprep.subr.bf16.mxu0 0
    %2077 = vmatpush1.bf16.msra.mxu0 %v2016
    %2078 = vmatprep.subr.bf16.mxu0 0
    %2079 = vmatpush1.bf16.msra.mxu0 %v2017
    %2080 = vmatprep.subr.bf16.mxu0 0
    %2081 = vmatpush1.bf16.msra.mxu0 %v2018
    %2082 = vmatprep.subr.bf16.mxu0 0
    %2083 = vmatpush1.bf16.msra.mxu0 %v2019
    %2084 = vmatprep.mubr.bf16.mxu0 %v1806
    %2085 = vmatmul.mubr.bf16.gmra.mrb[0].mxu0 %v1760
    %v2086 = vpop.f32.mrb[0].mxu0
    %v2087 = vadd.f32 %v1906, %v2086
    %v2088 = vpop.f32.mrb[0].mxu0
    %v2089 = vpop.f32.mrb[0].mxu0
    %v2090 = vpop.f32.mrb[0].mxu0
    %2091 = vdwg.mxu0
    %2092 = vmatprep.subr.bf16.mxu0 0
    %2093 = vmatpush1.bf16.msra.mxu0 %v2020
    %2094 = vmatprep.subr.bf16.mxu0 0
    %2095 = vmatpush1.bf16.msra.mxu0 %v2021
    %2096 = vmatprep.subr.bf16.mxu0 0
    %2097 = vmatpush1.bf16.msra.mxu0 %v2022
    %2098 = vmatprep.subr.bf16.mxu0 0
    %2099 = vmatpush1.bf16.msra.mxu0 %v2023
    %2100 = vmatprep.subr.bf16.mxu0 0
    %2101 = vmatpush1.bf16.msra.mxu0 %v2024
    %2102 = vmatprep.subr.bf16.mxu0 0
    %2103 = vmatpush1.bf16.msra.mxu0 %v2025
    %2104 = vmatprep.subr.bf16.mxu0 0
    %2105 = vmatpush1.bf16.msra.mxu0 %v2026
    %2106 = vmatprep.subr.bf16.mxu0 0
    %2107 = vmatpush1.bf16.msra.mxu0 %v2027
    %2108 = vmatprep.subr.bf16.mxu0 0
    %2109 = vmatpush1.bf16.msra.mxu0 0
    %2110 = vmatprep.subr.bf16.mxu0 0
    %2111 = vmatpush1.bf16.msra.mxu0 0
    %2112 = vmatprep.subr.bf16.mxu0 0
    %2113 = vmatpush1.bf16.msra.mxu0 0
    %2114 = vmatprep.subr.bf16.mxu0 0
    %2115 = vmatpush1.bf16.msra.mxu0 0
    %2116 = vmatprep.subr.bf16.mxu0 0
    %2117 = vmatpush1.bf16.msra.mxu0 0
    %2118 = vmatprep.subr.bf16.mxu0 0
    %2119 = vmatpush1.bf16.msra.mxu0 0
    %2120 = vmatprep.subr.bf16.mxu0 0
    %2121 = vmatpush1.bf16.msra.mxu0 0
    %2122 = vmatprep.subr.bf16.mxu0 0
    %2123 = vmatpush1.bf16.msra.mxu0 0
    %2124 = vmatprep.mubr.bf16.mxu0 0
    %2125 = vmatmul.mubr.bf16.gmra.mrb[0].mxu0 %v1852
    %v2126 = vpop.f32.mrb[0].mxu0
    %v2127 = vadd.f32 %v2087, %v2126
    %v2128 = vpop.f32.mrb[0].mxu0
    %v2129 = vpop.f32.mrb[0].mxu0
    %v2130 = vpop.f32.mrb[0].mxu0
    %2131 = vdwg.mxu0
    %2132 = vst [vmem:[#allocation6] sm:$0x3f] %v2127
    // Predicated region
    $region50: #{tpu_custom_call.1} parent=1 // pred_check
      _
    $region51: #{tpu_custom_call.1} parent=1 // pred_check_branch
      %2134 = sbr.rel (0) target = $region53
    $region52: #{tpu_custom_call.1} parent=1 // pred_region
      %s2136 = ssub.s32 128, 128
      %2137 = vsyncadd [#allocation4], %s2136
      %s2139 = sshll.u32 [#allocation6], 4
      %s2140 = int_to_ptr.vmem [resolvable:$true] %s2139
      %2142 = dma.vmem_to_hbm [thread:$0]  %s2140, 128, %s11, [#allocation4]
    $region53: #{tpu_custom_call.1} parent=1 // pred_fallthru
      _
    // Predicated region
    $region54: #{tpu_custom_call.1} parent=1 // pred_check
      _
    $region55: #{tpu_custom_call.1} parent=1 // pred_check_branch
      %2144 = sbr.rel (0) target = $region57
    $region56: #{tpu_custom_call.1} parent=1 // pred_region
      %2145 = dma.done [#allocation4], 128
    $region57: #{tpu_custom_call.1} parent=1 // pred_fallthru
      _
    %2146 = vsyncpa [#allocation4], 1
    %2147 = vsyncpa [#allocation5], 1

</llo_original>
